<compile_context>
chip_gen: v7x
topology: tpu7x:2x2x1
jax: 0.10.0
libtpu: 0.0.40
codegen_flags: <defaults>
</compile_context>

<pallas_src>
import jax
import jax.numpy as jnp
from jax import lax
from jax.experimental import pallas as pl
from jax.experimental.pallas import tpu as pltpu

EPS = 1e-5  # nn.InstanceNorm2d default


# ---------------------------------------------------------------------------
# Fused Pallas kernel: conv3x3 + IN + ReLU + conv3x3 + IN + residual
# ---------------------------------------------------------------------------
def _resnet_block_kernel(xp_ref, w1_ref, w2_ref, o_ref, y1p_ref):
    # xp_ref : (1, H+2, W+2, Cp)  f32 reflect-padded input, one batch element
    # w1_ref : (9*Cp, Cp)         bf16 conv1 weight, rows ordered (tap, cin)
    # w2_ref : (9*Cp, Cp)         bf16 conv2 weight
    # o_ref  : (1, H, W, Cp)      f32 output  (x + block(x))
    # y1p_ref: (H+2, W+2, Cp)     f32 VMEM scratch for the padded intermediate
    _, h, w, c = o_ref.shape
    hw = h * w

    def conv3x3(tap, w_ref):
        # one big-K matmul: (HW, 9C) x (9C, C) -> f32 (HW, C)
        lhs = jnp.concatenate(
            [tap(dy, dx) for dy in range(3) for dx in range(3)], axis=-1)
        return jnp.dot(lhs, w_ref[...], preferred_element_type=jnp.float32)

    def instance_norm(y):
        mean = jnp.mean(y, axis=0, keepdims=True)            # per-channel over HW
        centered = y - mean
        var = jnp.mean(centered * centered, axis=0, keepdims=True)
        return centered * lax.rsqrt(var + EPS)

    xp = xp_ref[0]                                           # (H+2, W+2, Cp) f32

    # ---- conv1 -> InstanceNorm -> ReLU --------------------------------------
    # (conv bias omitted: exactly cancelled by the affine=False InstanceNorm)
    def tap1(dy, dx):
        return xp[dy:dy + h, dx:dx + w, :].reshape(hw, c).astype(jnp.bfloat16)

    y1 = jnp.maximum(instance_norm(conv3x3(tap1, w1_ref)), 0.0)   # (HW, Cp) f32
    # TODO(synk): use_dropout=False chosen; nn.Dropout(0.5) train-mode RNG not emitted.

    # ---- in-kernel 1px reflection pad of y1 into VMEM scratch ---------------
    y1_img = y1.reshape(h, w, c)
    y1p_ref[1:h + 1, 1:w + 1, :] = y1_img
    y1p_ref[1:h + 1, 0:1, :] = y1_img[:, 1:2, :]              # left  col = col 1
    y1p_ref[1:h + 1, w + 1:w + 2, :] = y1_img[:, w - 2:w - 1, :]  # right col = col W-2
    y1p_ref[0:1, :, :] = y1p_ref[2:3, :, :]                   # top row  (incl. corners)
    y1p_ref[h + 1:h + 2, :, :] = y1p_ref[h - 1:h, :, :]       # bottom row

    y1p = y1p_ref[...]                                        # (H+2, W+2, Cp) f32

    # ---- conv2 -> InstanceNorm -> + residual --------------------------------
    def tap2(dy, dx):
        return y1p[dy:dy + h, dx:dx + w, :].reshape(hw, c).astype(jnp.bfloat16)

    h2 = instance_norm(conv3x3(tap2, w2_ref))                 # (HW, Cp) f32
    res = xp[1:h + 1, 1:w + 1, :].reshape(hw, c)              # f32 residual
    o_ref[0] = (res + h2).reshape(h, w, c).astype(o_ref.dtype)


# ---------------------------------------------------------------------------
# pallas_call wrapper
# ---------------------------------------------------------------------------
def _round_up(x, m):
    return (x + m - 1) // m * m


def _vmem_limit_bytes(h, w, cp):
    hp, wp = h + 2, w + 2
    est = (2 * hp * wp * cp * 4          # double-buffered padded-input block (f32)
           + 2 * h * w * cp * 4          # double-buffered output block (f32)
           + 2 * 2 * 9 * cp * cp * 2     # w1 + w2 (bf16), double-buffered
           + hp * wp * cp * 4            # reflect-pad scratch (f32)
           + 2 * h * w * 9 * cp * 2      # big-K matmul lhs slabs (bf16)
           + 8 * h * w * cp * 4)         # f32 temporaries (acc/centered/y1/res)
    return int(min(est * 3 // 2 + (4 << 20), 100 * (1 << 20)))


def _pallas_resnet_block(xp, w1, w2):
    n, hp, wp, cp = xp.shape
    h, w = hp - 2, wp - 2
    return pl.pallas_call(
        _resnet_block_kernel,
        out_shape=jax.ShapeDtypeStruct((n, h, w, cp), jnp.float32),
        grid=(n,),
        in_specs=[
            pl.BlockSpec((1, hp, wp, cp), lambda i: (i, 0, 0, 0)),
            pl.BlockSpec((9 * cp, cp), lambda i: (0, 0)),
            pl.BlockSpec((9 * cp, cp), lambda i: (0, 0)),
        ],
        out_specs=pl.BlockSpec((1, h, w, cp), lambda i: (i, 0, 0, 0)),
        scratch_shapes=[pltpu.VMEM((hp, wp, cp), jnp.float32)],
        compiler_params=pltpu.CompilerParams(
            dimension_semantics=("parallel",),
            vmem_limit_bytes=_vmem_limit_bytes(h, w, cp)),
    )(xp, w1, w2)


def resnet_block_forward_nhwc(x_nhwc, params):
    """NHWC hot-path entry (use this inside an NHWC model to avoid per-block
    layout conversions)."""
    n, h, w, c = x_nhwc.shape
    cp = params["w1"].shape[1]
    x = x_nhwc.astype(jnp.float32)
    if cp != c:   # lane-pad channels; zero channels stay exactly 0 through the block
        x = jnp.pad(x, ((0, 0), (0, 0), (0, 0), (0, cp - c)))
    xp = jnp.pad(x, ((0, 0), (1, 1), (1, 1), (0, 0)), mode="reflect")
    y = _pallas_resnet_block(xp, params["w1"], params["w2"])
    return y[..., :c]


@jax.jit
def resnet_block_forward(x_nchw, params):
    """NCHW in/out to match the PyTorch module interface."""
    x = jnp.transpose(x_nchw, (0, 2, 3, 1))
    y = resnet_block_forward_nhwc(x, params)
    return jnp.transpose(y, (0, 3, 1, 2))


# ---------------------------------------------------------------------------
# Parameter init (PyTorch Conv2d OIHW weights, packed to (9*Cp, Cp) bf16)
# ---------------------------------------------------------------------------
def _pack_weight(w_oihw, cp):
    o, i, kh, kw = w_oihw.shape
    w_hwio = jnp.transpose(w_oihw, (2, 3, 1, 0))                       # (kh, kw, I, O)
    w_full = jnp.zeros((kh, kw, cp, cp), jnp.float32).at[:, :, :i, :o].set(w_hwio)
    return w_full.reshape(kh * kw * cp, cp).astype(jnp.bfloat16)       # (9*Cp, Cp)


def init_params(key, dim):
    k1, k2, k3, k4 = jax.random.split(key, 4)
    w1_oihw = jax.random.normal(k1, (dim, dim, 3, 3), jnp.float32) * 0.1
    w2_oihw = jax.random.normal(k2, (dim, dim, 3, 3), jnp.float32) * 0.1
    b1 = jax.random.normal(k3, (dim,), jnp.float32) * 0.05
    b2 = jax.random.normal(k4, (dim,), jnp.float32) * 0.05
    cp = _round_up(dim, 128)
    return {
        "w1": _pack_weight(w1_oihw, cp),
        "w2": _pack_weight(w2_oihw, cp),
        # PyTorch-layout copies (with biases) for the pure-JAX reference check.
        "w1_oihw": w1_oihw, "w2_oihw": w2_oihw, "b1": b1, "b2": b2,
    }


# ---------------------------------------------------------------------------
# Pure-JAX reference (mirrors the kernel's mixed precision: conv operands
# rounded to bf16 as on the MXU, f32 accumulation / InstanceNorm / residual;
# biases kept here -- the affine=False InstanceNorm cancels them exactly,
# which is why the kernel drops them).
# ---------------------------------------------------------------------------
def _reflect_pad_nhwc(x):
    return jnp.pad(x, ((0, 0), (1, 1), (1, 1), (0, 0)), mode="reflect")


def _ref_forward(x_nchw, params):
    x = jnp.transpose(x_nchw, (0, 2, 3, 1)).astype(jnp.float32)

    def q(a):  # simulate bf16 MXU-input rounding
        return a.astype(jnp.bfloat16).astype(jnp.float32)

    def conv(xx, w_oihw, b):
        w_hwio = jnp.transpose(w_oihw, (2, 3, 1, 0))
        y = lax.conv_general_dilated(
            _reflect_pad_nhwc(q(xx)), q(w_hwio), (1, 1), "VALID",
            dimension_numbers=("NHWC", "HWIO", "NHWC"),
            precision=lax.Precision.HIGHEST)
        return y + b[None, None, None, :]

    def inorm(y):
        m = jnp.mean(y, axis=(1, 2), keepdims=True)
        cen = y - m
        v = jnp.mean(cen * cen, axis=(1, 2), keepdims=True)
        return cen * lax.rsqrt(v + EPS)

    h1 = jnp.maximum(inorm(conv(x, params["w1_oihw"], params["b1"])), 0.0)
    h2 = inorm(conv(h1, params["w2_oihw"], params["b2"]))
    return jnp.transpose(x + h2, (0, 3, 1, 2))


if __name__ == "__main__":
    key = jax.random.PRNGKey(0)
    kx, kp = jax.random.split(key)

    N, C, H, W = 2, 4, 16, 16
    x = jax.random.normal(kx, (N, C, H, W), jnp.float32)
    params = init_params(kp, C)

    out = jax.block_until_ready(resnet_block_forward(x, params))
    ref = jax.block_until_ready(_ref_forward(x, params))

    assert out.shape == (N, C, H, W)
    max_err = float(jnp.max(jnp.abs(out - ref)))
    assert jnp.allclose(out, ref, atol=2e-3, rtol=2e-3), (
        f"mismatch vs reference (max abs err {max_err})")

    print("KERNEL_OK")
</pallas_src>

<mosaic_0001>
module attributes {stable_mosaic.version = 11 : i64} {
  func.func @_resnet_block_kernel(%arg0: i32, %arg1: memref<1x18x18x128xf32, #tpu.memory_space<vmem>>, %arg2: memref<1152x128xbf16, #tpu.memory_space<vmem>>, %arg3: memref<1152x128xbf16, #tpu.memory_space<vmem>>, %arg4: memref<1x16x16x128xf32, #tpu.memory_space<vmem>>, %arg5: memref<18x18x128xf32, #tpu.memory_space<vmem>>) attributes {dimension_semantics = [#tpu.dimension_semantics<parallel>], iteration_bounds = array<i64: 2>, scalar_prefetch = 0 : i64, scratch_operands = 1 : i64, tpu.core_type = #tpu.core_type<tc>, window_params = [{transform_indices = @transform_0, window_bounds = array<i64: 1, 18, 18, 128>}, {pipeline_mode = #tpu.pipeline_mode<synchronous>, transform_indices = @transform_1, window_bounds = array<i64: 1152, 128>}, {pipeline_mode = #tpu.pipeline_mode<synchronous>, transform_indices = @transform_2, window_bounds = array<i64: 1152, 128>}, {transform_indices = @transform_3, window_bounds = array<i64: 1, 16, 16, 128>}]} {
    %c0 = arith.constant 0 : index
    %c0_0 = arith.constant 0 : index
    %c0_1 = arith.constant 0 : index
    %c0_2 = arith.constant 0 : index
    %0 = vector.load %arg1[%c0, %c0_0, %c0_1, %c0_2] : memref<1x18x18x128xf32, #tpu.memory_space<vmem>>, vector<1x18x18x128xf32>
    %1 = vector.shape_cast %0 : vector<1x18x18x128xf32> to vector<18x18x128xf32>
    %2 = vector.extract_strided_slice %1 {offsets = [0, 0, 0], sizes = [16, 16, 128], strides = [1, 1, 1]} : vector<18x18x128xf32> to vector<16x16x128xf32>
    %3 = vector.shape_cast %2 : vector<16x16x128xf32> to vector<256x128xf32>
    %4 = arith.truncf %3 : vector<256x128xf32> to vector<256x128xbf16>
    %5 = vector.extract_strided_slice %1 {offsets = [0, 1, 0], sizes = [16, 16, 128], strides = [1, 1, 1]} : vector<18x18x128xf32> to vector<16x16x128xf32>
    %6 = vector.shape_cast %5 : vector<16x16x128xf32> to vector<256x128xf32>
    %7 = arith.truncf %6 : vector<256x128xf32> to vector<256x128xbf16>
    %8 = vector.extract_strided_slice %1 {offsets = [0, 2, 0], sizes = [16, 16, 128], strides = [1, 1, 1]} : vector<18x18x128xf32> to vector<16x16x128xf32>
    %9 = vector.shape_cast %8 : vector<16x16x128xf32> to vector<256x128xf32>
    %10 = arith.truncf %9 : vector<256x128xf32> to vector<256x128xbf16>
    %11 = vector.extract_strided_slice %1 {offsets = [1, 0, 0], sizes = [16, 16, 128], strides = [1, 1, 1]} : vector<18x18x128xf32> to vector<16x16x128xf32>
    %12 = vector.shape_cast %11 : vector<16x16x128xf32> to vector<256x128xf32>
    %13 = arith.truncf %12 : vector<256x128xf32> to vector<256x128xbf16>
    %14 = vector.extract_strided_slice %1 {offsets = [1, 1, 0], sizes = [16, 16, 128], strides = [1, 1, 1]} : vector<18x18x128xf32> to vector<16x16x128xf32>
    %15 = vector.shape_cast %14 : vector<16x16x128xf32> to vector<256x128xf32>
    %16 = arith.truncf %15 : vector<256x128xf32> to vector<256x128xbf16>
    %17 = vector.extract_strided_slice %1 {offsets = [1, 2, 0], sizes = [16, 16, 128], strides = [1, 1, 1]} : vector<18x18x128xf32> to vector<16x16x128xf32>
    %18 = vector.shape_cast %17 : vector<16x16x128xf32> to vector<256x128xf32>
    %19 = arith.truncf %18 : vector<256x128xf32> to vector<256x128xbf16>
    %20 = vector.extract_strided_slice %1 {offsets = [2, 0, 0], sizes = [16, 16, 128], strides = [1, 1, 1]} : vector<18x18x128xf32> to vector<16x16x128xf32>
    %21 = vector.shape_cast %20 : vector<16x16x128xf32> to vector<256x128xf32>
    %22 = arith.truncf %21 : vector<256x128xf32> to vector<256x128xbf16>
    %23 = vector.extract_strided_slice %1 {offsets = [2, 1, 0], sizes = [16, 16, 128], strides = [1, 1, 1]} : vector<18x18x128xf32> to vector<16x16x128xf32>
    %24 = vector.shape_cast %23 : vector<16x16x128xf32> to vector<256x128xf32>
    %25 = arith.truncf %24 : vector<256x128xf32> to vector<256x128xbf16>
    %26 = vector.extract_strided_slice %1 {offsets = [2, 2, 0], sizes = [16, 16, 128], strides = [1, 1, 1]} : vector<18x18x128xf32> to vector<16x16x128xf32>
    %27 = vector.shape_cast %26 : vector<16x16x128xf32> to vector<256x128xf32>
    %28 = arith.truncf %27 : vector<256x128xf32> to vector<256x128xbf16>
    %29 = tpu.concatenate %4, %7, %10, %13, %16, %19, %22, %25, %28 in 1 : vector<256x128xbf16>, vector<256x128xbf16>, vector<256x128xbf16>, vector<256x128xbf16>, vector<256x128xbf16>, vector<256x128xbf16>, vector<256x128xbf16>, vector<256x128xbf16>, vector<256x128xbf16> -> vector<256x1152xbf16>
    %c0_3 = arith.constant 0 : index
    %c0_4 = arith.constant 0 : index
    %30 = vector.load %arg2[%c0_3, %c0_4] : memref<1152x128xbf16, #tpu.memory_space<vmem>>, vector<1152x128xbf16>
    %cst = arith.constant dense<0.000000e+00> : vector<256x128xf32>
    %31 = tpu.matmul %29, %30, %cst {dimension_numbers = #tpu.dot_dimension_numbers<[1], [0], [0], [1], [0, 0, 1, 1], [], []>} : vector<256x1152xbf16>, vector<1152x128xbf16>, vector<256x128xf32> -> vector<256x128xf32>
    %cst_5 = arith.constant dense<0.000000e+00> : vector<128xf32>
    %32 = vector.multi_reduction <add>, %31, %cst_5 [0] : vector<256x128xf32> to vector<128xf32>
    %33 = vector.shape_cast %32 : vector<128xf32> to vector<1x128xf32>
    %cst_6 = arith.constant 2.560000e+02 : f32
    %34 = vector.broadcast %cst_6 : f32 to vector<1x128xf32>
    %35 = arith.divf %33, %34 : vector<1x128xf32>
    %36 = vector.broadcast %35 : vector<1x128xf32> to vector<256x128xf32>
    %37 = arith.subf %31, %36 : vector<256x128xf32>
    %38 = arith.mulf %37, %37 : vector<256x128xf32>
    %cst_7 = arith.constant dense<0.000000e+00> : vector<128xf32>
    %39 = vector.multi_reduction <add>, %38, %cst_7 [0] : vector<256x128xf32> to vector<128xf32>
    %40 = vector.shape_cast %39 : vector<128xf32> to vector<1x128xf32>
    %cst_8 = arith.constant 2.560000e+02 : f32
    %41 = vector.broadcast %cst_8 : f32 to vector<1x128xf32>
    %42 = arith.divf %40, %41 : vector<1x128xf32>
    %cst_9 = arith.constant 9.99999974E-6 : f32
    %43 = vector.broadcast %cst_9 : f32 to vector<1x128xf32>
    %44 = arith.addf %42, %43 : vector<1x128xf32>
    %45 = math.rsqrt %44 : vector<1x128xf32>
    %46 = vector.broadcast %45 : vector<1x128xf32> to vector<256x128xf32>
    %47 = arith.mulf %37, %46 : vector<256x128xf32>
    %cst_10 = arith.constant 0.000000e+00 : f32
    %48 = vector.broadcast %cst_10 : f32 to vector<256x128xf32>
    %49 = arith.maximumf %47, %48 : vector<256x128xf32>
    %50 = vector.shape_cast %49 : vector<256x128xf32> to vector<16x16x128xf32>
    %c1 = arith.constant 1 : index
    %c1_11 = arith.constant 1 : index
    %c0_12 = arith.constant 0 : index
    %51 = vector.load %arg5[%c1, %c1_11, %c0_12] : memref<18x18x128xf32, #tpu.memory_space<vmem>>, vector<16x16x128xf32>
    tpu.vector_store %arg5[%c1, %c1_11, %c0_12], %50 {strides = array<i32>} : memref<18x18x128xf32, #tpu.memory_space<vmem>>, vector<16x16x128xf32>,
    %52 = vector.extract_strided_slice %50 {offsets = [0, 1, 0], sizes = [16, 1, 128], strides = [1, 1, 1]} : vector<16x16x128xf32> to vector<16x1x128xf32>
    %c1_13 = arith.constant 1 : index
    %c0_14 = arith.constant 0 : index
    %c0_15 = arith.constant 0 : index
    %53 = vector.load %arg5[%c1_13, %c0_14, %c0_15] : memref<18x18x128xf32, #tpu.memory_space<vmem>>, vector<16x1x128xf32>
    tpu.vector_store %arg5[%c1_13, %c0_14, %c0_15], %52 {strides = array<i32>} : memref<18x18x128xf32, #tpu.memory_space<vmem>>, vector<16x1x128xf32>,
    %54 = vector.extract_strided_slice %50 {offsets = [0, 14, 0], sizes = [16, 1, 128], strides = [1, 1, 1]} : vector<16x16x128xf32> to vector<16x1x128xf32>
    %c1_16 = arith.constant 1 : index
    %c17 = arith.constant 17 : index
    %c0_17 = arith.constant 0 : index
    %55 = vector.load %arg5[%c1_16, %c17, %c0_17] : memref<18x18x128xf32, #tpu.memory_space<vmem>>, vector<16x1x128xf32>
    tpu.vector_store %arg5[%c1_16, %c17, %c0_17], %54 {strides = array<i32>} : memref<18x18x128xf32, #tpu.memory_space<vmem>>, vector<16x1x128xf32>,
    %c2 = arith.constant 2 : index
    %c0_18 = arith.constant 0 : index
    %c0_19 = arith.constant 0 : index
    %56 = vector.load %arg5[%c2, %c0_18, %c0_19] : memref<18x18x128xf32, #tpu.memory_space<vmem>>, vector<1x18x128xf32>
    %c0_20 = arith.constant 0 : index
    %c0_21 = arith.constant 0 : index
    %c0_22 = arith.constant 0 : index
    %57 = vector.load %arg5[%c0_20, %c0_21, %c0_22] : memref<18x18x128xf32, #tpu.memory_space<vmem>>, vector<1x18x128xf32>
    tpu.vector_store %arg5[%c0_20, %c0_21, %c0_22], %56 {strides = array<i32>} : memref<18x18x128xf32, #tpu.memory_space<vmem>>, vector<1x18x128xf32>,
    %c15 = arith.constant 15 : index
    %c0_23 = arith.constant 0 : index
    %c0_24 = arith.constant 0 : index
    %58 = vector.load %arg5[%c15, %c0_23, %c0_24] : memref<18x18x128xf32, #tpu.memory_space<vmem>>, vector<1x18x128xf32>
    %c17_25 = arith.constant 17 : index
    %c0_26 = arith.constant 0 : index
    %c0_27 = arith.constant 0 : index
    %59 = vector.load %arg5[%c17_25, %c0_26, %c0_27] : memref<18x18x128xf32, #tpu.memory_space<vmem>>, vector<1x18x128xf32>
    tpu.vector_store %arg5[%c17_25, %c0_26, %c0_27], %58 {strides = array<i32>} : memref<18x18x128xf32, #tpu.memory_space<vmem>>, vector<1x18x128xf32>,
    %c0_28 = arith.constant 0 : index
    %c0_29 = arith.constant 0 : index
    %c0_30 = arith.constant 0 : index
    %60 = vector.load %arg5[%c0_28, %c0_29, %c0_30] : memref<18x18x128xf32, #tpu.memory_space<vmem>>, vector<18x18x128xf32>
    %61 = vector.extract_strided_slice %60 {offsets = [0, 0, 0], sizes = [16, 16, 128], strides = [1, 1, 1]} : vector<18x18x128xf32> to vector<16x16x128xf32>
    %62 = vector.shape_cast %61 : vector<16x16x128xf32> to vector<256x128xf32>
    %63 = arith.truncf %62 : vector<256x128xf32> to vector<256x128xbf16>
    %64 = vector.extract_strided_slice %60 {offsets = [0, 1, 0], sizes = [16, 16, 128], strides = [1, 1, 1]} : vector<18x18x128xf32> to vector<16x16x128xf32>
    %65 = vector.shape_cast %64 : vector<16x16x128xf32> to vector<256x128xf32>
    %66 = arith.truncf %65 : vector<256x128xf32> to vector<256x128xbf16>
    %67 = vector.extract_strided_slice %60 {offsets = [0, 2, 0], sizes = [16, 16, 128], strides = [1, 1, 1]} : vector<18x18x128xf32> to vector<16x16x128xf32>
    %68 = vector.shape_cast %67 : vector<16x16x128xf32> to vector<256x128xf32>
    %69 = arith.truncf %68 : vector<256x128xf32> to vector<256x128xbf16>
    %70 = vector.extract_strided_slice %60 {offsets = [1, 0, 0], sizes = [16, 16, 128], strides = [1, 1, 1]} : vector<18x18x128xf32> to vector<16x16x128xf32>
    %71 = vector.shape_cast %70 : vector<16x16x128xf32> to vector<256x128xf32>
    %72 = arith.truncf %71 : vector<256x128xf32> to vector<256x128xbf16>
    %73 = vector.extract_strided_slice %60 {offsets = [1, 1, 0], sizes = [16, 16, 128], strides = [1, 1, 1]} : vector<18x18x128xf32> to vector<16x16x128xf32>
    %74 = vector.shape_cast %73 : vector<16x16x128xf32> to vector<256x128xf32>
    %75 = arith.truncf %74 : vector<256x128xf32> to vector<256x128xbf16>
    %76 = vector.extract_strided_slice %60 {offsets = [1, 2, 0], sizes = [16, 16, 128], strides = [1, 1, 1]} : vector<18x18x128xf32> to vector<16x16x128xf32>
    %77 = vector.shape_cast %76 : vector<16x16x128xf32> to vector<256x128xf32>
    %78 = arith.truncf %77 : vector<256x128xf32> to vector<256x128xbf16>
    %79 = vector.extract_strided_slice %60 {offsets = [2, 0, 0], sizes = [16, 16, 128], strides = [1, 1, 1]} : vector<18x18x128xf32> to vector<16x16x128xf32>
    %80 = vector.shape_cast %79 : vector<16x16x128xf32> to vector<256x128xf32>
    %81 = arith.truncf %80 : vector<256x128xf32> to vector<256x128xbf16>
    %82 = vector.extract_strided_slice %60 {offsets = [2, 1, 0], sizes = [16, 16, 128], strides = [1, 1, 1]} : vector<18x18x128xf32> to vector<16x16x128xf32>
    %83 = vector.shape_cast %82 : vector<16x16x128xf32> to vector<256x128xf32>
    %84 = arith.truncf %83 : vector<256x128xf32> to vector<256x128xbf16>
    %85 = vector.extract_strided_slice %60 {offsets = [2, 2, 0], sizes = [16, 16, 128], strides = [1, 1, 1]} : vector<18x18x128xf32> to vector<16x16x128xf32>
    %86 = vector.shape_cast %85 : vector<16x16x128xf32> to vector<256x128xf32>
    %87 = arith.truncf %86 : vector<256x128xf32> to vector<256x128xbf16>
    %88 = tpu.concatenate %63, %66, %69, %72, %75, %78, %81, %84, %87 in 1 : vector<256x128xbf16>, vector<256x128xbf16>, vector<256x128xbf16>, vector<256x128xbf16>, vector<256x128xbf16>, vector<256x128xbf16>, vector<256x128xbf16>, vector<256x128xbf16>, vector<256x128xbf16> -> vector<256x1152xbf16>
    %c0_31 = arith.constant 0 : index
    %c0_32 = arith.constant 0 : index
    %89 = vector.load %arg3[%c0_31, %c0_32] : memref<1152x128xbf16, #tpu.memory_space<vmem>>, vector<1152x128xbf16>
    %cst_33 = arith.constant dense<0.000000e+00> : vector<256x128xf32>
    %90 = tpu.matmul %88, %89, %cst_33 {dimension_numbers = #tpu.dot_dimension_numbers<[1], [0], [0], [1], [0, 0, 1, 1], [], []>} : vector<256x1152xbf16>, vector<1152x128xbf16>, vector<256x128xf32> -> vector<256x128xf32>
    %cst_34 = arith.constant dense<0.000000e+00> : vector<128xf32>
    %91 = vector.multi_reduction <add>, %90, %cst_34 [0] : vector<256x128xf32> to vector<128xf32>
    %92 = vector.shape_cast %91 : vector<128xf32> to vector<1x128xf32>
    %cst_35 = arith.constant 2.560000e+02 : f32
    %93 = vector.broadcast %cst_35 : f32 to vector<1x128xf32>
    %94 = arith.divf %92, %93 : vector<1x128xf32>
    %95 = vector.broadcast %94 : vector<1x128xf32> to vector<256x128xf32>
    %96 = arith.subf %90, %95 : vector<256x128xf32>
    %97 = arith.mulf %96, %96 : vector<256x128xf32>
    %cst_36 = arith.constant dense<0.000000e+00> : vector<128xf32>
    %98 = vector.multi_reduction <add>, %97, %cst_36 [0] : vector<256x128xf32> to vector<128xf32>
    %99 = vector.shape_cast %98 : vector<128xf32> to vector<1x128xf32>
    %cst_37 = arith.constant 2.560000e+02 : f32
    %100 = vector.broadcast %cst_37 : f32 to vector<1x128xf32>
    %101 = arith.divf %99, %100 : vector<1x128xf32>
    %cst_38 = arith.constant 9.99999974E-6 : f32
    %102 = vector.broadcast %cst_38 : f32 to vector<1x128xf32>
    %103 = arith.addf %101, %102 : vector<1x128xf32>
    %104 = math.rsqrt %103 : vector<1x128xf32>
    %105 = vector.broadcast %104 : vector<1x128xf32> to vector<256x128xf32>
    %106 = arith.mulf %96, %105 : vector<256x128xf32>
    %107 = vector.extract_strided_slice %1 {offsets = [1, 1, 0], sizes = [16, 16, 128], strides = [1, 1, 1]} : vector<18x18x128xf32> to vector<16x16x128xf32>
    %108 = vector.shape_cast %107 : vector<16x16x128xf32> to vector<256x128xf32>
    %109 = arith.addf %108, %106 : vector<256x128xf32>
    %110 = vector.shape_cast %109 : vector<256x128xf32> to vector<16x16x128xf32>
    %c0_39 = arith.constant 0 : index
    %c0_40 = arith.constant 0 : index
    %c0_41 = arith.constant 0 : index
    %c0_42 = arith.constant 0 : index
    %111 = vector.load %arg4[%c0_39, %c0_40, %c0_41, %c0_42] : memref<1x16x16x128xf32, #tpu.memory_space<vmem>>, vector<1x16x16x128xf32>
    %112 = vector.shape_cast %111 : vector<1x16x16x128xf32> to vector<16x16x128xf32>
    %113 = vector.shape_cast %110 : vector<16x16x128xf32> to vector<1x16x16x128xf32>
    tpu.vector_store %arg4[%c0_39, %c0_40, %c0_41, %c0_42], %113 {strides = array<i32>} : memref<1x16x16x128xf32, #tpu.memory_space<vmem>>, vector<1x16x16x128xf32>,
    return
  }
  func.func @transform_0(%arg0: i32) -> (i32, i32, i32, i32) {
    %c0_i32 = arith.constant 0 : i32
    %c0_i32_0 = arith.constant 0 : i32
    %c0_i32_1 = arith.constant 0 : i32
    %c0_i32_2 = arith.constant 0 : i32
    return %arg0, %c0_i32, %c0_i32_0, %c0_i32_1 : i32, i32, i32, i32
  }
  func.func @transform_1(%arg0: i32) -> (i32, i32) {
    %c0_i32 = arith.constant 0 : i32
    %c0_i32_0 = arith.constant 0 : i32
    %c0_i32_1 = arith.constant 0 : i32
    return %c0_i32, %c0_i32_0 : i32, i32
  }
  func.func @transform_2(%arg0: i32) -> (i32, i32) {
    %c0_i32 = arith.constant 0 : i32
    %c0_i32_0 = arith.constant 0 : i32
    %c0_i32_1 = arith.constant 0 : i32
    return %c0_i32, %c0_i32_0 : i32, i32
  }
  func.func @transform_3(%arg0: i32) -> (i32, i32, i32, i32) {
    %c0_i32 = arith.constant 0 : i32
    %c0_i32_0 = arith.constant 0 : i32
    %c0_i32_1 = arith.constant 0 : i32
    %c0_i32_2 = arith.constant 0 : i32
    return %arg0, %c0_i32, %c0_i32_0, %c0_i32_1 : i32, i32, i32, i32
  }
}

</mosaic_0001>

<llo_original>
// kernel: resnet_block_forward.1
$region0: #{resnet_block_forward.1}
  #allocation0 [shape = 'u32[]', space=smem, size = 0x4, offset = 0x4, fixed_abs, tag = 'smem constant byte address 0x4 - core index']
  #allocation1 [shape = 'u32[144,128]{1,0:T(1,128)}', space=vmem, size = 0x12000, scoped, tag = 'internal scratch']
  #allocation2 [shape = 'f32[18,18,128]{2,1,0:T(8,128)}', space=vmem, size = 0x36000, scoped, tag = 'scratch operand']
  %s0 = inlined_call_operand.vmem [shape: f32[2,18,18,128], index: 0, kind: input, shape index: {}]
  %s1 = inlined_call_operand.vmem [shape: bf16[1152,128], index: 1, kind: input, shape index: {}]
  %s2 = inlined_call_operand.vmem [shape: bf16[1152,128], index: 2, kind: input, shape index: {}]
  %s3 = inlined_call_operand.vmem [shape: f32[2,16,16,128], index: 3, kind: output, shape index: {}]
  %s4 = sld [smem:[#allocation0]]
  $region45: #{resnet_block_forward.1} parent=0
    _
  %s6 = ssub.s32 1, %s4
  %s7 = scalar_select 0, %s6, %s4
  loop: start=0, step=1, limit=4
  $region2: #{resnet_block_forward.1} parent=0 // loop_pre_header
    _
  $region3: #{resnet_block_forward.1} parent=0 // loop_header
    %s9 = sphi 0, %s13
    %p10 = scmp.ge.s32.totalorder %s9, 4
    %s19 = sphi 0, %s21
    %s22 = sphi 0, %s19
    %s23 = sphi 0, %s22
    %s39 = sphi 0, %s23
    %s43 = sphi 0, %s43
    %s45 = sphi 0, %s43
    %s46 = sphi 0, %s45
    %s60 = sphi 0, %s46
    %s64 = sphi 0, %s64
    %s66 = sphi 0, %s64
    %s67 = sphi 0, %s66
    %s81 = sphi 0, %s67
    %s87 = sphi 0, %s89
    %s90 = sphi 0, %s87
    %s91 = sphi 0, %s90
    %s107 = sphi 0, %s91
  $region4: #{resnet_block_forward.1} parent=0 // loop_header_branch
    %12 = sbr.rel (%p10) target = $region8
  $region5: #{resnet_block_forward.1} parent=0 // loop_body
    %s14 = ssub.s32 %s9, 1
    %s15 = ssub.s32 %s9, 2
    %s16 = sadd.s32 %s9, 1
    %s17 = ssub.s32 %s9, %s16
    %p18 = scmp.eq.s32.totalorder %s17, 0
    %s20 = sadd.s32 %s19, 1
    %s21 = scalar_select %p18, %s19, %s20
    %p24 = pneg %p18
    %p25 = scmp.eq.s32.totalorder %s9, 1
    %p26 = por %p24, %p25
    %p27 = scmp.ne.s32.totalorder %s19, %s22
    %p28 = scmp.eq.s32.totalorder %s9, 0
    %p29 = por %p27, %p28
    %p30 = scmp.ne.s32.totalorder %s19, %s22
    %p31 = scmp.eq.s32.totalorder %s14, 1
    %p32 = por %p30, %p31
    %p33 = scmp.ne.s32.totalorder %s22, %s23
    %p34 = scmp.eq.s32.totalorder %s14, 0
    %p35 = por %p33, %p34
    %p36 = scmp.ne.s32.totalorder %s22, %s23
    %p37 = scmp.eq.s32.totalorder %s15, 1
    %p38 = por %p36, %p37
    %p40 = scmp.ne.s32.totalorder %s23, %s39
    %p41 = scmp.eq.s32.totalorder %s15, 0
    %p42 = por %p40, %p41
    %s44 = sadd.s32 %s43, 1
    %p47 = scmp.eq.s32.totalorder %s9, 1
    %p48 = scmp.ne.s32.totalorder %s43, %s45
    %p49 = scmp.eq.s32.totalorder %s9, 0
    %p50 = por %p48, %p49
    %p51 = scmp.ne.s32.totalorder %s43, %s45
    %p52 = scmp.eq.s32.totalorder %s14, 1
    %p53 = por %p51, %p52
    %p54 = scmp.ne.s32.totalorder %s45, %s46
    %p55 = scmp.eq.s32.totalorder %s14, 0
    %p56 = por %p54, %p55
    %p57 = scmp.ne.s32.totalorder %s45, %s46
    %p58 = scmp.eq.s32.totalorder %s15, 1
    %p59 = por %p57, %p58
    %p61 = scmp.ne.s32.totalorder %s46, %s60
    %p62 = scmp.eq.s32.totalorder %s15, 0
    %p63 = por %p61, %p62
    %s65 = sadd.s32 %s64, 1
    %p68 = scmp.eq.s32.totalorder %s9, 1
    %p69 = scmp.ne.s32.totalorder %s64, %s66
    %p70 = scmp.eq.s32.totalorder %s9, 0
    %p71 = por %p69, %p70
    %p72 = scmp.ne.s32.totalorder %s64, %s66
    %p73 = scmp.eq.s32.totalorder %s14, 1
    %p74 = por %p72, %p73
    %p75 = scmp.ne.s32.totalorder %s66, %s67
    %p76 = scmp.eq.s32.totalorder %s14, 0
    %p77 = por %p75, %p76
    %p78 = scmp.ne.s32.totalorder %s66, %s67
    %p79 = scmp.eq.s32.totalorder %s15, 1
    %p80 = por %p78, %p79
    %p82 = scmp.ne.s32.totalorder %s67, %s81
    %p83 = scmp.eq.s32.totalorder %s15, 0
    %p84 = por %p82, %p83
    %s85 = ssub.s32 %s9, %s16
    %p86 = scmp.eq.s32.totalorder %s85, 0
    %s88 = sadd.s32 %s87, 1
    %s89 = scalar_select %p86, %s87, %s88
    %p92 = pneg %p86
    %p93 = scmp.eq.s32.totalorder %s9, 1
    %p94 = por %p92, %p93
    %p95 = scmp.ne.s32.totalorder %s87, %s90
    %p96 = scmp.eq.s32.totalorder %s9, 0
    %p97 = por %p95, %p96
    %p98 = scmp.ne.s32.totalorder %s87, %s90
    %p99 = scmp.eq.s32.totalorder %s14, 1
    %p100 = por %p98, %p99
    %p101 = scmp.ne.s32.totalorder %s90, %s91
    %p102 = scmp.eq.s32.totalorder %s14, 0
    %p103 = por %p101, %p102
    %p104 = scmp.ne.s32.totalorder %s90, %s91
    %p105 = scmp.eq.s32.totalorder %s15, 1
    %p106 = por %p104, %p105
    %p108 = scmp.ne.s32.totalorder %s91, %s107
    %p109 = scmp.eq.s32.totalorder %s15, 0
    %p110 = por %p108, %p109
    %p111 = scmp.le.s32.totalorder 1, %s9
    %p112 = scmp.lt.s32.totalorder %s9, 3
    %p113 = pnand %p111, %p112
    %p114 = pneg %p113
    // Predicated region
    $region9: #{resnet_block_forward.1} parent=5 // pred_check
      _
    $region10: #{resnet_block_forward.1} parent=5 // pred_check_branch
      %116 = sbr.rel (%p113) target = $region12
    $region11: #{resnet_block_forward.1} parent=5 // pred_region
      %s117 = ssub.s32 %s9, 1
      // Predicated region
      $region13: #{resnet_block_forward.1} parent=11 // pred_check
        %p118 = pneg %p56
      $region14: #{resnet_block_forward.1} parent=11 // pred_check_branch
        %120 = sbr.rel (%p118) target = $region16
      $region15: #{resnet_block_forward.1} parent=11 // pred_region
        _
      $region16: #{resnet_block_forward.1} parent=11 // pred_fallthru
        _
      // Predicated region
      $region17: #{resnet_block_forward.1} parent=11 // pred_check
        %p121 = pneg %p77
      $region18: #{resnet_block_forward.1} parent=11 // pred_check_branch
        %123 = sbr.rel (%p121) target = $region20
      $region19: #{resnet_block_forward.1} parent=11 // pred_region
        _
      $region20: #{resnet_block_forward.1} parent=11 // pred_fallthru
        _
    $region12: #{resnet_block_forward.1} parent=5 // pred_fallthru
      _
    %p124 = scmp.lt.s32.totalorder %s9, 2
    // Predicated region
    $region21: #{resnet_block_forward.1} parent=5 // pred_check
      %p125 = pneg %p124
    $region22: #{resnet_block_forward.1} parent=5 // pred_check_branch
      %127 = sbr.rel (%p125) target = $region24
    $region23: #{resnet_block_forward.1} parent=5 // pred_region
      // Predicated region
      $region25: #{resnet_block_forward.1} parent=23 // pred_check
        %p128 = pneg %p29
      $region26: #{resnet_block_forward.1} parent=23 // pred_check_branch
        %130 = sbr.rel (%p128) target = $region28
      $region27: #{resnet_block_forward.1} parent=23 // pred_region
        %p131 = scmp.lt.s32.totalorder %s9, 1
        %s132 = scalar_select %p131, %s9, 1
        %s133 = smul.addr %s132, 54
        %s134 = smul.addr %s133, 8
        %s135 = scalar_lea.vmem %s0, %s134
      $region28: #{resnet_block_forward.1} parent=23 // pred_fallthru
        _
    $region24: #{resnet_block_forward.1} parent=5 // pred_fallthru
      _
    %p136 = scmp.le.s32.totalorder 1, %s9
    %p137 = scmp.lt.s32.totalorder %s9, 3
    %p138 = pnand %p136, %p137
    %p139 = pneg %p138
    // Predicated region
    $region29: #{resnet_block_forward.1} parent=5 // pred_check
      _
    $region30: #{resnet_block_forward.1} parent=5 // pred_check_branch
      %141 = sbr.rel (%p138) target = $region32
    $region31: #{resnet_block_forward.1} parent=5 // pred_region
      %s142 = ssub.s32 %s9, 1
      %p143 = scmp.lt.s32.totalorder %s14, 1
      %s144 = scalar_select %p143, %s14, 1
      %s145 = smul.addr %s144, 54
      %s146 = smul.addr %s145, 8
      %s147 = scalar_lea.vmem %s0, %s146
      %p148 = pneg %p35
      %p149 = pneg %p32
      %p150 = pneg %p56
      %p151 = pneg %p53
      %p152 = pneg %p77
      %p153 = pneg %p74
      %p154 = pneg %p103
      %p155 = pneg %p100
      %p156 = scmp.lt.s32.totalorder %s14, 1
      %s157 = scalar_select %p156, %s14, 1
      %s158 = smul.addr %s157, 32
      %s159 = smul.addr %s158, 8
      %s160 = scalar_lea.vmem %s3, %s159
      %p161 = scmp.lt.s32.totalorder %s14, 1
      %s162 = scalar_select %p161, %s14, 1
      %s163 = smul.addr %s162, 54
      %s164 = smul.addr %s163, 8
      %s165 = scalar_lea.vmem %s0, %s164
      %p166 = scmp.lt.s32.totalorder %s14, 1
      %s167 = scalar_select %p166, %s14, 1
      %s168 = smul.addr %s167, 32
      %s169 = smul.addr %s168, 8
      %s170 = scalar_lea.vmem %s3, %s169
      %v172 = vld [vmem:[%s165] sm:$0xff]
      %v173 = vld [vmem:[%s165 + $0x8] sm:$0xff]
      %v174 = vld [vmem:[%s165 + $0x10] sm:$0x3]
      %v175 = vld [vmem:[%s165 + $0x18] sm:$0xff]
      %v176 = vld [vmem:[%s165 + $0x20] sm:$0xff]
      %v177 = vld [vmem:[%s165 + $0x28] sm:$0x3]
      %v178 = vld [vmem:[%s165 + $0x30] sm:$0xff]
      %v179 = vld [vmem:[%s165 + $0x38] sm:$0xff]
      %v180 = vld [vmem:[%s165 + $0x40] sm:$0x3]
      %v181 = vld [vmem:[%s165 + $0x48] sm:$0xff]
      %v182 = vld [vmem:[%s165 + $0x50] sm:$0xff]
      %v183 = vld [vmem:[%s165 + $0x58] sm:$0x3]
      %v184 = vld [vmem:[%s165 + $0x60] sm:$0xff]
      %v185 = vld [vmem:[%s165 + $0x68] sm:$0xff]
      %v186 = vld [vmem:[%s165 + $0x70] sm:$0x3]
      %v187 = vld [vmem:[%s165 + $0x78] sm:$0xff]
      %v188 = vld [vmem:[%s165 + $0x80] sm:$0xff]
      %v189 = vld [vmem:[%s165 + $0x88] sm:$0x3]
      %v190 = vld [vmem:[%s165 + $0x90] sm:$0xff]
      %v191 = vld [vmem:[%s165 + $0x98] sm:$0xff]
      %v192 = vld [vmem:[%s165 + $0xa0] sm:$0x3]
      %v193 = vld [vmem:[%s165 + $0xa8] sm:$0xff]
      %v194 = vld [vmem:[%s165 + $0xb0] sm:$0xff]
      %v195 = vld [vmem:[%s165 + $0xb8] sm:$0x3]
      %v196 = vld [vmem:[%s165 + $0xc0] sm:$0xff]
      %v197 = vld [vmem:[%s165 + $0xc8] sm:$0xff]
      %v198 = vld [vmem:[%s165 + $0xd0] sm:$0x3]
      %v199 = vld [vmem:[%s165 + $0xd8] sm:$0xff]
      %v200 = vld [vmem:[%s165 + $0xe0] sm:$0xff]
      %v201 = vld [vmem:[%s165 + $0xe8] sm:$0x3]
      %v202 = vld [vmem:[%s165 + $0xf0] sm:$0xff]
      %v203 = vld [vmem:[%s165 + $0xf8] sm:$0xff]
      %v204 = vld [vmem:[%s165 + $0x100] sm:$0x3]
      %v205 = vld [vmem:[%s165 + $0x108] sm:$0xff]
      %v206 = vld [vmem:[%s165 + $0x110] sm:$0xff]
      %v207 = vld [vmem:[%s165 + $0x118] sm:$0x3]
      %v208 = vld [vmem:[%s165 + $0x120] sm:$0xff]
      %v209 = vld [vmem:[%s165 + $0x128] sm:$0xff]
      %v210 = vld [vmem:[%s165 + $0x130] sm:$0x3]
      %v211 = vld [vmem:[%s165 + $0x138] sm:$0xff]
      %v212 = vld [vmem:[%s165 + $0x140] sm:$0xff]
      %v213 = vld [vmem:[%s165 + $0x148] sm:$0x3]
      %v214 = vld [vmem:[%s165 + $0x150] sm:$0xff]
      %v215 = vld [vmem:[%s165 + $0x158] sm:$0xff]
      %v216 = vld [vmem:[%s165 + $0x160] sm:$0x3]
      %v217 = vld [vmem:[%s165 + $0x168] sm:$0xff]
      %v218 = vld [vmem:[%s165 + $0x170] sm:$0xff]
      %v219 = vld [vmem:[%s165 + $0x178] sm:$0x3]
      %v220 = vld [vmem:[%s165 + $0x180] sm:$0xff]
      %v221 = vld [vmem:[%s165 + $0x188] sm:$0xff]
      %v222 = vld [vmem:[%s165 + $0x190] sm:$0x3]
      %v223 = vld [vmem:[%s165 + $0x198] sm:$0xff]
      %v224 = vld [vmem:[%s165 + $0x1a0] sm:$0xff]
      %v225 = vld [vmem:[%s165 + $0x1a8] sm:$0x3]
      %v226 = vpack.c.bf16 %v173, %v172
      %v227 = vpack.c.bf16 %v176, %v175
      %v228 = vpack.c.bf16 %v179, %v178
      %v229 = vpack.c.bf16 %v182, %v181
      %v230 = vpack.c.bf16 %v185, %v184
      %v231 = vpack.c.bf16 %v188, %v187
      %v232 = vpack.c.bf16 %v191, %v190
      %v233 = vpack.c.bf16 %v194, %v193
      %v234 = vpack.c.bf16 %v197, %v196
      %v235 = vpack.c.bf16 %v200, %v199
      %v236 = vpack.c.bf16 %v203, %v202
      %v237 = vpack.c.bf16 %v206, %v205
      %v238 = vpack.c.bf16 %v209, %v208
      %v239 = vpack.c.bf16 %v212, %v211
      %v240 = vpack.c.bf16 %v215, %v214
      %v241 = vpack.c.bf16 %v218, %v217
      %vm290 = vcmask 1046528
      %v291 = vrot.slane %v172, 1
      %v292 = vrot.slane %v173, 1
      %v293 = vsel %vm290, %v291, %v292
      %v294 = vrot.slane %v174, 1
      %v295 = vsel %vm290, %v292, %v294
      %v296 = vrot.slane %v175, 1
      %v297 = vrot.slane %v176, 1
      %v298 = vsel %vm290, %v296, %v297
      %v299 = vrot.slane %v177, 1
      %v300 = vsel %vm290, %v297, %v299
      %v301 = vrot.slane %v178, 1
      %v302 = vrot.slane %v179, 1
      %v303 = vsel %vm290, %v301, %v302
      %v304 = vrot.slane %v180, 1
      %v305 = vsel %vm290, %v302, %v304
      %v306 = vrot.slane %v181, 1
      %v307 = vrot.slane %v182, 1
      %v308 = vsel %vm290, %v306, %v307
      %v309 = vrot.slane %v183, 1
      %v310 = vsel %vm290, %v307, %v309
      %v311 = vrot.slane %v184, 1
      %v312 = vrot.slane %v185, 1
      %v313 = vsel %vm290, %v311, %v312
      %v314 = vrot.slane %v186, 1
      %v315 = vsel %vm290, %v312, %v314
      %v316 = vrot.slane %v187, 1
      %v317 = vrot.slane %v188, 1
      %v318 = vsel %vm290, %v316, %v317
      %v319 = vrot.slane %v189, 1
      %v320 = vsel %vm290, %v317, %v319
      %v321 = vrot.slane %v190, 1
      %v322 = vrot.slane %v191, 1
      %v323 = vsel %vm290, %v321, %v322
      %v324 = vrot.slane %v192, 1
      %v325 = vsel %vm290, %v322, %v324
      %v326 = vrot.slane %v193, 1
      %v327 = vrot.slane %v194, 1
      %v328 = vsel %vm290, %v326, %v327
      %v329 = vrot.slane %v195, 1
      %v330 = vsel %vm290, %v327, %v329
      %v331 = vrot.slane %v196, 1
      %v332 = vrot.slane %v197, 1
      %v333 = vsel %vm290, %v331, %v332
      %v334 = vrot.slane %v198, 1
      %v335 = vsel %vm290, %v332, %v334
      %v336 = vrot.slane %v199, 1
      %v337 = vrot.slane %v200, 1
      %v338 = vsel %vm290, %v336, %v337
      %v339 = vrot.slane %v201, 1
      %v340 = vsel %vm290, %v337, %v339
      %v341 = vrot.slane %v202, 1
      %v342 = vrot.slane %v203, 1
      %v343 = vsel %vm290, %v341, %v342
      %v344 = vrot.slane %v204, 1
      %v345 = vsel %vm290, %v342, %v344
      %v346 = vrot.slane %v205, 1
      %v347 = vrot.slane %v206, 1
      %v348 = vsel %vm290, %v346, %v347
      %v349 = vrot.slane %v207, 1
      %v350 = vsel %vm290, %v347, %v349
      %v351 = vrot.slane %v208, 1
      %v352 = vrot.slane %v209, 1
      %v353 = vsel %vm290, %v351, %v352
      %v354 = vrot.slane %v210, 1
      %v355 = vsel %vm290, %v352, %v354
      %v356 = vrot.slane %v211, 1
      %v357 = vrot.slane %v212, 1
      %v358 = vsel %vm290, %v356, %v357
      %v359 = vrot.slane %v213, 1
      %v360 = vsel %vm290, %v357, %v359
      %v361 = vrot.slane %v214, 1
      %v362 = vrot.slane %v215, 1
      %v363 = vsel %vm290, %v361, %v362
      %v364 = vrot.slane %v216, 1
      %v365 = vsel %vm290, %v362, %v364
      %v366 = vrot.slane %v217, 1
      %v367 = vrot.slane %v218, 1
      %v368 = vsel %vm290, %v366, %v367
      %v369 = vrot.slane %v219, 1
      %v370 = vsel %vm290, %v367, %v369
      %v403 = vpack.c.bf16 %v295, %v293
      %v404 = vpack.c.bf16 %v300, %v298
      %v405 = vpack.c.bf16 %v305, %v303
      %v406 = vpack.c.bf16 %v310, %v308
      %v407 = vpack.c.bf16 %v315, %v313
      %v408 = vpack.c.bf16 %v320, %v318
      %v409 = vpack.c.bf16 %v325, %v323
      %v410 = vpack.c.bf16 %v330, %v328
      %v411 = vpack.c.bf16 %v335, %v333
      %v412 = vpack.c.bf16 %v340, %v338
      %v413 = vpack.c.bf16 %v345, %v343
      %v414 = vpack.c.bf16 %v350, %v348
      %v415 = vpack.c.bf16 %v355, %v353
      %v416 = vpack.c.bf16 %v360, %v358
      %v417 = vpack.c.bf16 %v365, %v363
      %v418 = vpack.c.bf16 %v370, %v368
      %vm419 = vcmask 1045504
      %v420 = vrot.slane %v172, 2
      %v421 = vrot.slane %v173, 2
      %v422 = vsel %vm419, %v420, %v421
      %v423 = vrot.slane %v174, 2
      %v424 = vsel %vm419, %v421, %v423
      %v425 = vrot.slane %v175, 2
      %v426 = vrot.slane %v176, 2
      %v427 = vsel %vm419, %v425, %v426
      %v428 = vrot.slane %v177, 2
      %v429 = vsel %vm419, %v426, %v428
      %v430 = vrot.slane %v178, 2
      %v431 = vrot.slane %v179, 2
      %v432 = vsel %vm419, %v430, %v431
      %v433 = vrot.slane %v180, 2
      %v434 = vsel %vm419, %v431, %v433
      %v435 = vrot.slane %v181, 2
      %v436 = vrot.slane %v182, 2
      %v437 = vsel %vm419, %v435, %v436
      %v438 = vrot.slane %v183, 2
      %v439 = vsel %vm419, %v436, %v438
      %v440 = vrot.slane %v184, 2
      %v441 = vrot.slane %v185, 2
      %v442 = vsel %vm419, %v440, %v441
      %v443 = vrot.slane %v186, 2
      %v444 = vsel %vm419, %v441, %v443
      %v445 = vrot.slane %v187, 2
      %v446 = vrot.slane %v188, 2
      %v447 = vsel %vm419, %v445, %v446
      %v448 = vrot.slane %v189, 2
      %v449 = vsel %vm419, %v446, %v448
      %v450 = vrot.slane %v190, 2
      %v451 = vrot.slane %v191, 2
      %v452 = vsel %vm419, %v450, %v451
      %v453 = vrot.slane %v192, 2
      %v454 = vsel %vm419, %v451, %v453
      %v455 = vrot.slane %v193, 2
      %v456 = vrot.slane %v194, 2
      %v457 = vsel %vm419, %v455, %v456
      %v458 = vrot.slane %v195, 2
      %v459 = vsel %vm419, %v456, %v458
      %v460 = vrot.slane %v196, 2
      %v461 = vrot.slane %v197, 2
      %v462 = vsel %vm419, %v460, %v461
      %v463 = vrot.slane %v198, 2
      %v464 = vsel %vm419, %v461, %v463
      %v465 = vrot.slane %v199, 2
      %v466 = vrot.slane %v200, 2
      %v467 = vsel %vm419, %v465, %v466
      %v468 = vrot.slane %v201, 2
      %v469 = vsel %vm419, %v466, %v468
      %v470 = vrot.slane %v202, 2
      %v471 = vrot.slane %v203, 2
      %v472 = vsel %vm419, %v470, %v471
      %v473 = vrot.slane %v204, 2
      %v474 = vsel %vm419, %v471, %v473
      %v475 = vrot.slane %v205, 2
      %v476 = vrot.slane %v206, 2
      %v477 = vsel %vm419, %v475, %v476
      %v478 = vrot.slane %v207, 2
      %v479 = vsel %vm419, %v476, %v478
      %v480 = vrot.slane %v208, 2
      %v481 = vrot.slane %v209, 2
      %v482 = vsel %vm419, %v480, %v481
      %v483 = vrot.slane %v210, 2
      %v484 = vsel %vm419, %v481, %v483
      %v485 = vrot.slane %v211, 2
      %v486 = vrot.slane %v212, 2
      %v487 = vsel %vm419, %v485, %v486
      %v488 = vrot.slane %v213, 2
      %v489 = vsel %vm419, %v486, %v488
      %v490 = vrot.slane %v214, 2
      %v491 = vrot.slane %v215, 2
      %v492 = vsel %vm419, %v490, %v491
      %v493 = vrot.slane %v216, 2
      %v494 = vsel %vm419, %v491, %v493
      %v495 = vrot.slane %v217, 2
      %v496 = vrot.slane %v218, 2
      %v497 = vsel %vm419, %v495, %v496
      %v498 = vrot.slane %v219, 2
      %v499 = vsel %vm419, %v496, %v498
      %v532 = vpack.c.bf16 %v424, %v422
      %v533 = vpack.c.bf16 %v429, %v427
      %v534 = vpack.c.bf16 %v434, %v432
      %v535 = vpack.c.bf16 %v439, %v437
      %v536 = vpack.c.bf16 %v444, %v442
      %v537 = vpack.c.bf16 %v449, %v447
      %v538 = vpack.c.bf16 %v454, %v452
      %v539 = vpack.c.bf16 %v459, %v457
      %v540 = vpack.c.bf16 %v464, %v462
      %v541 = vpack.c.bf16 %v469, %v467
      %v542 = vpack.c.bf16 %v474, %v472
      %v543 = vpack.c.bf16 %v479, %v477
      %v544 = vpack.c.bf16 %v484, %v482
      %v545 = vpack.c.bf16 %v489, %v487
      %v546 = vpack.c.bf16 %v494, %v492
      %v547 = vpack.c.bf16 %v499, %v497
      %v548 = vpack.c.bf16 %v221, %v220
      %v552 = vrot.slane %v220, 1
      %v553 = vrot.slane %v221, 1
      %v554 = vsel %vm290, %v552, %v553
      %v555 = vrot.slane %v222, 1
      %v556 = vsel %vm290, %v553, %v555
      %v559 = vpack.c.bf16 %v556, %v554
      %v560 = vrot.slane %v220, 2
      %v561 = vrot.slane %v221, 2
      %v562 = vsel %vm419, %v560, %v561
      %v563 = vrot.slane %v222, 2
      %v564 = vsel %vm419, %v561, %v563
      %v567 = vpack.c.bf16 %v564, %v562
      %v568 = vpack.c.bf16 %v224, %v223
      %v572 = vrot.slane %v223, 1
      %v573 = vrot.slane %v224, 1
      %v574 = vsel %vm290, %v572, %v573
      %v575 = vrot.slane %v225, 1
      %v576 = vsel %vm290, %v573, %v575
      %v579 = vpack.c.bf16 %v576, %v574
      %v580 = vrot.slane %v223, 2
      %v581 = vrot.slane %v224, 2
      %v582 = vsel %vm419, %v580, %v581
      %v583 = vrot.slane %v225, 2
      %v584 = vsel %vm419, %v581, %v583
      %v587 = vpack.c.bf16 %v584, %v582
      %v588 = vld [vmem:[%s1] sm:$0xf]
      %v589 = vld [vmem:[%s1 + $0x4] sm:$0xf]
      %v590 = vld [vmem:[%s1 + $0x8] sm:$0xf]
      %v591 = vld [vmem:[%s1 + $0xc] sm:$0xf]
      %v592 = vld [vmem:[%s1 + $0x10] sm:$0xf]
      %v593 = vld [vmem:[%s1 + $0x14] sm:$0xf]
      %v594 = vld [vmem:[%s1 + $0x18] sm:$0xf]
      %v595 = vld [vmem:[%s1 + $0x1c] sm:$0xf]
      %v596 = vld [vmem:[%s1 + $0x20] sm:$0xf]
      %v597 = vld [vmem:[%s1 + $0x24] sm:$0xf]
      %v598 = vld [vmem:[%s1 + $0x28] sm:$0xf]
      %v599 = vld [vmem:[%s1 + $0x2c] sm:$0xf]
      %v600 = vld [vmem:[%s1 + $0x30] sm:$0xf]
      %v601 = vld [vmem:[%s1 + $0x34] sm:$0xf]
      %v602 = vld [vmem:[%s1 + $0x38] sm:$0xf]
      %v603 = vld [vmem:[%s1 + $0x3c] sm:$0xf]
      %v604 = vld [vmem:[%s1 + $0x40] sm:$0xf]
      %v605 = vld [vmem:[%s1 + $0x44] sm:$0xf]
      %v606 = vld [vmem:[%s1 + $0x48] sm:$0xf]
      %v607 = vld [vmem:[%s1 + $0x4c] sm:$0xf]
      %v608 = vld [vmem:[%s1 + $0x50] sm:$0xf]
      %v609 = vld [vmem:[%s1 + $0x54] sm:$0xf]
      %v610 = vld [vmem:[%s1 + $0x58] sm:$0xf]
      %v611 = vld [vmem:[%s1 + $0x5c] sm:$0xf]
      %v612 = vld [vmem:[%s1 + $0x60] sm:$0xf]
      %v613 = vld [vmem:[%s1 + $0x64] sm:$0xf]
      %v614 = vld [vmem:[%s1 + $0x68] sm:$0xf]
      %v615 = vld [vmem:[%s1 + $0x6c] sm:$0xf]
      %v616 = vld [vmem:[%s1 + $0x70] sm:$0xf]
      %v617 = vld [vmem:[%s1 + $0x74] sm:$0xf]
      %v618 = vld [vmem:[%s1 + $0x78] sm:$0xf]
      %v619 = vld [vmem:[%s1 + $0x7c] sm:$0xf]
      %v620 = vld [vmem:[%s1 + $0x80] sm:$0xf]
      %v621 = vld [vmem:[%s1 + $0x84] sm:$0xf]
      %v622 = vld [vmem:[%s1 + $0x88] sm:$0xf]
      %v623 = vld [vmem:[%s1 + $0x8c] sm:$0xf]
      %v624 = vld [vmem:[%s1 + $0x90] sm:$0xf]
      %v625 = vld [vmem:[%s1 + $0x94] sm:$0xf]
      %v626 = vld [vmem:[%s1 + $0x98] sm:$0xf]
      %v627 = vld [vmem:[%s1 + $0x9c] sm:$0xf]
      %v628 = vld [vmem:[%s1 + $0xa0] sm:$0xf]
      %v629 = vld [vmem:[%s1 + $0xa4] sm:$0xf]
      %v630 = vld [vmem:[%s1 + $0xa8] sm:$0xf]
      %v631 = vld [vmem:[%s1 + $0xac] sm:$0xf]
      %v632 = vld [vmem:[%s1 + $0xb0] sm:$0xf]
      %v633 = vld [vmem:[%s1 + $0xb4] sm:$0xf]
      %v634 = vld [vmem:[%s1 + $0xb8] sm:$0xf]
      %v635 = vld [vmem:[%s1 + $0xbc] sm:$0xf]
      %v636 = vld [vmem:[%s1 + $0xc0] sm:$0xf]
      %v637 = vld [vmem:[%s1 + $0xc4] sm:$0xf]
      %v638 = vld [vmem:[%s1 + $0xc8] sm:$0xf]
      %v639 = vld [vmem:[%s1 + $0xcc] sm:$0xf]
      %v640 = vld [vmem:[%s1 + $0xd0] sm:$0xf]
      %v641 = vld [vmem:[%s1 + $0xd4] sm:$0xf]
      %v642 = vld [vmem:[%s1 + $0xd8] sm:$0xf]
      %v643 = vld [vmem:[%s1 + $0xdc] sm:$0xf]
      %v644 = vld [vmem:[%s1 + $0xe0] sm:$0xf]
      %v645 = vld [vmem:[%s1 + $0xe4] sm:$0xf]
      %v646 = vld [vmem:[%s1 + $0xe8] sm:$0xf]
      %v647 = vld [vmem:[%s1 + $0xec] sm:$0xf]
      %v648 = vld [vmem:[%s1 + $0xf0] sm:$0xf]
      %v649 = vld [vmem:[%s1 + $0xf4] sm:$0xf]
      %v650 = vld [vmem:[%s1 + $0xf8] sm:$0xf]
      %v651 = vld [vmem:[%s1 + $0xfc] sm:$0xf]
      %v652 = vld [vmem:[%s1 + $0x100] sm:$0xf]
      %v653 = vld [vmem:[%s1 + $0x104] sm:$0xf]
      %v654 = vld [vmem:[%s1 + $0x108] sm:$0xf]
      %v655 = vld [vmem:[%s1 + $0x10c] sm:$0xf]
      %v656 = vld [vmem:[%s1 + $0x110] sm:$0xf]
      %v657 = vld [vmem:[%s1 + $0x114] sm:$0xf]
      %v658 = vld [vmem:[%s1 + $0x118] sm:$0xf]
      %v659 = vld [vmem:[%s1 + $0x11c] sm:$0xf]
      %v660 = vld [vmem:[%s1 + $0x120] sm:$0xf]
      %v661 = vld [vmem:[%s1 + $0x124] sm:$0xf]
      %v662 = vld [vmem:[%s1 + $0x128] sm:$0xf]
      %v663 = vld [vmem:[%s1 + $0x12c] sm:$0xf]
      %v664 = vld [vmem:[%s1 + $0x130] sm:$0xf]
      %v665 = vld [vmem:[%s1 + $0x134] sm:$0xf]
      %v666 = vld [vmem:[%s1 + $0x138] sm:$0xf]
      %v667 = vld [vmem:[%s1 + $0x13c] sm:$0xf]
      %v668 = vld [vmem:[%s1 + $0x140] sm:$0xf]
      %v669 = vld [vmem:[%s1 + $0x144] sm:$0xf]
      %v670 = vld [vmem:[%s1 + $0x148] sm:$0xf]
      %v671 = vld [vmem:[%s1 + $0x14c] sm:$0xf]
      %v672 = vld [vmem:[%s1 + $0x150] sm:$0xf]
      %v673 = vld [vmem:[%s1 + $0x154] sm:$0xf]
      %v674 = vld [vmem:[%s1 + $0x158] sm:$0xf]
      %v675 = vld [vmem:[%s1 + $0x15c] sm:$0xf]
      %v676 = vld [vmem:[%s1 + $0x160] sm:$0xf]
      %v677 = vld [vmem:[%s1 + $0x164] sm:$0xf]
      %v678 = vld [vmem:[%s1 + $0x168] sm:$0xf]
      %v679 = vld [vmem:[%s1 + $0x16c] sm:$0xf]
      %v680 = vld [vmem:[%s1 + $0x170] sm:$0xf]
      %v681 = vld [vmem:[%s1 + $0x174] sm:$0xf]
      %v682 = vld [vmem:[%s1 + $0x178] sm:$0xf]
      %v683 = vld [vmem:[%s1 + $0x17c] sm:$0xf]
      %v684 = vld [vmem:[%s1 + $0x180] sm:$0xf]
      %v685 = vld [vmem:[%s1 + $0x184] sm:$0xf]
      %v686 = vld [vmem:[%s1 + $0x188] sm:$0xf]
      %v687 = vld [vmem:[%s1 + $0x18c] sm:$0xf]
      %v688 = vld [vmem:[%s1 + $0x190] sm:$0xf]
      %v689 = vld [vmem:[%s1 + $0x194] sm:$0xf]
      %v690 = vld [vmem:[%s1 + $0x198] sm:$0xf]
      %v691 = vld [vmem:[%s1 + $0x19c] sm:$0xf]
      %v692 = vld [vmem:[%s1 + $0x1a0] sm:$0xf]
      %v693 = vld [vmem:[%s1 + $0x1a4] sm:$0xf]
      %v694 = vld [vmem:[%s1 + $0x1a8] sm:$0xf]
      %v695 = vld [vmem:[%s1 + $0x1ac] sm:$0xf]
      %v696 = vld [vmem:[%s1 + $0x1b0] sm:$0xf]
      %v697 = vld [vmem:[%s1 + $0x1b4] sm:$0xf]
      %v698 = vld [vmem:[%s1 + $0x1b8] sm:$0xf]
      %v699 = vld [vmem:[%s1 + $0x1bc] sm:$0xf]
      %v700 = vld [vmem:[%s1 + $0x1c0] sm:$0xf]
      %v701 = vld [vmem:[%s1 + $0x1c4] sm:$0xf]
      %v702 = vld [vmem:[%s1 + $0x1c8] sm:$0xf]
      %v703 = vld [vmem:[%s1 + $0x1cc] sm:$0xf]
      %v704 = vld [vmem:[%s1 + $0x1d0] sm:$0xf]
      %v705 = vld [vmem:[%s1 + $0x1d4] sm:$0xf]
      %v706 = vld [vmem:[%s1 + $0x1d8] sm:$0xf]
      %v707 = vld [vmem:[%s1 + $0x1dc] sm:$0xf]
      %v708 = vld [vmem:[%s1 + $0x1e0] sm:$0xf]
      %v709 = vld [vmem:[%s1 + $0x1e4] sm:$0xf]
      %v710 = vld [vmem:[%s1 + $0x1e8] sm:$0xf]
      %v711 = vld [vmem:[%s1 + $0x1ec] sm:$0xf]
      %v712 = vld [vmem:[%s1 + $0x1f0] sm:$0xf]
      %v713 = vld [vmem:[%s1 + $0x1f4] sm:$0xf]
      %v714 = vld [vmem:[%s1 + $0x1f8] sm:$0xf]
      %v715 = vld [vmem:[%s1 + $0x1fc] sm:$0xf]
      %v716 = vld [vmem:[%s1 + $0x200] sm:$0xf]
      %v717 = vld [vmem:[%s1 + $0x204] sm:$0xf]
      %v718 = vld [vmem:[%s1 + $0x208] sm:$0xf]
      %v719 = vld [vmem:[%s1 + $0x20c] sm:$0xf]
      %v720 = vld [vmem:[%s1 + $0x210] sm:$0xf]
      %v721 = vld [vmem:[%s1 + $0x214] sm:$0xf]
      %v722 = vld [vmem:[%s1 + $0x218] sm:$0xf]
      %v723 = vld [vmem:[%s1 + $0x21c] sm:$0xf]
      %v724 = vld [vmem:[%s1 + $0x220] sm:$0xf]
      %v725 = vld [vmem:[%s1 + $0x224] sm:$0xf]
      %v726 = vld [vmem:[%s1 + $0x228] sm:$0xf]
      %v727 = vld [vmem:[%s1 + $0x22c] sm:$0xf]
      %v728 = vld [vmem:[%s1 + $0x230] sm:$0xf]
      %v729 = vld [vmem:[%s1 + $0x234] sm:$0xf]
      %v730 = vld [vmem:[%s1 + $0x238] sm:$0xf]
      %v731 = vld [vmem:[%s1 + $0x23c] sm:$0xf]
      %v876 = vunpack.c.l.b16 %v588
      %v877 = vunpack.c.l.b16 %v589
      %v878 = vunpack.c.l.b16 %v590
      %v879 = vunpack.c.l.b16 %v591
      %v880 = vunpack.c.l.b16 %v592
      %v881 = vunpack.c.l.b16 %v593
      %v882 = vunpack.c.l.b16 %v594
      %v883 = vunpack.c.l.b16 %v595
      %v884 = vunpack.c.l.b16 %v596
      %v885 = vunpack.c.l.b16 %v597
      %v886 = vunpack.c.l.b16 %v598
      %v887 = vunpack.c.l.b16 %v599
      %v888 = vunpack.c.l.b16 %v600
      %v889 = vunpack.c.l.b16 %v601
      %v890 = vunpack.c.l.b16 %v602
      %v891 = vunpack.c.l.b16 %v603
      %v892 = vunpack.c.l.b16 %v604
      %v893 = vunpack.c.l.b16 %v605
      %v894 = vunpack.c.l.b16 %v606
      %v895 = vunpack.c.l.b16 %v607
      %v896 = vunpack.c.l.b16 %v608
      %v897 = vunpack.c.l.b16 %v609
      %v898 = vunpack.c.l.b16 %v610
      %v899 = vunpack.c.l.b16 %v611
      %v900 = vunpack.c.l.b16 %v612
      %v901 = vunpack.c.l.b16 %v613
      %v902 = vunpack.c.l.b16 %v614
      %v903 = vunpack.c.l.b16 %v615
      %v904 = vunpack.c.l.b16 %v616
      %v905 = vunpack.c.l.b16 %v617
      %v906 = vunpack.c.l.b16 %v618
      %v907 = vunpack.c.l.b16 %v619
      %v908 = vunpack.c.l.b16 %v620
      %v909 = vunpack.c.l.b16 %v621
      %v910 = vunpack.c.l.b16 %v622
      %v911 = vunpack.c.l.b16 %v623
      %v912 = vunpack.c.l.b16 %v624
      %v913 = vunpack.c.l.b16 %v625
      %v914 = vunpack.c.l.b16 %v626
      %v915 = vunpack.c.l.b16 %v627
      %v916 = vunpack.c.l.b16 %v628
      %v917 = vunpack.c.l.b16 %v629
      %v918 = vunpack.c.l.b16 %v630
      %v919 = vunpack.c.l.b16 %v631
      %v920 = vunpack.c.l.b16 %v632
      %v921 = vunpack.c.l.b16 %v633
      %v922 = vunpack.c.l.b16 %v634
      %v923 = vunpack.c.l.b16 %v635
      %v924 = vunpack.c.l.b16 %v636
      %v925 = vunpack.c.l.b16 %v637
      %v926 = vunpack.c.l.b16 %v638
      %v927 = vunpack.c.l.b16 %v639
      %v928 = vunpack.c.l.b16 %v640
      %v929 = vunpack.c.l.b16 %v641
      %v930 = vunpack.c.l.b16 %v642
      %v931 = vunpack.c.l.b16 %v643
      %v932 = vunpack.c.l.b16 %v644
      %v933 = vunpack.c.l.b16 %v645
      %v934 = vunpack.c.l.b16 %v646
      %v935 = vunpack.c.l.b16 %v647
      %v936 = vunpack.c.l.b16 %v648
      %v937 = vunpack.c.l.b16 %v649
      %v938 = vunpack.c.l.b16 %v650
      %v939 = vunpack.c.l.b16 %v651
      %v940 = vunpack.c.l.b16 %v652
      %v941 = vunpack.c.l.b16 %v653
      %v942 = vunpack.c.l.b16 %v654
      %v943 = vunpack.c.l.b16 %v655
      %v944 = vunpack.c.l.b16 %v656
      %v945 = vunpack.c.l.b16 %v657
      %v946 = vunpack.c.l.b16 %v658
      %v947 = vunpack.c.l.b16 %v659
      %v948 = vunpack.c.l.b16 %v660
      %v949 = vunpack.c.l.b16 %v661
      %v950 = vunpack.c.l.b16 %v662
      %v951 = vunpack.c.l.b16 %v663
      %v952 = vunpack.c.l.b16 %v664
      %v953 = vunpack.c.l.b16 %v665
      %v954 = vunpack.c.l.b16 %v666
      %v955 = vunpack.c.l.b16 %v667
      %v956 = vunpack.c.l.b16 %v668
      %v957 = vunpack.c.l.b16 %v669
      %v958 = vunpack.c.l.b16 %v670
      %v959 = vunpack.c.l.b16 %v671
      %v960 = vunpack.c.l.b16 %v672
      %v961 = vunpack.c.l.b16 %v673
      %v962 = vunpack.c.l.b16 %v674
      %v963 = vunpack.c.l.b16 %v675
      %v964 = vunpack.c.l.b16 %v676
      %v965 = vunpack.c.l.b16 %v677
      %v966 = vunpack.c.l.b16 %v678
      %v967 = vunpack.c.l.b16 %v679
      %v968 = vunpack.c.l.b16 %v680
      %v969 = vunpack.c.l.b16 %v681
      %v970 = vunpack.c.l.b16 %v682
      %v971 = vunpack.c.l.b16 %v683
      %v972 = vunpack.c.l.b16 %v684
      %v973 = vunpack.c.l.b16 %v685
      %v974 = vunpack.c.l.b16 %v686
      %v975 = vunpack.c.l.b16 %v687
      %v976 = vunpack.c.l.b16 %v688
      %v977 = vunpack.c.l.b16 %v689
      %v978 = vunpack.c.l.b16 %v690
      %v979 = vunpack.c.l.b16 %v691
      %v980 = vunpack.c.l.b16 %v692
      %v981 = vunpack.c.l.b16 %v693
      %v982 = vunpack.c.l.b16 %v694
      %v983 = vunpack.c.l.b16 %v695
      %v984 = vunpack.c.l.b16 %v696
      %v985 = vunpack.c.l.b16 %v697
      %v986 = vunpack.c.l.b16 %v698
      %v987 = vunpack.c.l.b16 %v699
      %v988 = vunpack.c.l.b16 %v700
      %v989 = vunpack.c.l.b16 %v701
      %v990 = vunpack.c.l.b16 %v702
      %v991 = vunpack.c.l.b16 %v703
      %v992 = vunpack.c.l.b16 %v704
      %v993 = vunpack.c.l.b16 %v705
      %v994 = vunpack.c.l.b16 %v706
      %v995 = vunpack.c.l.b16 %v707
      %v996 = vunpack.c.l.b16 %v708
      %v997 = vunpack.c.l.b16 %v709
      %v998 = vunpack.c.l.b16 %v710
      %v999 = vunpack.c.l.b16 %v711
      %v1000 = vunpack.c.l.b16 %v712
      %v1001 = vunpack.c.l.b16 %v713
      %v1002 = vunpack.c.l.b16 %v714
      %v1003 = vunpack.c.l.b16 %v715
      %v1004 = vunpack.c.l.b16 %v716
      %v1005 = vunpack.c.l.b16 %v717
      %v1006 = vunpack.c.l.b16 %v718
      %v1007 = vunpack.c.l.b16 %v719
      %v1008 = vunpack.c.l.b16 %v720
      %v1009 = vunpack.c.l.b16 %v721
      %v1010 = vunpack.c.l.b16 %v722
      %v1011 = vunpack.c.l.b16 %v723
      %v1012 = vunpack.c.l.b16 %v724
      %v1013 = vunpack.c.l.b16 %v725
      %v1014 = vunpack.c.l.b16 %v726
      %v1015 = vunpack.c.l.b16 %v727
      %v1016 = vunpack.c.l.b16 %v728
      %v1017 = vunpack.c.l.b16 %v729
      %v1018 = vunpack.c.l.b16 %v730
      %v1019 = vunpack.c.l.b16 %v731
      %v1020 = vpack.c.b16 %v877, %v876
      %v1021 = vpack.c.b16 %v879, %v878
      %v1022 = vpack.c.b16 %v881, %v880
      %v1023 = vpack.c.b16 %v883, %v882
      %v1024 = vpack.c.b16 %v885, %v884
      %v1025 = vpack.c.b16 %v887, %v886
      %v1026 = vpack.c.b16 %v889, %v888
      %v1027 = vpack.c.b16 %v891, %v890
      %v1028 = vpack.c.b16 %v893, %v892
      %v1029 = vpack.c.b16 %v895, %v894
      %v1030 = vpack.c.b16 %v897, %v896
      %v1031 = vpack.c.b16 %v899, %v898
      %v1032 = vpack.c.b16 %v901, %v900
      %v1033 = vpack.c.b16 %v903, %v902
      %v1034 = vpack.c.b16 %v905, %v904
      %v1035 = vpack.c.b16 %v907, %v906
      %v1036 = vpack.c.b16 %v909, %v908
      %v1037 = vpack.c.b16 %v911, %v910
      %v1038 = vpack.c.b16 %v913, %v912
      %v1039 = vpack.c.b16 %v915, %v914
      %v1040 = vpack.c.b16 %v917, %v916
      %v1041 = vpack.c.b16 %v919, %v918
      %v1042 = vpack.c.b16 %v921, %v920
      %v1043 = vpack.c.b16 %v923, %v922
      %v1044 = vpack.c.b16 %v925, %v924
      %v1045 = vpack.c.b16 %v927, %v926
      %v1046 = vpack.c.b16 %v929, %v928
      %v1047 = vpack.c.b16 %v931, %v930
      %v1048 = vpack.c.b16 %v933, %v932
      %v1049 = vpack.c.b16 %v935, %v934
      %v1050 = vpack.c.b16 %v937, %v936
      %v1051 = vpack.c.b16 %v939, %v938
      %v1052 = vpack.c.b16 %v941, %v940
      %v1053 = vpack.c.b16 %v943, %v942
      %v1054 = vpack.c.b16 %v945, %v944
      %v1055 = vpack.c.b16 %v947, %v946
      %v1056 = vpack.c.b16 %v949, %v948
      %v1057 = vpack.c.b16 %v951, %v950
      %v1058 = vpack.c.b16 %v953, %v952
      %v1059 = vpack.c.b16 %v955, %v954
      %v1060 = vpack.c.b16 %v957, %v956
      %v1061 = vpack.c.b16 %v959, %v958
      %v1062 = vpack.c.b16 %v961, %v960
      %v1063 = vpack.c.b16 %v963, %v962
      %v1064 = vpack.c.b16 %v965, %v964
      %v1065 = vpack.c.b16 %v967, %v966
      %v1066 = vpack.c.b16 %v969, %v968
      %v1067 = vpack.c.b16 %v971, %v970
      %v1068 = vpack.c.b16 %v973, %v972
      %v1069 = vpack.c.b16 %v975, %v974
      %v1070 = vpack.c.b16 %v977, %v976
      %v1071 = vpack.c.b16 %v979, %v978
      %v1072 = vpack.c.b16 %v981, %v980
      %v1073 = vpack.c.b16 %v983, %v982
      %v1074 = vpack.c.b16 %v985, %v984
      %v1075 = vpack.c.b16 %v987, %v986
      %v1076 = vpack.c.b16 %v989, %v988
      %v1077 = vpack.c.b16 %v991, %v990
      %v1078 = vpack.c.b16 %v993, %v992
      %v1079 = vpack.c.b16 %v995, %v994
      %v1080 = vpack.c.b16 %v997, %v996
      %v1081 = vpack.c.b16 %v999, %v998
      %v1082 = vpack.c.b16 %v1001, %v1000
      %v1083 = vpack.c.b16 %v1003, %v1002
      %v1084 = vpack.c.b16 %v1005, %v1004
      %v1085 = vpack.c.b16 %v1007, %v1006
      %v1086 = vpack.c.b16 %v1009, %v1008
      %v1087 = vpack.c.b16 %v1011, %v1010
      %v1088 = vpack.c.b16 %v1013, %v1012
      %v1089 = vpack.c.b16 %v1015, %v1014
      %v1090 = vpack.c.b16 %v1017, %v1016
      %v1091 = vpack.c.b16 %v1019, %v1018
      %1164 = vmatprep.subr.bf16.mxu0 0
      %1165 = vmatpush1.bf16.msra.mxu0 %v1020
      %1166 = vmatprep.subr.bf16.mxu0 0
      %1167 = vmatpush1.bf16.msra.mxu0 %v1021
      %1168 = vmatprep.subr.bf16.mxu0 0
      %1169 = vmatpush1.bf16.msra.mxu0 %v1022
      %1170 = vmatprep.subr.bf16.mxu0 0
      %1171 = vmatpush1.bf16.msra.mxu0 %v1023
      %1172 = vmatprep.subr.bf16.mxu0 0
      %1173 = vmatpush1.bf16.msra.mxu0 %v1024
      %1174 = vmatprep.subr.bf16.mxu0 0
      %1175 = vmatpush1.bf16.msra.mxu0 %v1025
      %1176 = vmatprep.subr.bf16.mxu0 0
      %1177 = vmatpush1.bf16.msra.mxu0 %v1026
      %1178 = vmatprep.subr.bf16.mxu0 0
      %1179 = vmatpush1.bf16.msra.mxu0 %v1027
      %1180 = vmatprep.subr.bf16.mxu0 0
      %1181 = vmatpush1.bf16.msra.mxu0 %v1028
      %1182 = vmatprep.subr.bf16.mxu0 0
      %1183 = vmatpush1.bf16.msra.mxu0 %v1029
      %1184 = vmatprep.subr.bf16.mxu0 0
      %1185 = vmatpush1.bf16.msra.mxu0 %v1030
      %1186 = vmatprep.subr.bf16.mxu0 0
      %1187 = vmatpush1.bf16.msra.mxu0 %v1031
      %1188 = vmatprep.subr.bf16.mxu0 0
      %1189 = vmatpush1.bf16.msra.mxu0 %v1032
      %1190 = vmatprep.subr.bf16.mxu0 0
      %1191 = vmatpush1.bf16.msra.mxu0 %v1033
      %1192 = vmatprep.subr.bf16.mxu0 0
      %1193 = vmatpush1.bf16.msra.mxu0 %v1034
      %1194 = vmatprep.subr.bf16.mxu0 0
      %1195 = vmatpush1.bf16.msra.mxu0 %v1035
      %1196 = vmatprep.mubr.bf16.mxu0 %v403
      %1197 = vmatmul.mubr.bf16.gmra.mrb[0].mxu0 %v226
      %v1198 = vpop.f32.mrb[0].mxu0
      %v1199 = vadd.f32 0.0, %v1198
      %v1200 = vpop.f32.mrb[0].mxu0
      %v1201 = vpop.f32.mrb[0].mxu0
      %v1202 = vadd.f32 0.0, %v1201
      %v1203 = vpop.f32.mrb[0].mxu0
      %1204 = vmatprep.mubr.bf16.mxu0 %v404
      %1205 = vmatmul.mubr.bf16.gmra.mrb[0].mxu0 %v227
      %v1206 = vpop.f32.mrb[0].mxu0
      %v1207 = vadd.f32 0.0, %v1206
      %v1208 = vpop.f32.mrb[0].mxu0
      %v1209 = vpop.f32.mrb[0].mxu0
      %v1210 = vadd.f32 0.0, %v1209
      %v1211 = vpop.f32.mrb[0].mxu0
      %1212 = vmatprep.mubr.bf16.mxu0 %v405
      %1213 = vmatmul.mubr.bf16.gmra.mrb[0].mxu0 %v228
      %v1214 = vpop.f32.mrb[0].mxu0
      %v1215 = vadd.f32 0.0, %v1214
      %v1216 = vpop.f32.mrb[0].mxu0
      %v1217 = vpop.f32.mrb[0].mxu0
      %v1218 = vadd.f32 0.0, %v1217
      %v1219 = vpop.f32.mrb[0].mxu0
      %1220 = vmatprep.mubr.bf16.mxu0 %v406
      %1221 = vmatmul.mubr.bf16.gmra.mrb[0].mxu0 %v229
      %v1222 = vpop.f32.mrb[0].mxu0
      %v1223 = vadd.f32 0.0, %v1222
      %v1224 = vpop.f32.mrb[0].mxu0
      %v1225 = vpop.f32.mrb[0].mxu0
      %v1226 = vadd.f32 0.0, %v1225
      %v1227 = vpop.f32.mrb[0].mxu0
      %1228 = vmatprep.mubr.bf16.mxu0 %v407
      %1229 = vmatmul.mubr.bf16.gmra.mrb[0].mxu0 %v230
      %v1230 = vpop.f32.mrb[0].mxu0
      %v1231 = vadd.f32 0.0, %v1230
      %v1232 = vpop.f32.mrb[0].mxu0
      %v1233 = vpop.f32.mrb[0].mxu0
      %v1234 = vadd.f32 0.0, %v1233
      %v1235 = vpop.f32.mrb[0].mxu0
      %1236 = vmatprep.mubr.bf16.mxu0 %v408
      %1237 = vmatmul.mubr.bf16.gmra.mrb[0].mxu0 %v231
      %v1238 = vpop.f32.mrb[0].mxu0
      %v1239 = vadd.f32 0.0, %v1238
      %v1240 = vpop.f32.mrb[0].mxu0
      %v1241 = vpop.f32.mrb[0].mxu0
      %v1242 = vadd.f32 0.0, %v1241
      %v1243 = vpop.f32.mrb[0].mxu0
      %1244 = vmatprep.mubr.bf16.mxu0 %v409
      %1245 = vmatmul.mubr.bf16.gmra.mrb[0].mxu0 %v232
      %v1246 = vpop.f32.mrb[0].mxu0
      %v1247 = vadd.f32 0.0, %v1246
      %v1248 = vpop.f32.mrb[0].mxu0
      %v1249 = vpop.f32.mrb[0].mxu0
      %v1250 = vadd.f32 0.0, %v1249
      %v1251 = vpop.f32.mrb[0].mxu0
      %1252 = vmatprep.mubr.bf16.mxu0 %v410
      %1253 = vmatmul.mubr.bf16.gmra.mrb[0].mxu0 %v233
      %v1254 = vpop.f32.mrb[0].mxu0
      %v1255 = vadd.f32 0.0, %v1254
      %v1256 = vpop.f32.mrb[0].mxu0
      %v1257 = vpop.f32.mrb[0].mxu0
      %v1258 = vadd.f32 0.0, %v1257
      %v1259 = vpop.f32.mrb[0].mxu0
      %1260 = vmatprep.mubr.bf16.mxu0 %v411
      %1261 = vmatmul.mubr.bf16.gmra.mrb[0].mxu0 %v234
      %v1262 = vpop.f32.mrb[0].mxu0
      %v1263 = vadd.f32 0.0, %v1262
      %v1264 = vpop.f32.mrb[0].mxu0
      %v1265 = vpop.f32.mrb[0].mxu0
      %v1266 = vadd.f32 0.0, %v1265
      %v1267 = vpop.f32.mrb[0].mxu0
      %1268 = vmatprep.mubr.bf16.mxu0 %v412
      %1269 = vmatmul.mubr.bf16.gmra.mrb[0].mxu0 %v235
      %v1270 = vpop.f32.mrb[0].mxu0
      %v1271 = vadd.f32 0.0, %v1270
      %v1272 = vpop.f32.mrb[0].mxu0
      %v1273 = vpop.f32.mrb[0].mxu0
      %v1274 = vadd.f32 0.0, %v1273
      %v1275 = vpop.f32.mrb[0].mxu0
      %1276 = vmatprep.mubr.bf16.mxu0 %v413
      %1277 = vmatmul.mubr.bf16.gmra.mrb[0].mxu0 %v236
      %v1278 = vpop.f32.mrb[0].mxu0
      %v1279 = vadd.f32 0.0, %v1278
      %v1280 = vpop.f32.mrb[0].mxu0
      %v1281 = vpop.f32.mrb[0].mxu0
      %v1282 = vadd.f32 0.0, %v1281
      %v1283 = vpop.f32.mrb[0].mxu0
      %1284 = vmatprep.mubr.bf16.mxu0 %v414
      %1285 = vmatmul.mubr.bf16.gmra.mrb[0].mxu0 %v237
      %v1286 = vpop.f32.mrb[0].mxu0
      %v1287 = vadd.f32 0.0, %v1286
      %v1288 = vpop.f32.mrb[0].mxu0
      %v1289 = vpop.f32.mrb[0].mxu0
      %v1290 = vadd.f32 0.0, %v1289
      %v1291 = vpop.f32.mrb[0].mxu0
      %1292 = vmatprep.mubr.bf16.mxu0 %v415
      %1293 = vmatmul.mubr.bf16.gmra.mrb[0].mxu0 %v238
      %v1294 = vpop.f32.mrb[0].mxu0
      %v1295 = vadd.f32 0.0, %v1294
      %v1296 = vpop.f32.mrb[0].mxu0
      %v1297 = vpop.f32.mrb[0].mxu0
      %v1298 = vadd.f32 0.0, %v1297
      %v1299 = vpop.f32.mrb[0].mxu0
      %1300 = vmatprep.mubr.bf16.mxu0 %v416
      %1301 = vmatmul.mubr.bf16.gmra.mrb[0].mxu0 %v239
      %v1302 = vpop.f32.mrb[0].mxu0
      %v1303 = vadd.f32 0.0, %v1302
      %v1304 = vpop.f32.mrb[0].mxu0
      %v1305 = vpop.f32.mrb[0].mxu0
      %v1306 = vadd.f32 0.0, %v1305
      %v1307 = vpop.f32.mrb[0].mxu0
      %1308 = vmatprep.mubr.bf16.mxu0 %v417
      %1309 = vmatmul.mubr.bf16.gmra.mrb[0].mxu0 %v240
      %v1310 = vpop.f32.mrb[0].mxu0
      %v1311 = vadd.f32 0.0, %v1310
      %v1312 = vpop.f32.mrb[0].mxu0
      %v1313 = vpop.f32.mrb[0].mxu0
      %v1314 = vadd.f32 0.0, %v1313
      %v1315 = vpop.f32.mrb[0].mxu0
      %1316 = vmatprep.mubr.bf16.mxu0 %v418
      %1317 = vmatmul.mubr.bf16.gmra.mrb[0].mxu0 %v241
      %v1318 = vpop.f32.mrb[0].mxu0
      %v1319 = vadd.f32 0.0, %v1318
      %v1320 = vpop.f32.mrb[0].mxu0
      %v1321 = vpop.f32.mrb[0].mxu0
      %v1322 = vadd.f32 0.0, %v1321
      %v1323 = vpop.f32.mrb[0].mxu0
      %1324 = vdwg.mxu0
      %1325 = vmatprep.subr.bf16.mxu0 0
      %1326 = vmatpush1.bf16.msra.mxu0 %v1036
      %1327 = vmatprep.subr.bf16.mxu0 0
      %1328 = vmatpush1.bf16.msra.mxu0 %v1037
      %1329 = vmatprep.subr.bf16.mxu0 0
      %1330 = vmatpush1.bf16.msra.mxu0 %v1038
      %1331 = vmatprep.subr.bf16.mxu0 0
      %1332 = vmatpush1.bf16.msra.mxu0 %v1039
      %1333 = vmatprep.subr.bf16.mxu0 0
      %1334 = vmatpush1.bf16.msra.mxu0 %v1040
      %1335 = vmatprep.subr.bf16.mxu0 0
      %1336 = vmatpush1.bf16.msra.mxu0 %v1041
      %1337 = vmatprep.subr.bf16.mxu0 0
      %1338 = vmatpush1.bf16.msra.mxu0 %v1042
      %1339 = vmatprep.subr.bf16.mxu0 0
      %1340 = vmatpush1.bf16.msra.mxu0 %v1043
      %1341 = vmatprep.subr.bf16.mxu0 0
      %1342 = vmatpush1.bf16.msra.mxu0 %v1044
      %1343 = vmatprep.subr.bf16.mxu0 0
      %1344 = vmatpush1.bf16.msra.mxu0 %v1045
      %1345 = vmatprep.subr.bf16.mxu0 0
      %1346 = vmatpush1.bf16.msra.mxu0 %v1046
      %1347 = vmatprep.subr.bf16.mxu0 0
      %1348 = vmatpush1.bf16.msra.mxu0 %v1047
      %1349 = vmatprep.subr.bf16.mxu0 0
      %1350 = vmatpush1.bf16.msra.mxu0 %v1048
      %1351 = vmatprep.subr.bf16.mxu0 0
      %1352 = vmatpush1.bf16.msra.mxu0 %v1049
      %1353 = vmatprep.subr.bf16.mxu0 0
      %1354 = vmatpush1.bf16.msra.mxu0 %v1050
      %1355 = vmatprep.subr.bf16.mxu0 0
      %1356 = vmatpush1.bf16.msra.mxu0 %v1051
      %1357 = vmatprep.mubr.bf16.mxu0 %v227
      %1358 = vmatmul.mubr.bf16.gmra.mrb[0].mxu0 %v532
      %v1359 = vpop.f32.mrb[0].mxu0
      %v1360 = vadd.f32 %v1199, %v1359
      %v1361 = vpop.f32.mrb[0].mxu0
      %v1362 = vpop.f32.mrb[0].mxu0
      %v1363 = vadd.f32 %v1202, %v1362
      %v1364 = vpop.f32.mrb[0].mxu0
      %1365 = vmatprep.mubr.bf16.mxu0 %v228
      %1366 = vmatmul.mubr.bf16.gmra.mrb[0].mxu0 %v533
      %v1367 = vpop.f32.mrb[0].mxu0
      %v1368 = vadd.f32 %v1207, %v1367
      %v1369 = vpop.f32.mrb[0].mxu0
      %v1370 = vpop.f32.mrb[0].mxu0
      %v1371 = vadd.f32 %v1210, %v1370
      %v1372 = vpop.f32.mrb[0].mxu0
      %1373 = vmatprep.mubr.bf16.mxu0 %v229
      %1374 = vmatmul.mubr.bf16.gmra.mrb[0].mxu0 %v534
      %v1375 = vpop.f32.mrb[0].mxu0
      %v1376 = vadd.f32 %v1215, %v1375
      %v1377 = vpop.f32.mrb[0].mxu0
      %v1378 = vpop.f32.mrb[0].mxu0
      %v1379 = vadd.f32 %v1218, %v1378
      %v1380 = vpop.f32.mrb[0].mxu0
      %1381 = vmatprep.mubr.bf16.mxu0 %v230
      %1382 = vmatmul.mubr.bf16.gmra.mrb[0].mxu0 %v535
      %v1383 = vpop.f32.mrb[0].mxu0
      %v1384 = vadd.f32 %v1223, %v1383
      %v1385 = vpop.f32.mrb[0].mxu0
      %v1386 = vpop.f32.mrb[0].mxu0
      %v1387 = vadd.f32 %v1226, %v1386
      %v1388 = vpop.f32.mrb[0].mxu0
      %1389 = vmatprep.mubr.bf16.mxu0 %v231
      %1390 = vmatmul.mubr.bf16.gmra.mrb[0].mxu0 %v536
      %v1391 = vpop.f32.mrb[0].mxu0
      %v1392 = vadd.f32 %v1231, %v1391
      %v1393 = vpop.f32.mrb[0].mxu0
      %v1394 = vpop.f32.mrb[0].mxu0
      %v1395 = vadd.f32 %v1234, %v1394
      %v1396 = vpop.f32.mrb[0].mxu0
      %1397 = vmatprep.mubr.bf16.mxu0 %v232
      %1398 = vmatmul.mubr.bf16.gmra.mrb[0].mxu0 %v537
      %v1399 = vpop.f32.mrb[0].mxu0
      %v1400 = vadd.f32 %v1239, %v1399
      %v1401 = vpop.f32.mrb[0].mxu0
      %v1402 = vpop.f32.mrb[0].mxu0
      %v1403 = vadd.f32 %v1242, %v1402
      %v1404 = vpop.f32.mrb[0].mxu0
      %1405 = vmatprep.mubr.bf16.mxu0 %v233
      %1406 = vmatmul.mubr.bf16.gmra.mrb[0].mxu0 %v538
      %v1407 = vpop.f32.mrb[0].mxu0
      %v1408 = vadd.f32 %v1247, %v1407
      %v1409 = vpop.f32.mrb[0].mxu0
      %v1410 = vpop.f32.mrb[0].mxu0
      %v1411 = vadd.f32 %v1250, %v1410
      %v1412 = vpop.f32.mrb[0].mxu0
      %1413 = vmatprep.mubr.bf16.mxu0 %v234
      %1414 = vmatmul.mubr.bf16.gmra.mrb[0].mxu0 %v539
      %v1415 = vpop.f32.mrb[0].mxu0
      %v1416 = vadd.f32 %v1255, %v1415
      %v1417 = vpop.f32.mrb[0].mxu0
      %v1418 = vpop.f32.mrb[0].mxu0
      %v1419 = vadd.f32 %v1258, %v1418
      %v1420 = vpop.f32.mrb[0].mxu0
      %1421 = vmatprep.mubr.bf16.mxu0 %v235
      %1422 = vmatmul.mubr.bf16.gmra.mrb[0].mxu0 %v540
      %v1423 = vpop.f32.mrb[0].mxu0
      %v1424 = vadd.f32 %v1263, %v1423
      %v1425 = vpop.f32.mrb[0].mxu0
      %v1426 = vpop.f32.mrb[0].mxu0
      %v1427 = vadd.f32 %v1266, %v1426
      %v1428 = vpop.f32.mrb[0].mxu0
      %1429 = vmatprep.mubr.bf16.mxu0 %v236
      %1430 = vmatmul.mubr.bf16.gmra.mrb[0].mxu0 %v541
      %v1431 = vpop.f32.mrb[0].mxu0
      %v1432 = vadd.f32 %v1271, %v1431
      %v1433 = vpop.f32.mrb[0].mxu0
      %v1434 = vpop.f32.mrb[0].mxu0
      %v1435 = vadd.f32 %v1274, %v1434
      %v1436 = vpop.f32.mrb[0].mxu0
      %1437 = vmatprep.mubr.bf16.mxu0 %v237
      %1438 = vmatmul.mubr.bf16.gmra.mrb[0].mxu0 %v542
      %v1439 = vpop.f32.mrb[0].mxu0
      %v1440 = vadd.f32 %v1279, %v1439
      %v1441 = vpop.f32.mrb[0].mxu0
      %v1442 = vpop.f32.mrb[0].mxu0
      %v1443 = vadd.f32 %v1282, %v1442
      %v1444 = vpop.f32.mrb[0].mxu0
      %1445 = vmatprep.mubr.bf16.mxu0 %v238
      %1446 = vmatmul.mubr.bf16.gmra.mrb[0].mxu0 %v543
      %v1447 = vpop.f32.mrb[0].mxu0
      %v1448 = vadd.f32 %v1287, %v1447
      %v1449 = vpop.f32.mrb[0].mxu0
      %v1450 = vpop.f32.mrb[0].mxu0
      %v1451 = vadd.f32 %v1290, %v1450
      %v1452 = vpop.f32.mrb[0].mxu0
      %1453 = vmatprep.mubr.bf16.mxu0 %v239
      %1454 = vmatmul.mubr.bf16.gmra.mrb[0].mxu0 %v544
      %v1455 = vpop.f32.mrb[0].mxu0
      %v1456 = vadd.f32 %v1295, %v1455
      %v1457 = vpop.f32.mrb[0].mxu0
      %v1458 = vpop.f32.mrb[0].mxu0
      %v1459 = vadd.f32 %v1298, %v1458
      %v1460 = vpop.f32.mrb[0].mxu0
      %1461 = vmatprep.mubr.bf16.mxu0 %v240
      %1462 = vmatmul.mubr.bf16.gmra.mrb[0].mxu0 %v545
      %v1463 = vpop.f32.mrb[0].mxu0
      %v1464 = vadd.f32 %v1303, %v1463
      %v1465 = vpop.f32.mrb[0].mxu0
      %v1466 = vpop.f32.mrb[0].mxu0
      %v1467 = vadd.f32 %v1306, %v1466
      %v1468 = vpop.f32.mrb[0].mxu0
      %1469 = vmatprep.mubr.bf16.mxu0 %v241
      %1470 = vmatmul.mubr.bf16.gmra.mrb[0].mxu0 %v546
      %v1471 = vpop.f32.mrb[0].mxu0
      %v1472 = vadd.f32 %v1311, %v1471
      %v1473 = vpop.f32.mrb[0].mxu0
      %v1474 = vpop.f32.mrb[0].mxu0
      %v1475 = vadd.f32 %v1314, %v1474
      %v1476 = vpop.f32.mrb[0].mxu0
      %1477 = vmatprep.mubr.bf16.mxu0 %v548
      %1478 = vmatmul.mubr.bf16.gmra.mrb[0].mxu0 %v547
      %v1479 = vpop.f32.mrb[0].mxu0
      %v1480 = vadd.f32 %v1319, %v1479
      %v1481 = vpop.f32.mrb[0].mxu0
      %v1482 = vpop.f32.mrb[0].mxu0
      %v1483 = vadd.f32 %v1322, %v1482
      %v1484 = vpop.f32.mrb[0].mxu0
      %1485 = vdwg.mxu0
      %1486 = vmatprep.subr.bf16.mxu0 0
      %1487 = vmatpush1.bf16.msra.mxu0 %v1052
      %1488 = vmatprep.subr.bf16.mxu0 0
      %1489 = vmatpush1.bf16.msra.mxu0 %v1053
      %1490 = vmatprep.subr.bf16.mxu0 0
      %1491 = vmatpush1.bf16.msra.mxu0 %v1054
      %1492 = vmatprep.subr.bf16.mxu0 0
      %1493 = vmatpush1.bf16.msra.mxu0 %v1055
      %1494 = vmatprep.subr.bf16.mxu0 0
      %1495 = vmatpush1.bf16.msra.mxu0 %v1056
      %1496 = vmatprep.subr.bf16.mxu0 0
      %1497 = vmatpush1.bf16.msra.mxu0 %v1057
      %1498 = vmatprep.subr.bf16.mxu0 0
      %1499 = vmatpush1.bf16.msra.mxu0 %v1058
      %1500 = vmatprep.subr.bf16.mxu0 0
      %1501 = vmatpush1.bf16.msra.mxu0 %v1059
      %1502 = vmatprep.subr.bf16.mxu0 0
      %1503 = vmatpush1.bf16.msra.mxu0 %v1060
      %1504 = vmatprep.subr.bf16.mxu0 0
      %1505 = vmatpush1.bf16.msra.mxu0 %v1061
      %1506 = vmatprep.subr.bf16.mxu0 0
      %1507 = vmatpush1.bf16.msra.mxu0 %v1062
      %1508 = vmatprep.subr.bf16.mxu0 0
      %1509 = vmatpush1.bf16.msra.mxu0 %v1063
      %1510 = vmatprep.subr.bf16.mxu0 0
      %1511 = vmatpush1.bf16.msra.mxu0 %v1064
      %1512 = vmatprep.subr.bf16.mxu0 0
      %1513 = vmatpush1.bf16.msra.mxu0 %v1065
      %1514 = vmatprep.subr.bf16.mxu0 0
      %1515 = vmatpush1.bf16.msra.mxu0 %v1066
      %1516 = vmatprep.subr.bf16.mxu0 0
      %1517 = vmatpush1.bf16.msra.mxu0 %v1067
      %1518 = vmatprep.mubr.bf16.mxu0 %v533
      %1519 = vmatmul.mubr.bf16.gmra.mrb[0].mxu0 %v404
      %v1520 = vpop.f32.mrb[0].mxu0
      %v1521 = vadd.f32 %v1360, %v1520
      %v1522 = vpop.f32.mrb[0].mxu0
      %v1523 = vpop.f32.mrb[0].mxu0
      %v1524 = vadd.f32 %v1363, %v1523
      %v1525 = vpop.f32.mrb[0].mxu0
      %1526 = vmatprep.mubr.bf16.mxu0 %v534
      %1527 = vmatmul.mubr.bf16.gmra.mrb[0].mxu0 %v405
      %v1528 = vpop.f32.mrb[0].mxu0
      %v1529 = vadd.f32 %v1368, %v1528
      %v1530 = vpop.f32.mrb[0].mxu0
      %v1531 = vpop.f32.mrb[0].mxu0
      %v1532 = vadd.f32 %v1371, %v1531
      %v1533 = vpop.f32.mrb[0].mxu0
      %1534 = vmatprep.mubr.bf16.mxu0 %v535
      %1535 = vmatmul.mubr.bf16.gmra.mrb[0].mxu0 %v406
      %v1536 = vpop.f32.mrb[0].mxu0
      %v1537 = vadd.f32 %v1376, %v1536
      %v1538 = vpop.f32.mrb[0].mxu0
      %v1539 = vpop.f32.mrb[0].mxu0
      %v1540 = vadd.f32 %v1379, %v1539
      %v1541 = vpop.f32.mrb[0].mxu0
      %1542 = vmatprep.mubr.bf16.mxu0 %v536
      %1543 = vmatmul.mubr.bf16.gmra.mrb[0].mxu0 %v407
      %v1544 = vpop.f32.mrb[0].mxu0
      %v1545 = vadd.f32 %v1384, %v1544
      %v1546 = vpop.f32.mrb[0].mxu0
      %v1547 = vpop.f32.mrb[0].mxu0
      %v1548 = vadd.f32 %v1387, %v1547
      %v1549 = vpop.f32.mrb[0].mxu0
      %1550 = vmatprep.mubr.bf16.mxu0 %v537
      %1551 = vmatmul.mubr.bf16.gmra.mrb[0].mxu0 %v408
      %v1552 = vpop.f32.mrb[0].mxu0
      %v1553 = vadd.f32 %v1392, %v1552
      %v1554 = vpop.f32.mrb[0].mxu0
      %v1555 = vpop.f32.mrb[0].mxu0
      %v1556 = vadd.f32 %v1395, %v1555
      %v1557 = vpop.f32.mrb[0].mxu0
      %1558 = vmatprep.mubr.bf16.mxu0 %v538
      %1559 = vmatmul.mubr.bf16.gmra.mrb[0].mxu0 %v409
      %v1560 = vpop.f32.mrb[0].mxu0
      %v1561 = vadd.f32 %v1400, %v1560
      %v1562 = vpop.f32.mrb[0].mxu0
      %v1563 = vpop.f32.mrb[0].mxu0
      %v1564 = vadd.f32 %v1403, %v1563
      %v1565 = vpop.f32.mrb[0].mxu0
      %1566 = vmatprep.mubr.bf16.mxu0 %v539
      %1567 = vmatmul.mubr.bf16.gmra.mrb[0].mxu0 %v410
      %v1568 = vpop.f32.mrb[0].mxu0
      %v1569 = vadd.f32 %v1408, %v1568
      %v1570 = vpop.f32.mrb[0].mxu0
      %v1571 = vpop.f32.mrb[0].mxu0
      %v1572 = vadd.f32 %v1411, %v1571
      %v1573 = vpop.f32.mrb[0].mxu0
      %1574 = vmatprep.mubr.bf16.mxu0 %v540
      %1575 = vmatmul.mubr.bf16.gmra.mrb[0].mxu0 %v411
      %v1576 = vpop.f32.mrb[0].mxu0
      %v1577 = vadd.f32 %v1416, %v1576
      %v1578 = vpop.f32.mrb[0].mxu0
      %v1579 = vpop.f32.mrb[0].mxu0
      %v1580 = vadd.f32 %v1419, %v1579
      %v1581 = vpop.f32.mrb[0].mxu0
      %1582 = vmatprep.mubr.bf16.mxu0 %v541
      %1583 = vmatmul.mubr.bf16.gmra.mrb[0].mxu0 %v412
      %v1584 = vpop.f32.mrb[0].mxu0
      %v1585 = vadd.f32 %v1424, %v1584
      %v1586 = vpop.f32.mrb[0].mxu0
      %v1587 = vpop.f32.mrb[0].mxu0
      %v1588 = vadd.f32 %v1427, %v1587
      %v1589 = vpop.f32.mrb[0].mxu0
      %1590 = vmatprep.mubr.bf16.mxu0 %v542
      %1591 = vmatmul.mubr.bf16.gmra.mrb[0].mxu0 %v413
      %v1592 = vpop.f32.mrb[0].mxu0
      %v1593 = vadd.f32 %v1432, %v1592
      %v1594 = vpop.f32.mrb[0].mxu0
      %v1595 = vpop.f32.mrb[0].mxu0
      %v1596 = vadd.f32 %v1435, %v1595
      %v1597 = vpop.f32.mrb[0].mxu0
      %1598 = vmatprep.mubr.bf16.mxu0 %v543
      %1599 = vmatmul.mubr.bf16.gmra.mrb[0].mxu0 %v414
      %v1600 = vpop.f32.mrb[0].mxu0
      %v1601 = vadd.f32 %v1440, %v1600
      %v1602 = vpop.f32.mrb[0].mxu0
      %v1603 = vpop.f32.mrb[0].mxu0
      %v1604 = vadd.f32 %v1443, %v1603
      %v1605 = vpop.f32.mrb[0].mxu0
      %1606 = vmatprep.mubr.bf16.mxu0 %v544
      %1607 = vmatmul.mubr.bf16.gmra.mrb[0].mxu0 %v415
      %v1608 = vpop.f32.mrb[0].mxu0
      %v1609 = vadd.f32 %v1448, %v1608
      %v1610 = vpop.f32.mrb[0].mxu0
      %v1611 = vpop.f32.mrb[0].mxu0
      %v1612 = vadd.f32 %v1451, %v1611
      %v1613 = vpop.f32.mrb[0].mxu0
      %1614 = vmatprep.mubr.bf16.mxu0 %v545
      %1615 = vmatmul.mubr.bf16.gmra.mrb[0].mxu0 %v416
      %v1616 = vpop.f32.mrb[0].mxu0
      %v1617 = vadd.f32 %v1456, %v1616
      %v1618 = vpop.f32.mrb[0].mxu0
      %v1619 = vpop.f32.mrb[0].mxu0
      %v1620 = vadd.f32 %v1459, %v1619
      %v1621 = vpop.f32.mrb[0].mxu0
      %1622 = vmatprep.mubr.bf16.mxu0 %v546
      %1623 = vmatmul.mubr.bf16.gmra.mrb[0].mxu0 %v417
      %v1624 = vpop.f32.mrb[0].mxu0
      %v1625 = vadd.f32 %v1464, %v1624
      %v1626 = vpop.f32.mrb[0].mxu0
      %v1627 = vpop.f32.mrb[0].mxu0
      %v1628 = vadd.f32 %v1467, %v1627
      %v1629 = vpop.f32.mrb[0].mxu0
      %1630 = vmatprep.mubr.bf16.mxu0 %v547
      %1631 = vmatmul.mubr.bf16.gmra.mrb[0].mxu0 %v418
      %v1632 = vpop.f32.mrb[0].mxu0
      %v1633 = vadd.f32 %v1472, %v1632
      %v1634 = vpop.f32.mrb[0].mxu0
      %v1635 = vpop.f32.mrb[0].mxu0
      %v1636 = vadd.f32 %v1475, %v1635
      %v1637 = vpop.f32.mrb[0].mxu0
      %1638 = vmatprep.mubr.bf16.mxu0 %v567
      %1639 = vmatmul.mubr.bf16.gmra.mrb[0].mxu0 %v559
      %v1640 = vpop.f32.mrb[0].mxu0
      %v1641 = vadd.f32 %v1480, %v1640
      %v1642 = vpop.f32.mrb[0].mxu0
      %v1643 = vpop.f32.mrb[0].mxu0
      %v1644 = vadd.f32 %v1483, %v1643
      %v1645 = vpop.f32.mrb[0].mxu0
      %1646 = vdwg.mxu0
      %1647 = vmatprep.subr.bf16.mxu0 0
      %1648 = vmatpush1.bf16.msra.mxu0 %v1068
      %1649 = vmatprep.subr.bf16.mxu0 0
      %1650 = vmatpush1.bf16.msra.mxu0 %v1069
      %1651 = vmatprep.subr.bf16.mxu0 0
      %1652 = vmatpush1.bf16.msra.mxu0 %v1070
      %1653 = vmatprep.subr.bf16.mxu0 0
      %1654 = vmatpush1.bf16.msra.mxu0 %v1071
      %1655 = vmatprep.subr.bf16.mxu0 0
      %1656 = vmatpush1.bf16.msra.mxu0 %v1072
      %1657 = vmatprep.subr.bf16.mxu0 0
      %1658 = vmatpush1.bf16.msra.mxu0 %v1073
      %1659 = vmatprep.subr.bf16.mxu0 0
      %1660 = vmatpush1.bf16.msra.mxu0 %v1074
      %1661 = vmatprep.subr.bf16.mxu0 0
      %1662 = vmatpush1.bf16.msra.mxu0 %v1075
      %1663 = vmatprep.subr.bf16.mxu0 0
      %1664 = vmatpush1.bf16.msra.mxu0 %v1076
      %1665 = vmatprep.subr.bf16.mxu0 0
      %1666 = vmatpush1.bf16.msra.mxu0 %v1077
      %1667 = vmatprep.subr.bf16.mxu0 0
      %1668 = vmatpush1.bf16.msra.mxu0 %v1078
      %1669 = vmatprep.subr.bf16.mxu0 0
      %1670 = vmatpush1.bf16.msra.mxu0 %v1079
      %1671 = vmatprep.subr.bf16.mxu0 0
      %1672 = vmatpush1.bf16.msra.mxu0 %v1080
      %1673 = vmatprep.subr.bf16.mxu0 0
      %1674 = vmatpush1.bf16.msra.mxu0 %v1081
      %1675 = vmatprep.subr.bf16.mxu0 0
      %1676 = vmatpush1.bf16.msra.mxu0 %v1082
      %1677 = vmatprep.subr.bf16.mxu0 0
      %1678 = vmatpush1.bf16.msra.mxu0 %v1083
      %1679 = vmatprep.mubr.bf16.mxu0 %v405
      %1680 = vmatmul.mubr.bf16.gmra.mrb[0].mxu0 %v228
      %v1681 = vpop.f32.mrb[0].mxu0
      %v1682 = vadd.f32 %v1521, %v1681
      %v1683 = vpop.f32.mrb[0].mxu0
      %v1684 = vpop.f32.mrb[0].mxu0
      %v1685 = vadd.f32 %v1524, %v1684
      %v1686 = vpop.f32.mrb[0].mxu0
      %1687 = vmatprep.mubr.bf16.mxu0 %v406
      %1688 = vmatmul.mubr.bf16.gmra.mrb[0].mxu0 %v229
      %v1689 = vpop.f32.mrb[0].mxu0
      %v1690 = vadd.f32 %v1529, %v1689
      %v1691 = vpop.f32.mrb[0].mxu0
      %v1692 = vpop.f32.mrb[0].mxu0
      %v1693 = vadd.f32 %v1532, %v1692
      %v1694 = vpop.f32.mrb[0].mxu0
      %1695 = vmatprep.mubr.bf16.mxu0 %v407
      %1696 = vmatmul.mubr.bf16.gmra.mrb[0].mxu0 %v230
      %v1697 = vpop.f32.mrb[0].mxu0
      %v1698 = vadd.f32 %v1537, %v1697
      %v1699 = vpop.f32.mrb[0].mxu0
      %v1700 = vpop.f32.mrb[0].mxu0
      %v1701 = vadd.f32 %v1540, %v1700
      %v1702 = vpop.f32.mrb[0].mxu0
      %1703 = vmatprep.mubr.bf16.mxu0 %v408
      %1704 = vmatmul.mubr.bf16.gmra.mrb[0].mxu0 %v231
      %v1705 = vpop.f32.mrb[0].mxu0
      %v1706 = vadd.f32 %v1545, %v1705
      %v1707 = vpop.f32.mrb[0].mxu0
      %v1708 = vpop.f32.mrb[0].mxu0
      %v1709 = vadd.f32 %v1548, %v1708
      %v1710 = vpop.f32.mrb[0].mxu0
      %1711 = vmatprep.mubr.bf16.mxu0 %v409
      %1712 = vmatmul.mubr.bf16.gmra.mrb[0].mxu0 %v232
      %v1713 = vpop.f32.mrb[0].mxu0
      %v1714 = vadd.f32 %v1553, %v1713
      %v1715 = vpop.f32.mrb[0].mxu0
      %v1716 = vpop.f32.mrb[0].mxu0
      %v1717 = vadd.f32 %v1556, %v1716
      %v1718 = vpop.f32.mrb[0].mxu0
      %1719 = vmatprep.mubr.bf16.mxu0 %v410
      %1720 = vmatmul.mubr.bf16.gmra.mrb[0].mxu0 %v233
      %v1721 = vpop.f32.mrb[0].mxu0
      %v1722 = vadd.f32 %v1561, %v1721
      %v1723 = vpop.f32.mrb[0].mxu0
      %v1724 = vpop.f32.mrb[0].mxu0
      %v1725 = vadd.f32 %v1564, %v1724
      %v1726 = vpop.f32.mrb[0].mxu0
      %1727 = vmatprep.mubr.bf16.mxu0 %v411
      %1728 = vmatmul.mubr.bf16.gmra.mrb[0].mxu0 %v234
      %v1729 = vpop.f32.mrb[0].mxu0
      %v1730 = vadd.f32 %v1569, %v1729
      %v1731 = vpop.f32.mrb[0].mxu0
      %v1732 = vpop.f32.mrb[0].mxu0
      %v1733 = vadd.f32 %v1572, %v1732
      %v1734 = vpop.f32.mrb[0].mxu0
      %1735 = vmatprep.mubr.bf16.mxu0 %v412
      %1736 = vmatmul.mubr.bf16.gmra.mrb[0].mxu0 %v235
      %v1737 = vpop.f32.mrb[0].mxu0
      %v1738 = vadd.f32 %v1577, %v1737
      %v1739 = vpop.f32.mrb[0].mxu0
      %v1740 = vpop.f32.mrb[0].mxu0
      %v1741 = vadd.f32 %v1580, %v1740
      %v1742 = vpop.f32.mrb[0].mxu0
      %1743 = vmatprep.mubr.bf16.mxu0 %v413
      %1744 = vmatmul.mubr.bf16.gmra.mrb[0].mxu0 %v236
      %v1745 = vpop.f32.mrb[0].mxu0
      %v1746 = vadd.f32 %v1585, %v1745
      %v1747 = vpop.f32.mrb[0].mxu0
      %v1748 = vpop.f32.mrb[0].mxu0
      %v1749 = vadd.f32 %v1588, %v1748
      %v1750 = vpop.f32.mrb[0].mxu0
      %1751 = vmatprep.mubr.bf16.mxu0 %v414
      %1752 = vmatmul.mubr.bf16.gmra.mrb[0].mxu0 %v237
      %v1753 = vpop.f32.mrb[0].mxu0
      %v1754 = vadd.f32 %v1593, %v1753
      %v1755 = vpop.f32.mrb[0].mxu0
      %v1756 = vpop.f32.mrb[0].mxu0
      %v1757 = vadd.f32 %v1596, %v1756
      %v1758 = vpop.f32.mrb[0].mxu0
      %1759 = vmatprep.mubr.bf16.mxu0 %v415
      %1760 = vmatmul.mubr.bf16.gmra.mrb[0].mxu0 %v238
      %v1761 = vpop.f32.mrb[0].mxu0
      %v1762 = vadd.f32 %v1601, %v1761
      %v1763 = vpop.f32.mrb[0].mxu0
      %v1764 = vpop.f32.mrb[0].mxu0
      %v1765 = vadd.f32 %v1604, %v1764
      %v1766 = vpop.f32.mrb[0].mxu0
      %1767 = vmatprep.mubr.bf16.mxu0 %v416
      %1768 = vmatmul.mubr.bf16.gmra.mrb[0].mxu0 %v239
      %v1769 = vpop.f32.mrb[0].mxu0
      %v1770 = vadd.f32 %v1609, %v1769
      %v1771 = vpop.f32.mrb[0].mxu0
      %v1772 = vpop.f32.mrb[0].mxu0
      %v1773 = vadd.f32 %v1612, %v1772
      %v1774 = vpop.f32.mrb[0].mxu0
      %1775 = vmatprep.mubr.bf16.mxu0 %v417
      %1776 = vmatmul.mubr.bf16.gmra.mrb[0].mxu0 %v240
      %v1777 = vpop.f32.mrb[0].mxu0
      %v1778 = vadd.f32 %v1617, %v1777
      %v1779 = vpop.f32.mrb[0].mxu0
      %v1780 = vpop.f32.mrb[0].mxu0
      %v1781 = vadd.f32 %v1620, %v1780
      %v1782 = vpop.f32.mrb[0].mxu0
      %1783 = vmatprep.mubr.bf16.mxu0 %v418
      %1784 = vmatmul.mubr.bf16.gmra.mrb[0].mxu0 %v241
      %v1785 = vpop.f32.mrb[0].mxu0
      %v1786 = vadd.f32 %v1625, %v1785
      %v1787 = vpop.f32.mrb[0].mxu0
      %v1788 = vpop.f32.mrb[0].mxu0
      %v1789 = vadd.f32 %v1628, %v1788
      %v1790 = vpop.f32.mrb[0].mxu0
      %1791 = vmatprep.mubr.bf16.mxu0 %v559
      %1792 = vmatmul.mubr.bf16.gmra.mrb[0].mxu0 %v548
      %v1793 = vpop.f32.mrb[0].mxu0
      %v1794 = vadd.f32 %v1633, %v1793
      %v1795 = vpop.f32.mrb[0].mxu0
      %v1796 = vpop.f32.mrb[0].mxu0
      %v1797 = vadd.f32 %v1636, %v1796
      %v1798 = vpop.f32.mrb[0].mxu0
      %1799 = vmatprep.mubr.bf16.mxu0 %v579
      %1800 = vmatmul.mubr.bf16.gmra.mrb[0].mxu0 %v568
      %v1801 = vpop.f32.mrb[0].mxu0
      %v1802 = vadd.f32 %v1641, %v1801
      %v1803 = vpop.f32.mrb[0].mxu0
      %v1804 = vpop.f32.mrb[0].mxu0
      %v1805 = vadd.f32 %v1644, %v1804
      %v1806 = vpop.f32.mrb[0].mxu0
      %1807 = vdwg.mxu0
      %1808 = vmatprep.subr.bf16.mxu0 0
      %1809 = vmatpush1.bf16.msra.mxu0 %v1084
      %1810 = vmatprep.subr.bf16.mxu0 0
      %1811 = vmatpush1.bf16.msra.mxu0 %v1085
      %1812 = vmatprep.subr.bf16.mxu0 0
      %1813 = vmatpush1.bf16.msra.mxu0 %v1086
      %1814 = vmatprep.subr.bf16.mxu0 0
      %1815 = vmatpush1.bf16.msra.mxu0 %v1087
      %1816 = vmatprep.subr.bf16.mxu0 0
      %1817 = vmatpush1.bf16.msra.mxu0 %v1088
      %1818 = vmatprep.subr.bf16.mxu0 0
      %1819 = vmatpush1.bf16.msra.mxu0 %v1089
      %1820 = vmatprep.subr.bf16.mxu0 0
      %1821 = vmatpush1.bf16.msra.mxu0 %v1090
      %1822 = vmatprep.subr.bf16.mxu0 0
      %1823 = vmatpush1.bf16.msra.mxu0 %v1091
      %1824 = vmatprep.subr.bf16.mxu0 0
      %1825 = vmatpush1.bf16.msra.mxu0 0
      %1826 = vmatprep.subr.bf16.mxu0 0
      %1827 = vmatpush1.bf16.msra.mxu0 0
      %1828 = vmatprep.subr.bf16.mxu0 0
      %1829 = vmatpush1.bf16.msra.mxu0 0
      %1830 = vmatprep.subr.bf16.mxu0 0
      %1831 = vmatpush1.bf16.msra.mxu0 0
      %1832 = vmatprep.subr.bf16.mxu0 0
      %1833 = vmatpush1.bf16.msra.mxu0 0
      %1834 = vmatprep.subr.bf16.mxu0 0
      %1835 = vmatpush1.bf16.msra.mxu0 0
      %1836 = vmatprep.subr.bf16.mxu0 0
      %1837 = vmatpush1.bf16.msra.mxu0 0
      %1838 = vmatprep.subr.bf16.mxu0 0
      %1839 = vmatpush1.bf16.msra.mxu0 0
      %1840 = vmatprep.mubr.bf16.mxu0 0
      %1841 = vmatmul.mubr.bf16.gmra.mrb[0].mxu0 %v534
      %v1842 = vpop.f32.mrb[0].mxu0
      %v1843 = vadd.f32 %v1682, %v1842
      %v1844 = vpop.f32.mrb[0].mxu0
      %v1845 = vpop.f32.mrb[0].mxu0
      %v1846 = vadd.f32 %v1685, %v1845
      %v1847 = vpop.f32.mrb[0].mxu0
      %1848 = vmatprep.mubr.bf16.mxu0 0
      %1849 = vmatmul.mubr.bf16.gmra.mrb[0].mxu0 %v535
      %v1850 = vpop.f32.mrb[0].mxu0
      %v1851 = vadd.f32 %v1690, %v1850
      %v1852 = vpop.f32.mrb[0].mxu0
      %v1853 = vpop.f32.mrb[0].mxu0
      %v1854 = vadd.f32 %v1693, %v1853
      %v1855 = vpop.f32.mrb[0].mxu0
      %1856 = vmatprep.mubr.bf16.mxu0 0
      %1857 = vmatmul.mubr.bf16.gmra.mrb[0].mxu0 %v536
      %v1858 = vpop.f32.mrb[0].mxu0
      %v1859 = vadd.f32 %v1698, %v1858
      %v1860 = vpop.f32.mrb[0].mxu0
      %v1861 = vpop.f32.mrb[0].mxu0
      %v1862 = vadd.f32 %v1701, %v1861
      %v1863 = vpop.f32.mrb[0].mxu0
      %1864 = vmatprep.mubr.bf16.mxu0 0
      %1865 = vmatmul.mubr.bf16.gmra.mrb[0].mxu0 %v537
      %v1866 = vpop.f32.mrb[0].mxu0
      %v1867 = vadd.f32 %v1706, %v1866
      %v1868 = vpop.f32.mrb[0].mxu0
      %v1869 = vpop.f32.mrb[0].mxu0
      %v1870 = vadd.f32 %v1709, %v1869
      %v1871 = vpop.f32.mrb[0].mxu0
      %1872 = vmatprep.mubr.bf16.mxu0 0
      %1873 = vmatmul.mubr.bf16.gmra.mrb[0].mxu0 %v538
      %v1874 = vpop.f32.mrb[0].mxu0
      %v1875 = vadd.f32 %v1714, %v1874
      %v1876 = vpop.f32.mrb[0].mxu0
      %v1877 = vpop.f32.mrb[0].mxu0
      %v1878 = vadd.f32 %v1717, %v1877
      %v1879 = vpop.f32.mrb[0].mxu0
      %1880 = vmatprep.mubr.bf16.mxu0 0
      %1881 = vmatmul.mubr.bf16.gmra.mrb[0].mxu0 %v539
      %v1882 = vpop.f32.mrb[0].mxu0
      %v1883 = vadd.f32 %v1722, %v1882
      %v1884 = vpop.f32.mrb[0].mxu0
      %v1885 = vpop.f32.mrb[0].mxu0
      %v1886 = vadd.f32 %v1725, %v1885
      %v1887 = vpop.f32.mrb[0].mxu0
      %1888 = vmatprep.mubr.bf16.mxu0 0
      %1889 = vmatmul.mubr.bf16.gmra.mrb[0].mxu0 %v540
      %v1890 = vpop.f32.mrb[0].mxu0
      %v1891 = vadd.f32 %v1730, %v1890
      %v1892 = vpop.f32.mrb[0].mxu0
      %v1893 = vpop.f32.mrb[0].mxu0
      %v1894 = vadd.f32 %v1733, %v1893
      %v1895 = vpop.f32.mrb[0].mxu0
      %1896 = vmatprep.mubr.bf16.mxu0 0
      %1897 = vmatmul.mubr.bf16.gmra.mrb[0].mxu0 %v541
      %v1898 = vpop.f32.mrb[0].mxu0
      %v1899 = vadd.f32 %v1738, %v1898
      %v1900 = vpop.f32.mrb[0].mxu0
      %v1901 = vpop.f32.mrb[0].mxu0
      %v1902 = vadd.f32 %v1741, %v1901
      %v1903 = vpop.f32.mrb[0].mxu0
      %1904 = vmatprep.mubr.bf16.mxu0 0
      %1905 = vmatmul.mubr.bf16.gmra.mrb[0].mxu0 %v542
      %v1906 = vpop.f32.mrb[0].mxu0
      %v1907 = vadd.f32 %v1746, %v1906
      %v1908 = vpop.f32.mrb[0].mxu0
      %v1909 = vpop.f32.mrb[0].mxu0
      %v1910 = vadd.f32 %v1749, %v1909
      %v1911 = vpop.f32.mrb[0].mxu0
      %1912 = vmatprep.mubr.bf16.mxu0 0
      %1913 = vmatmul.mubr.bf16.gmra.mrb[0].mxu0 %v543
      %v1914 = vpop.f32.mrb[0].mxu0
      %v1915 = vadd.f32 %v1754, %v1914
      %v1916 = vpop.f32.mrb[0].mxu0
      %v1917 = vpop.f32.mrb[0].mxu0
      %v1918 = vadd.f32 %v1757, %v1917
      %v1919 = vpop.f32.mrb[0].mxu0
      %1920 = vmatprep.mubr.bf16.mxu0 0
      %1921 = vmatmul.mubr.bf16.gmra.mrb[0].mxu0 %v544
      %v1922 = vpop.f32.mrb[0].mxu0
      %v1923 = vadd.f32 %v1762, %v1922
      %v1924 = vpop.f32.mrb[0].mxu0
      %v1925 = vpop.f32.mrb[0].mxu0
      %v1926 = vadd.f32 %v1765, %v1925
      %v1927 = vpop.f32.mrb[0].mxu0
      %1928 = vmatprep.mubr.bf16.mxu0 0
      %1929 = vmatmul.mubr.bf16.gmra.mrb[0].mxu0 %v545
      %v1930 = vpop.f32.mrb[0].mxu0
      %v1931 = vadd.f32 %v1770, %v1930
      %v1932 = vpop.f32.mrb[0].mxu0
      %v1933 = vpop.f32.mrb[0].mxu0
      %v1934 = vadd.f32 %v1773, %v1933
      %v1935 = vpop.f32.mrb[0].mxu0
      %1936 = vmatprep.mubr.bf16.mxu0 0
      %1937 = vmatmul.mubr.bf16.gmra.mrb[0].mxu0 %v546
      %v1938 = vpop.f32.mrb[0].mxu0
      %v1939 = vadd.f32 %v1778, %v1938
      %v1940 = vpop.f32.mrb[0].mxu0
      %v1941 = vpop.f32.mrb[0].mxu0
      %v1942 = vadd.f32 %v1781, %v1941
      %v1943 = vpop.f32.mrb[0].mxu0
      %1944 = vmatprep.mubr.bf16.mxu0 0
      %1945 = vmatmul.mubr.bf16.gmra.mrb[0].mxu0 %v547
      %v1946 = vpop.f32.mrb[0].mxu0
      %v1947 = vadd.f32 %v1786, %v1946
      %v1948 = vpop.f32.mrb[0].mxu0
      %v1949 = vpop.f32.mrb[0].mxu0
      %v1950 = vadd.f32 %v1789, %v1949
      %v1951 = vpop.f32.mrb[0].mxu0
      %1952 = vmatprep.mubr.bf16.mxu0 0
      %1953 = vmatmul.mubr.bf16.gmra.mrb[0].mxu0 %v567
      %v1954 = vpop.f32.mrb[0].mxu0
      %v1955 = vadd.f32 %v1794, %v1954
      %v1956 = vpop.f32.mrb[0].mxu0
      %v1957 = vpop.f32.mrb[0].mxu0
      %v1958 = vadd.f32 %v1797, %v1957
      %v1959 = vpop.f32.mrb[0].mxu0
      %1960 = vmatprep.mubr.bf16.mxu0 0
      %1961 = vmatmul.mubr.bf16.gmra.mrb[0].mxu0 %v587
      %v1962 = vpop.f32.mrb[0].mxu0
      %v1963 = vadd.f32 %v1802, %v1962
      %v1964 = vpop.f32.mrb[0].mxu0
      %v1965 = vpop.f32.mrb[0].mxu0
      %v1966 = vadd.f32 %v1805, %v1965
      %v1967 = vpop.f32.mrb[0].mxu0
      %1968 = vdwg.mxu0
      %v1969 = vadd.f32 %v1843, %v1846
      %v1970 = vadd.f32 %v1969, %v1851
      %v1971 = vadd.f32 %v1970, %v1854
      %v1972 = vadd.f32 %v1971, %v1859
      %v1973 = vadd.f32 %v1972, %v1862
      %v1974 = vadd.f32 %v1973, %v1867
      %v1975 = vadd.f32 %v1974, %v1870
      %v1976 = vadd.f32 %v1975, %v1875
      %v1977 = vadd.f32 %v1976, %v1878
      %v1978 = vadd.f32 %v1977, %v1883
      %v1979 = vadd.f32 %v1978, %v1886
      %v1980 = vadd.f32 %v1979, %v1891
      %v1981 = vadd.f32 %v1980, %v1894
      %v1982 = vadd.f32 %v1981, %v1899
      %v1983 = vadd.f32 %v1982, %v1902
      %v1984 = vadd.f32 %v1983, %v1907
      %v1985 = vadd.f32 %v1984, %v1910
      %v1986 = vadd.f32 %v1985, %v1915
      %v1987 = vadd.f32 %v1986, %v1918
      %v1988 = vadd.f32 %v1987, %v1923
      %v1989 = vadd.f32 %v1988, %v1926
      %v1990 = vadd.f32 %v1989, %v1931
      %v1991 = vadd.f32 %v1990, %v1934
      %v1992 = vadd.f32 %v1991, %v1939
      %v1993 = vadd.f32 %v1992, %v1942
      %v1994 = vadd.f32 %v1993, %v1947
      %v1995 = vadd.f32 %v1994, %v1950
      %v1996 = vadd.f32 %v1995, %v1955
      %v1997 = vadd.f32 %v1996, %v1958
      %v1998 = vadd.f32 %v1997, %v1963
      %v1999 = vadd.f32 %v1998, %v1966
      %v2000 = vrot.slane %v1999, 4
      %v2001 = vadd.f32 %v1999, %v2000
      %v2002 = vrot.slane %v2001, 2
      %v2003 = vadd.f32 %v2001, %v2002
      %v2004 = vrot.slane %v2003, 1
      %v2005 = vadd.f32 %v2003, %v2004
      %v2006 = vrcp.pop 256.0
      %v2007 = vmul.f32 %v2005, %v2006
      %v2008 = vsub.f32 %v1843, %v2007
      %v2009 = vsub.f32 %v1846, %v2007
      %v2010 = vsub.f32 %v1851, %v2007
      %v2011 = vsub.f32 %v1854, %v2007
      %v2012 = vsub.f32 %v1859, %v2007
      %v2013 = vsub.f32 %v1862, %v2007
      %v2014 = vsub.f32 %v1867, %v2007
      %v2015 = vsub.f32 %v1870, %v2007
      %v2016 = vsub.f32 %v1875, %v2007
      %v2017 = vsub.f32 %v1878, %v2007
      %v2018 = vsub.f32 %v1883, %v2007
      %v2019 = vsub.f32 %v1886, %v2007
      %v2020 = vsub.f32 %v1891, %v2007
      %v2021 = vsub.f32 %v1894, %v2007
      %v2022 = vsub.f32 %v1899, %v2007
      %v2023 = vsub.f32 %v1902, %v2007
      %v2024 = vsub.f32 %v1907, %v2007
      %v2025 = vsub.f32 %v1910, %v2007
      %v2026 = vsub.f32 %v1915, %v2007
      %v2027 = vsub.f32 %v1918, %v2007
      %v2028 = vsub.f32 %v1923, %v2007
      %v2029 = vsub.f32 %v1926, %v2007
      %v2030 = vsub.f32 %v1931, %v2007
      %v2031 = vsub.f32 %v1934, %v2007
      %v2032 = vsub.f32 %v1939, %v2007
      %v2033 = vsub.f32 %v1942, %v2007
      %v2034 = vsub.f32 %v1947, %v2007
      %v2035 = vsub.f32 %v1950, %v2007
      %v2036 = vsub.f32 %v1955, %v2007
      %v2037 = vsub.f32 %v1958, %v2007
      %v2038 = vsub.f32 %v1963, %v2007
      %v2039 = vsub.f32 %v1966, %v2007
      %v2040 = vmul.f32 %v2008, %v2008
      %v2041 = vmul.f32 %v2009, %v2009
      %v2042 = vmul.f32 %v2010, %v2010
      %v2043 = vmul.f32 %v2011, %v2011
      %v2044 = vmul.f32 %v2012, %v2012
      %v2045 = vmul.f32 %v2013, %v2013
      %v2046 = vmul.f32 %v2014, %v2014
      %v2047 = vmul.f32 %v2015, %v2015
      %v2048 = vmul.f32 %v2016, %v2016
      %v2049 = vmul.f32 %v2017, %v2017
      %v2050 = vmul.f32 %v2018, %v2018
      %v2051 = vmul.f32 %v2019, %v2019
      %v2052 = vmul.f32 %v2020, %v2020
      %v2053 = vmul.f32 %v2021, %v2021
      %v2054 = vmul.f32 %v2022, %v2022
      %v2055 = vmul.f32 %v2023, %v2023
      %v2056 = vmul.f32 %v2024, %v2024
      %v2057 = vmul.f32 %v2025, %v2025
      %v2058 = vmul.f32 %v2026, %v2026
      %v2059 = vmul.f32 %v2027, %v2027
      %v2060 = vmul.f32 %v2028, %v2028
      %v2061 = vmul.f32 %v2029, %v2029
      %v2062 = vmul.f32 %v2030, %v2030
      %v2063 = vmul.f32 %v2031, %v2031
      %v2064 = vmul.f32 %v2032, %v2032
      %v2065 = vmul.f32 %v2033, %v2033
      %v2066 = vmul.f32 %v2034, %v2034
      %v2067 = vmul.f32 %v2035, %v2035
      %v2068 = vmul.f32 %v2036, %v2036
      %v2069 = vmul.f32 %v2037, %v2037
      %v2070 = vmul.f32 %v2038, %v2038
      %v2071 = vmul.f32 %v2039, %v2039
      %v2072 = vadd.f32 %v2040, %v2041
      %v2073 = vadd.f32 %v2072, %v2042
      %v2074 = vadd.f32 %v2073, %v2043
      %v2075 = vadd.f32 %v2074, %v2044
      %v2076 = vadd.f32 %v2075, %v2045
      %v2077 = vadd.f32 %v2076, %v2046
      %v2078 = vadd.f32 %v2077, %v2047
      %v2079 = vadd.f32 %v2078, %v2048
      %v2080 = vadd.f32 %v2079, %v2049
      %v2081 = vadd.f32 %v2080, %v2050
      %v2082 = vadd.f32 %v2081, %v2051
      %v2083 = vadd.f32 %v2082, %v2052
      %v2084 = vadd.f32 %v2083, %v2053
      %v2085 = vadd.f32 %v2084, %v2054
      %v2086 = vadd.f32 %v2085, %v2055
      %v2087 = vadd.f32 %v2086, %v2056
      %v2088 = vadd.f32 %v2087, %v2057
      %v2089 = vadd.f32 %v2088, %v2058
      %v2090 = vadd.f32 %v2089, %v2059
      %v2091 = vadd.f32 %v2090, %v2060
      %v2092 = vadd.f32 %v2091, %v2061
      %v2093 = vadd.f32 %v2092, %v2062
      %v2094 = vadd.f32 %v2093, %v2063
      %v2095 = vadd.f32 %v2094, %v2064
      %v2096 = vadd.f32 %v2095, %v2065
      %v2097 = vadd.f32 %v2096, %v2066
      %v2098 = vadd.f32 %v2097, %v2067
      %v2099 = vadd.f32 %v2098, %v2068
      %v2100 = vadd.f32 %v2099, %v2069
      %v2101 = vadd.f32 %v2100, %v2070
      %v2102 = vadd.f32 %v2101, %v2071
      %v2103 = vrot.slane %v2102, 4
      %v2104 = vadd.f32 %v2102, %v2103
      %v2105 = vrot.slane %v2104, 2
      %v2106 = vadd.f32 %v2104, %v2105
      %v2107 = vrot.slane %v2106, 1
      %v2108 = vadd.f32 %v2106, %v2107
      %v2109 = vmul.f32 %v2108, %v2006
      %v2110 = vadd.f32 %v2109, 1e-05
      %v2111 = vrsqrt.pop %v2110
      %v2112 = vmul.f32 %v2008, %v2111
      %v2113 = vmul.f32 %v2009, %v2111
      %v2114 = vmul.f32 %v2010, %v2111
      %v2115 = vmul.f32 %v2011, %v2111
      %v2116 = vmul.f32 %v2012, %v2111
      %v2117 = vmul.f32 %v2013, %v2111
      %v2118 = vmul.f32 %v2014, %v2111
      %v2119 = vmul.f32 %v2015, %v2111
      %v2120 = vmul.f32 %v2016, %v2111
      %v2121 = vmul.f32 %v2017, %v2111
      %v2122 = vmul.f32 %v2018, %v2111
      %v2123 = vmul.f32 %v2019, %v2111
      %v2124 = vmul.f32 %v2020, %v2111
      %v2125 = vmul.f32 %v2021, %v2111
      %v2126 = vmul.f32 %v2022, %v2111
      %v2127 = vmul.f32 %v2023, %v2111
      %v2128 = vmul.f32 %v2024, %v2111
      %v2129 = vmul.f32 %v2025, %v2111
      %v2130 = vmul.f32 %v2026, %v2111
      %v2131 = vmul.f32 %v2027, %v2111
      %v2132 = vmul.f32 %v2028, %v2111
      %v2133 = vmul.f32 %v2029, %v2111
      %v2134 = vmul.f32 %v2030, %v2111
      %v2135 = vmul.f32 %v2031, %v2111
      %v2136 = vmul.f32 %v2032, %v2111
      %v2137 = vmul.f32 %v2033, %v2111
      %v2138 = vmul.f32 %v2034, %v2111
      %v2139 = vmul.f32 %v2035, %v2111
      %v2140 = vmul.f32 %v2036, %v2111
      %v2141 = vmul.f32 %v2037, %v2111
      %v2142 = vmul.f32 %v2038, %v2111
      %v2143 = vmul.f32 %v2039, %v2111
      %v2144 = vmax.f32 %v2112, 0.0
      %v2145 = vmax.f32 %v2113, 0.0
      %v2146 = vmax.f32 %v2114, 0.0
      %v2147 = vmax.f32 %v2115, 0.0
      %v2148 = vmax.f32 %v2116, 0.0
      %v2149 = vmax.f32 %v2117, 0.0
      %v2150 = vmax.f32 %v2118, 0.0
      %v2151 = vmax.f32 %v2119, 0.0
      %v2152 = vmax.f32 %v2120, 0.0
      %v2153 = vmax.f32 %v2121, 0.0
      %v2154 = vmax.f32 %v2122, 0.0
      %v2155 = vmax.f32 %v2123, 0.0
      %v2156 = vmax.f32 %v2124, 0.0
      %v2157 = vmax.f32 %v2125, 0.0
      %v2158 = vmax.f32 %v2126, 0.0
      %v2159 = vmax.f32 %v2127, 0.0
      %v2160 = vmax.f32 %v2128, 0.0
      %v2161 = vmax.f32 %v2129, 0.0
      %v2162 = vmax.f32 %v2130, 0.0
      %v2163 = vmax.f32 %v2131, 0.0
      %v2164 = vmax.f32 %v2132, 0.0
      %v2165 = vmax.f32 %v2133, 0.0
      %v2166 = vmax.f32 %v2134, 0.0
      %v2167 = vmax.f32 %v2135, 0.0
      %v2168 = vmax.f32 %v2136, 0.0
      %v2169 = vmax.f32 %v2137, 0.0
      %v2170 = vmax.f32 %v2138, 0.0
      %v2171 = vmax.f32 %v2139, 0.0
      %v2172 = vmax.f32 %v2140, 0.0
      %v2173 = vmax.f32 %v2141, 0.0
      %v2174 = vmax.f32 %v2142, 0.0
      %v2175 = vmax.f32 %v2143, 0.0
      %s2176 = scalar_lea.vmem [#allocation2], 24
      %2177 = vst [vmem:[%s2176 + $0x1] sm:$0xff] %v2144
      %2178 = vst [vmem:[%s2176 + $0x9] sm:$0xff] %v2145
      %2179 = vst [vmem:[%s2176 + $0x19] sm:$0xff] %v2146
      %2180 = vst [vmem:[%s2176 + $0x21] sm:$0xff] %v2147
      %2181 = vst [vmem:[%s2176 + $0x31] sm:$0xff] %v2148
      %2182 = vst [vmem:[%s2176 + $0x39] sm:$0xff] %v2149
      %2183 = vst [vmem:[%s2176 + $0x49] sm:$0xff] %v2150
      %2184 = vst [vmem:[%s2176 + $0x51] sm:$0xff] %v2151
      %2185 = vst [vmem:[%s2176 + $0x61] sm:$0xff] %v2152
      %2186 = vst [vmem:[%s2176 + $0x69] sm:$0xff] %v2153
      %2187 = vst [vmem:[%s2176 + $0x79] sm:$0xff] %v2154
      %2188 = vst [vmem:[%s2176 + $0x81] sm:$0xff] %v2155
      %2189 = vst [vmem:[%s2176 + $0x91] sm:$0xff] %v2156
      %2190 = vst [vmem:[%s2176 + $0x99] sm:$0xff] %v2157
      %2191 = vst [vmem:[%s2176 + $0xa9] sm:$0xff] %v2158
      %2192 = vst [vmem:[%s2176 + $0xb1] sm:$0xff] %v2159
      %2193 = vst [vmem:[%s2176 + $0xc1] sm:$0xff] %v2160
      %2194 = vst [vmem:[%s2176 + $0xc9] sm:$0xff] %v2161
      %2195 = vst [vmem:[%s2176 + $0xd9] sm:$0xff] %v2162
      %2196 = vst [vmem:[%s2176 + $0xe1] sm:$0xff] %v2163
      %2197 = vst [vmem:[%s2176 + $0xf1] sm:$0xff] %v2164
      %2198 = vst [vmem:[%s2176 + $0xf9] sm:$0xff] %v2165
      %2199 = vst [vmem:[%s2176 + $0x109] sm:$0xff] %v2166
      %2200 = vst [vmem:[%s2176 + $0x111] sm:$0xff] %v2167
      %2201 = vst [vmem:[%s2176 + $0x121] sm:$0xff] %v2168
      %2202 = vst [vmem:[%s2176 + $0x129] sm:$0xff] %v2169
      %2203 = vst [vmem:[%s2176 + $0x139] sm:$0xff] %v2170
      %2204 = vst [vmem:[%s2176 + $0x141] sm:$0xff] %v2171
      %2205 = vst [vmem:[%s2176 + $0x151] sm:$0xff] %v2172
      %2206 = vst [vmem:[%s2176 + $0x159] sm:$0xff] %v2173
      %2207 = vst [vmem:[%s2176 + $0x169] sm:$0xff] %v2174
      %2208 = vst [vmem:[%s2176 + $0x171] sm:$0xff] %v2175
      %2209 = vst [vmem:[%s2176 - $0x1] sm:$0x2] %v2144
      %2210 = vst [vmem:[%s2176 + $0x17] sm:$0x2] %v2146
      %2211 = vst [vmem:[%s2176 + $0x2f] sm:$0x2] %v2148
      %2212 = vst [vmem:[%s2176 + $0x47] sm:$0x2] %v2150
      %2213 = vst [vmem:[%s2176 + $0x5f] sm:$0x2] %v2152
      %2214 = vst [vmem:[%s2176 + $0x77] sm:$0x2] %v2154
      %2215 = vst [vmem:[%s2176 + $0x8f] sm:$0x2] %v2156
      %2216 = vst [vmem:[%s2176 + $0xa7] sm:$0x2] %v2158
      %2217 = vst [vmem:[%s2176 + $0xbf] sm:$0x2] %v2160
      %2218 = vst [vmem:[%s2176 + $0xd7] sm:$0x2] %v2162
      %2219 = vst [vmem:[%s2176 + $0xef] sm:$0x2] %v2164
      %2220 = vst [vmem:[%s2176 + $0x107] sm:$0x2] %v2166
      %2221 = vst [vmem:[%s2176 + $0x11f] sm:$0x2] %v2168
      %2222 = vst [vmem:[%s2176 + $0x137] sm:$0x2] %v2170
      %2223 = vst [vmem:[%s2176 + $0x14f] sm:$0x2] %v2172
      %2224 = vst [vmem:[%s2176 + $0x167] sm:$0x2] %v2174
      %2225 = vst [vmem:[%s2176 + $0xb] sm:$0x40] %v2145
      %2226 = vst [vmem:[%s2176 + $0x23] sm:$0x40] %v2147
      %2227 = vst [vmem:[%s2176 + $0x3b] sm:$0x40] %v2149
      %2228 = vst [vmem:[%s2176 + $0x53] sm:$0x40] %v2151
      %2229 = vst [vmem:[%s2176 + $0x6b] sm:$0x40] %v2153
      %2230 = vst [vmem:[%s2176 + $0x83] sm:$0x40] %v2155
      %2231 = vst [vmem:[%s2176 + $0x9b] sm:$0x40] %v2157
      %2232 = vst [vmem:[%s2176 + $0xb3] sm:$0x40] %v2159
      %2233 = vst [vmem:[%s2176 + $0xcb] sm:$0x40] %v2161
      %2234 = vst [vmem:[%s2176 + $0xe3] sm:$0x40] %v2163
      %2235 = vst [vmem:[%s2176 + $0xfb] sm:$0x40] %v2165
      %2236 = vst [vmem:[%s2176 + $0x113] sm:$0x40] %v2167
      %2237 = vst [vmem:[%s2176 + $0x12b] sm:$0x40] %v2169
      %2238 = vst [vmem:[%s2176 + $0x143] sm:$0x40] %v2171
      %2239 = vst [vmem:[%s2176 + $0x15b] sm:$0x40] %v2173
      %2240 = vst [vmem:[%s2176 + $0x173] sm:$0x40] %v2175
      %s2241 = scalar_lea.vmem [#allocation2], 48
      %v2242 = vld [vmem:[%s2241] sm:$0xff]
      %v2243 = vld [vmem:[%s2241 + $0x8] sm:$0xff]
      %v2244 = vld [vmem:[%s2241 + $0x10] sm:$0x3]
      %2245 = vst [vmem:[#allocation2] sm:$0xff] %v2242
      %2246 = vst [vmem:[#allocation2 + $0x8] sm:$0xff] %v2243
      %2247 = vst [vmem:[#allocation2 + $0x10] sm:$0x3] %v2244
      %s2248 = scalar_lea.vmem [#allocation2], 360
      %v2249 = vld [vmem:[%s2248] sm:$0xff]
      %v2250 = vld [vmem:[%s2248 + $0x8] sm:$0xff]
      %v2251 = vld [vmem:[%s2248 + $0x10] sm:$0x3]
      %s2252 = scalar_lea.vmem [#allocation2], 408
      %2253 = vst [vmem:[%s2252] sm:$0xff] %v2249
      %2254 = vst [vmem:[%s2252 + $0x8] sm:$0xff] %v2250
      %2255 = vst [vmem:[%s2252 + $0x10] sm:$0x3] %v2251
      %v2256 = vld [vmem:[#allocation2] sm:$0xff]
      %v2257 = vld [vmem:[#allocation2 + $0x8] sm:$0xff]
      %v2258 = vld [vmem:[#allocation2 + $0x10] sm:$0x3]
      %v2259 = vld [vmem:[#allocation2 + $0x18] sm:$0xff]
      %v2260 = vld [vmem:[#allocation2 + $0x20] sm:$0xff]
      %v2261 = vld [vmem:[#allocation2 + $0x28] sm:$0x3]
      %v2262 = vld [vmem:[#allocation2 + $0x30] sm:$0xff]
      %v2263 = vld [vmem:[#allocation2 + $0x38] sm:$0xff]
      %v2264 = vld [vmem:[#allocation2 + $0x40] sm:$0x3]
      %v2265 = vld [vmem:[#allocation2 + $0x48] sm:$0xff]
      %v2266 = vld [vmem:[#allocation2 + $0x50] sm:$0xff]
      %v2267 = vld [vmem:[#allocation2 + $0x58] sm:$0x3]
      %v2268 = vld [vmem:[#allocation2 + $0x60] sm:$0xff]
      %v2269 = vld [vmem:[#allocation2 + $0x68] sm:$0xff]
      %v2270 = vld [vmem:[#allocation2 + $0x70] sm:$0x3]
      %v2271 = vld [vmem:[#allocation2 + $0x78] sm:$0xff]
      %v2272 = vld [vmem:[#allocation2 + $0x80] sm:$0xff]
      %v2273 = vld [vmem:[#allocation2 + $0x88] sm:$0x3]
      %v2274 = vld [vmem:[#allocation2 + $0x90] sm:$0xff]
      %v2275 = vld [vmem:[#allocation2 + $0x98] sm:$0xff]
      %v2276 = vld [vmem:[#allocation2 + $0xa0] sm:$0x3]
      %v2277 = vld [vmem:[#allocation2 + $0xa8] sm:$0xff]
      %v2278 = vld [vmem:[#allocation2 + $0xb0] sm:$0xff]
      %v2279 = vld [vmem:[#allocation2 + $0xb8] sm:$0x3]
      %v2280 = vld [vmem:[#allocation2 + $0xc0] sm:$0xff]
      %v2281 = vld [vmem:[#allocation2 + $0xc8] sm:$0xff]
      %v2282 = vld [vmem:[#allocation2 + $0xd0] sm:$0x3]
      %v2283 = vld [vmem:[#allocation2 + $0xd8] sm:$0xff]
      %v2284 = vld [vmem:[#allocation2 + $0xe0] sm:$0xff]
      %v2285 = vld [vmem:[#allocation2 + $0xe8] sm:$0x3]
      %v2286 = vld [vmem:[#allocation2 + $0xf0] sm:$0xff]
      %v2287 = vld [vmem:[#allocation2 + $0xf8] sm:$0xff]
      %v2288 = vld [vmem:[#allocation2 + $0x100] sm:$0x3]
      %v2289 = vld [vmem:[#allocation2 + $0x108] sm:$0xff]
      %v2290 = vld [vmem:[#allocation2 + $0x110] sm:$0xff]
      %v2291 = vld [vmem:[#allocation2 + $0x118] sm:$0x3]
      %v2292 = vld [vmem:[#allocation2 + $0x120] sm:$0xff]
      %v2293 = vld [vmem:[#allocation2 + $0x128] sm:$0xff]
      %v2294 = vld [vmem:[#allocation2 + $0x130] sm:$0x3]
      %v2295 = vld [vmem:[#allocation2 + $0x138] sm:$0xff]
      %v2296 = vld [vmem:[#allocation2 + $0x140] sm:$0xff]
      %v2297 = vld [vmem:[#allocation2 + $0x148] sm:$0x3]
      %v2298 = vld [vmem:[#allocation2 + $0x150] sm:$0xff]
      %v2299 = vld [vmem:[#allocation2 + $0x158] sm:$0xff]
      %v2300 = vld [vmem:[#allocation2 + $0x160] sm:$0x3]
      %v2301 = vld [vmem:[#allocation2 + $0x168] sm:$0xff]
      %v2302 = vld [vmem:[#allocation2 + $0x170] sm:$0xff]
      %v2303 = vld [vmem:[#allocation2 + $0x178] sm:$0x3]
      %v2304 = vld [vmem:[#allocation2 + $0x180] sm:$0xff]
      %v2305 = vld [vmem:[#allocation2 + $0x188] sm:$0xff]
      %v2306 = vld [vmem:[#allocation2 + $0x190] sm:$0x3]
      %v2307 = vld [vmem:[#allocation2 + $0x198] sm:$0xff]
      %v2308 = vld [vmem:[#allocation2 + $0x1a0] sm:$0xff]
      %v2309 = vld [vmem:[#allocation2 + $0x1a8] sm:$0x3]
      %v2310 = vpack.c.bf16 %v2257, %v2256
      %v2311 = vpack.c.bf16 %v2260, %v2259
      %v2312 = vpack.c.bf16 %v2263, %v2262
      %v2313 = vpack.c.bf16 %v2266, %v2265
      %v2314 = vpack.c.bf16 %v2269, %v2268
      %v2315 = vpack.c.bf16 %v2272, %v2271
      %v2316 = vpack.c.bf16 %v2275, %v2274
      %v2317 = vpack.c.bf16 %v2278, %v2277
      %v2318 = vpack.c.bf16 %v2281, %v2280
      %v2319 = vpack.c.bf16 %v2284, %v2283
      %v2320 = vpack.c.bf16 %v2287, %v2286
      %v2321 = vpack.c.bf16 %v2290, %v2289
      %v2322 = vpack.c.bf16 %v2293, %v2292
      %v2323 = vpack.c.bf16 %v2296, %v2295
      %v2324 = vpack.c.bf16 %v2299, %v2298
      %v2325 = vpack.c.bf16 %v2302, %v2301
      %v2374 = vrot.slane %v2256, 1
      %v2375 = vrot.slane %v2257, 1
      %v2376 = vsel %vm290, %v2374, %v2375
      %v2377 = vrot.slane %v2258, 1
      %v2378 = vsel %vm290, %v2375, %v2377
      %v2379 = vrot.slane %v2259, 1
      %v2380 = vrot.slane %v2260, 1
      %v2381 = vsel %vm290, %v2379, %v2380
      %v2382 = vrot.slane %v2261, 1
      %v2383 = vsel %vm290, %v2380, %v2382
      %v2384 = vrot.slane %v2262, 1
      %v2385 = vrot.slane %v2263, 1
      %v2386 = vsel %vm290, %v2384, %v2385
      %v2387 = vrot.slane %v2264, 1
      %v2388 = vsel %vm290, %v2385, %v2387
      %v2389 = vrot.slane %v2265, 1
      %v2390 = vrot.slane %v2266, 1
      %v2391 = vsel %vm290, %v2389, %v2390
      %v2392 = vrot.slane %v2267, 1
      %v2393 = vsel %vm290, %v2390, %v2392
      %v2394 = vrot.slane %v2268, 1
      %v2395 = vrot.slane %v2269, 1
      %v2396 = vsel %vm290, %v2394, %v2395
      %v2397 = vrot.slane %v2270, 1
      %v2398 = vsel %vm290, %v2395, %v2397
      %v2399 = vrot.slane %v2271, 1
      %v2400 = vrot.slane %v2272, 1
      %v2401 = vsel %vm290, %v2399, %v2400
      %v2402 = vrot.slane %v2273, 1
      %v2403 = vsel %vm290, %v2400, %v2402
      %v2404 = vrot.slane %v2274, 1
      %v2405 = vrot.slane %v2275, 1
      %v2406 = vsel %vm290, %v2404, %v2405
      %v2407 = vrot.slane %v2276, 1
      %v2408 = vsel %vm290, %v2405, %v2407
      %v2409 = vrot.slane %v2277, 1
      %v2410 = vrot.slane %v2278, 1
      %v2411 = vsel %vm290, %v2409, %v2410
      %v2412 = vrot.slane %v2279, 1
      %v2413 = vsel %vm290, %v2410, %v2412
      %v2414 = vrot.slane %v2280, 1
      %v2415 = vrot.slane %v2281, 1
      %v2416 = vsel %vm290, %v2414, %v2415
      %v2417 = vrot.slane %v2282, 1
      %v2418 = vsel %vm290, %v2415, %v2417
      %v2419 = vrot.slane %v2283, 1
      %v2420 = vrot.slane %v2284, 1
      %v2421 = vsel %vm290, %v2419, %v2420
      %v2422 = vrot.slane %v2285, 1
      %v2423 = vsel %vm290, %v2420, %v2422
      %v2424 = vrot.slane %v2286, 1
      %v2425 = vrot.slane %v2287, 1
      %v2426 = vsel %vm290, %v2424, %v2425
      %v2427 = vrot.slane %v2288, 1
      %v2428 = vsel %vm290, %v2425, %v2427
      %v2429 = vrot.slane %v2289, 1
      %v2430 = vrot.slane %v2290, 1
      %v2431 = vsel %vm290, %v2429, %v2430
      %v2432 = vrot.slane %v2291, 1
      %v2433 = vsel %vm290, %v2430, %v2432
      %v2434 = vrot.slane %v2292, 1
      %v2435 = vrot.slane %v2293, 1
      %v2436 = vsel %vm290, %v2434, %v2435
      %v2437 = vrot.slane %v2294, 1
      %v2438 = vsel %vm290, %v2435, %v2437
      %v2439 = vrot.slane %v2295, 1
      %v2440 = vrot.slane %v2296, 1
      %v2441 = vsel %vm290, %v2439, %v2440
      %v2442 = vrot.slane %v2297, 1
      %v2443 = vsel %vm290, %v2440, %v2442
      %v2444 = vrot.slane %v2298, 1
      %v2445 = vrot.slane %v2299, 1
      %v2446 = vsel %vm290, %v2444, %v2445
      %v2447 = vrot.slane %v2300, 1
      %v2448 = vsel %vm290, %v2445, %v2447
      %v2449 = vrot.slane %v2301, 1
      %v2450 = vrot.slane %v2302, 1
      %v2451 = vsel %vm290, %v2449, %v2450
      %v2452 = vrot.slane %v2303, 1
      %v2453 = vsel %vm290, %v2450, %v2452
      %v2486 = vpack.c.bf16 %v2378, %v2376
      %v2487 = vpack.c.bf16 %v2383, %v2381
      %v2488 = vpack.c.bf16 %v2388, %v2386
      %v2489 = vpack.c.bf16 %v2393, %v2391
      %v2490 = vpack.c.bf16 %v2398, %v2396
      %v2491 = vpack.c.bf16 %v2403, %v2401
      %v2492 = vpack.c.bf16 %v2408, %v2406
      %v2493 = vpack.c.bf16 %v2413, %v2411
      %v2494 = vpack.c.bf16 %v2418, %v2416
      %v2495 = vpack.c.bf16 %v2423, %v2421
      %v2496 = vpack.c.bf16 %v2428, %v2426
      %v2497 = vpack.c.bf16 %v2433, %v2431
      %v2498 = vpack.c.bf16 %v2438, %v2436
      %v2499 = vpack.c.bf16 %v2443, %v2441
      %v2500 = vpack.c.bf16 %v2448, %v2446
      %v2501 = vpack.c.bf16 %v2453, %v2451
      %v2502 = vrot.slane %v2256, 2
      %v2503 = vrot.slane %v2257, 2
      %v2504 = vsel %vm419, %v2502, %v2503
      %v2505 = vrot.slane %v2258, 2
      %v2506 = vsel %vm419, %v2503, %v2505
      %v2507 = vrot.slane %v2259, 2
      %v2508 = vrot.slane %v2260, 2
      %v2509 = vsel %vm419, %v2507, %v2508
      %v2510 = vrot.slane %v2261, 2
      %v2511 = vsel %vm419, %v2508, %v2510
      %v2512 = vrot.slane %v2262, 2
      %v2513 = vrot.slane %v2263, 2
      %v2514 = vsel %vm419, %v2512, %v2513
      %v2515 = vrot.slane %v2264, 2
      %v2516 = vsel %vm419, %v2513, %v2515
      %v2517 = vrot.slane %v2265, 2
      %v2518 = vrot.slane %v2266, 2
      %v2519 = vsel %vm419, %v2517, %v2518
      %v2520 = vrot.slane %v2267, 2
      %v2521 = vsel %vm419, %v2518, %v2520
      %v2522 = vrot.slane %v2268, 2
      %v2523 = vrot.slane %v2269, 2
      %v2524 = vsel %vm419, %v2522, %v2523
      %v2525 = vrot.slane %v2270, 2
      %v2526 = vsel %vm419, %v2523, %v2525
      %v2527 = vrot.slane %v2271, 2
      %v2528 = vrot.slane %v2272, 2
      %v2529 = vsel %vm419, %v2527, %v2528
      %v2530 = vrot.slane %v2273, 2
      %v2531 = vsel %vm419, %v2528, %v2530
      %v2532 = vrot.slane %v2274, 2
      %v2533 = vrot.slane %v2275, 2
      %v2534 = vsel %vm419, %v2532, %v2533
      %v2535 = vrot.slane %v2276, 2
      %v2536 = vsel %vm419, %v2533, %v2535
      %v2537 = vrot.slane %v2277, 2
      %v2538 = vrot.slane %v2278, 2
      %v2539 = vsel %vm419, %v2537, %v2538
      %v2540 = vrot.slane %v2279, 2
      %v2541 = vsel %vm419, %v2538, %v2540
      %v2542 = vrot.slane %v2280, 2
      %v2543 = vrot.slane %v2281, 2
      %v2544 = vsel %vm419, %v2542, %v2543
      %v2545 = vrot.slane %v2282, 2
      %v2546 = vsel %vm419, %v2543, %v2545
      %v2547 = vrot.slane %v2283, 2
      %v2548 = vrot.slane %v2284, 2
      %v2549 = vsel %vm419, %v2547, %v2548
      %v2550 = vrot.slane %v2285, 2
      %v2551 = vsel %vm419, %v2548, %v2550
      %v2552 = vrot.slane %v2286, 2
      %v2553 = vrot.slane %v2287, 2
      %v2554 = vsel %vm419, %v2552, %v2553
      %v2555 = vrot.slane %v2288, 2
      %v2556 = vsel %vm419, %v2553, %v2555
      %v2557 = vrot.slane %v2289, 2
      %v2558 = vrot.slane %v2290, 2
      %v2559 = vsel %vm419, %v2557, %v2558
      %v2560 = vrot.slane %v2291, 2
      %v2561 = vsel %vm419, %v2558, %v2560
      %v2562 = vrot.slane %v2292, 2
      %v2563 = vrot.slane %v2293, 2
      %v2564 = vsel %vm419, %v2562, %v2563
      %v2565 = vrot.slane %v2294, 2
      %v2566 = vsel %vm419, %v2563, %v2565
      %v2567 = vrot.slane %v2295, 2
      %v2568 = vrot.slane %v2296, 2
      %v2569 = vsel %vm419, %v2567, %v2568
      %v2570 = vrot.slane %v2297, 2
      %v2571 = vsel %vm419, %v2568, %v2570
      %v2572 = vrot.slane %v2298, 2
      %v2573 = vrot.slane %v2299, 2
      %v2574 = vsel %vm419, %v2572, %v2573
      %v2575 = vrot.slane %v2300, 2
      %v2576 = vsel %vm419, %v2573, %v2575
      %v2577 = vrot.slane %v2301, 2
      %v2578 = vrot.slane %v2302, 2
      %v2579 = vsel %vm419, %v2577, %v2578
      %v2580 = vrot.slane %v2303, 2
      %v2581 = vsel %vm419, %v2578, %v2580
      %v2614 = vpack.c.bf16 %v2506, %v2504
      %v2615 = vpack.c.bf16 %v2511, %v2509
      %v2616 = vpack.c.bf16 %v2516, %v2514
      %v2617 = vpack.c.bf16 %v2521, %v2519
      %v2618 = vpack.c.bf16 %v2526, %v2524
      %v2619 = vpack.c.bf16 %v2531, %v2529
      %v2620 = vpack.c.bf16 %v2536, %v2534
      %v2621 = vpack.c.bf16 %v2541, %v2539
      %v2622 = vpack.c.bf16 %v2546, %v2544
      %v2623 = vpack.c.bf16 %v2551, %v2549
      %v2624 = vpack.c.bf16 %v2556, %v2554
      %v2625 = vpack.c.bf16 %v2561, %v2559
      %v2626 = vpack.c.bf16 %v2566, %v2564
      %v2627 = vpack.c.bf16 %v2571, %v2569
      %v2628 = vpack.c.bf16 %v2576, %v2574
      %v2629 = vpack.c.bf16 %v2581, %v2579
      %v2630 = vpack.c.bf16 %v2305, %v2304
      %v2634 = vrot.slane %v2304, 1
      %v2635 = vrot.slane %v2305, 1
      %v2636 = vsel %vm290, %v2634, %v2635
      %v2637 = vrot.slane %v2306, 1
      %v2638 = vsel %vm290, %v2635, %v2637
      %v2641 = vpack.c.bf16 %v2638, %v2636
      %v2642 = vrot.slane %v2304, 2
      %v2643 = vrot.slane %v2305, 2
      %v2644 = vsel %vm419, %v2642, %v2643
      %v2645 = vrot.slane %v2306, 2
      %v2646 = vsel %vm419, %v2643, %v2645
      %v2649 = vpack.c.bf16 %v2646, %v2644
      %v2650 = vpack.c.bf16 %v2308, %v2307
      %v2654 = vrot.slane %v2307, 1
      %v2655 = vrot.slane %v2308, 1
      %v2656 = vsel %vm290, %v2654, %v2655
      %v2657 = vrot.slane %v2309, 1
      %v2658 = vsel %vm290, %v2655, %v2657
      %v2661 = vpack.c.bf16 %v2658, %v2656
      %v2662 = vrot.slane %v2307, 2
      %v2663 = vrot.slane %v2308, 2
      %v2664 = vsel %vm419, %v2662, %v2663
      %v2665 = vrot.slane %v2309, 2
      %v2666 = vsel %vm419, %v2663, %v2665
      %v2669 = vpack.c.bf16 %v2666, %v2664
      %v2670 = vld [vmem:[%s2] sm:$0xf]
      %v2671 = vld [vmem:[%s2 + $0x4] sm:$0xf]
      %v2672 = vld [vmem:[%s2 + $0x8] sm:$0xf]
      %v2673 = vld [vmem:[%s2 + $0xc] sm:$0xf]
      %v2674 = vld [vmem:[%s2 + $0x10] sm:$0xf]
      %v2675 = vld [vmem:[%s2 + $0x14] sm:$0xf]
      %v2676 = vld [vmem:[%s2 + $0x18] sm:$0xf]
      %v2677 = vld [vmem:[%s2 + $0x1c] sm:$0xf]
      %v2678 = vld [vmem:[%s2 + $0x20] sm:$0xf]
      %v2679 = vld [vmem:[%s2 + $0x24] sm:$0xf]
      %v2680 = vld [vmem:[%s2 + $0x28] sm:$0xf]
      %v2681 = vld [vmem:[%s2 + $0x2c] sm:$0xf]
      %v2682 = vld [vmem:[%s2 + $0x30] sm:$0xf]
      %v2683 = vld [vmem:[%s2 + $0x34] sm:$0xf]
      %v2684 = vld [vmem:[%s2 + $0x38] sm:$0xf]
      %v2685 = vld [vmem:[%s2 + $0x3c] sm:$0xf]
      %v2686 = vld [vmem:[%s2 + $0x40] sm:$0xf]
      %v2687 = vld [vmem:[%s2 + $0x44] sm:$0xf]
      %v2688 = vld [vmem:[%s2 + $0x48] sm:$0xf]
      %v2689 = vld [vmem:[%s2 + $0x4c] sm:$0xf]
      %v2690 = vld [vmem:[%s2 + $0x50] sm:$0xf]
      %v2691 = vld [vmem:[%s2 + $0x54] sm:$0xf]
      %v2692 = vld [vmem:[%s2 + $0x58] sm:$0xf]
      %v2693 = vld [vmem:[%s2 + $0x5c] sm:$0xf]
      %v2694 = vld [vmem:[%s2 + $0x60] sm:$0xf]
      %v2695 = vld [vmem:[%s2 + $0x64] sm:$0xf]
      %v2696 = vld [vmem:[%s2 + $0x68] sm:$0xf]
      %v2697 = vld [vmem:[%s2 + $0x6c] sm:$0xf]
      %v2698 = vld [vmem:[%s2 + $0x70] sm:$0xf]
      %v2699 = vld [vmem:[%s2 + $0x74] sm:$0xf]
      %v2700 = vld [vmem:[%s2 + $0x78] sm:$0xf]
      %v2701 = vld [vmem:[%s2 + $0x7c] sm:$0xf]
      %v2702 = vld [vmem:[%s2 + $0x80] sm:$0xf]
      %v2703 = vld [vmem:[%s2 + $0x84] sm:$0xf]
      %v2704 = vld [vmem:[%s2 + $0x88] sm:$0xf]
      %v2705 = vld [vmem:[%s2 + $0x8c] sm:$0xf]
      %v2706 = vld [vmem:[%s2 + $0x90] sm:$0xf]
      %v2707 = vld [vmem:[%s2 + $0x94] sm:$0xf]
      %v2708 = vld [vmem:[%s2 + $0x98] sm:$0xf]
      %v2709 = vld [vmem:[%s2 + $0x9c] sm:$0xf]
      %v2710 = vld [vmem:[%s2 + $0xa0] sm:$0xf]
      %v2711 = vld [vmem:[%s2 + $0xa4] sm:$0xf]
      %v2712 = vld [vmem:[%s2 + $0xa8] sm:$0xf]
      %v2713 = vld [vmem:[%s2 + $0xac] sm:$0xf]
      %v2714 = vld [vmem:[%s2 + $0xb0] sm:$0xf]
      %v2715 = vld [vmem:[%s2 + $0xb4] sm:$0xf]
      %v2716 = vld [vmem:[%s2 + $0xb8] sm:$0xf]
      %v2717 = vld [vmem:[%s2 + $0xbc] sm:$0xf]
      %v2718 = vld [vmem:[%s2 + $0xc0] sm:$0xf]
      %v2719 = vld [vmem:[%s2 + $0xc4] sm:$0xf]
      %v2720 = vld [vmem:[%s2 + $0xc8] sm:$0xf]
      %v2721 = vld [vmem:[%s2 + $0xcc] sm:$0xf]
      %v2722 = vld [vmem:[%s2 + $0xd0] sm:$0xf]
      %v2723 = vld [vmem:[%s2 + $0xd4] sm:$0xf]
      %v2724 = vld [vmem:[%s2 + $0xd8] sm:$0xf]
      %v2725 = vld [vmem:[%s2 + $0xdc] sm:$0xf]
      %v2726 = vld [vmem:[%s2 + $0xe0] sm:$0xf]
      %v2727 = vld [vmem:[%s2 + $0xe4] sm:$0xf]
      %v2728 = vld [vmem:[%s2 + $0xe8] sm:$0xf]
      %v2729 = vld [vmem:[%s2 + $0xec] sm:$0xf]
      %v2730 = vld [vmem:[%s2 + $0xf0] sm:$0xf]
      %v2731 = vld [vmem:[%s2 + $0xf4] sm:$0xf]
      %v2732 = vld [vmem:[%s2 + $0xf8] sm:$0xf]
      %v2733 = vld [vmem:[%s2 + $0xfc] sm:$0xf]
      %v2734 = vld [vmem:[%s2 + $0x100] sm:$0xf]
      %v2735 = vld [vmem:[%s2 + $0x104] sm:$0xf]
      %v2736 = vld [vmem:[%s2 + $0x108] sm:$0xf]
      %v2737 = vld [vmem:[%s2 + $0x10c] sm:$0xf]
      %v2738 = vld [vmem:[%s2 + $0x110] sm:$0xf]
      %v2739 = vld [vmem:[%s2 + $0x114] sm:$0xf]
      %v2740 = vld [vmem:[%s2 + $0x118] sm:$0xf]
      %v2741 = vld [vmem:[%s2 + $0x11c] sm:$0xf]
      %v2742 = vld [vmem:[%s2 + $0x120] sm:$0xf]
      %v2743 = vld [vmem:[%s2 + $0x124] sm:$0xf]
      %v2744 = vld [vmem:[%s2 + $0x128] sm:$0xf]
      %v2745 = vld [vmem:[%s2 + $0x12c] sm:$0xf]
      %v2746 = vld [vmem:[%s2 + $0x130] sm:$0xf]
      %v2747 = vld [vmem:[%s2 + $0x134] sm:$0xf]
      %v2748 = vld [vmem:[%s2 + $0x138] sm:$0xf]
      %v2749 = vld [vmem:[%s2 + $0x13c] sm:$0xf]
      %v2750 = vld [vmem:[%s2 + $0x140] sm:$0xf]
      %v2751 = vld [vmem:[%s2 + $0x144] sm:$0xf]
      %v2752 = vld [vmem:[%s2 + $0x148] sm:$0xf]
      %v2753 = vld [vmem:[%s2 + $0x14c] sm:$0xf]
      %v2754 = vld [vmem:[%s2 + $0x150] sm:$0xf]
      %v2755 = vld [vmem:[%s2 + $0x154] sm:$0xf]
      %v2756 = vld [vmem:[%s2 + $0x158] sm:$0xf]
      %v2757 = vld [vmem:[%s2 + $0x15c] sm:$0xf]
      %v2758 = vld [vmem:[%s2 + $0x160] sm:$0xf]
      %v2759 = vld [vmem:[%s2 + $0x164] sm:$0xf]
      %v2760 = vld [vmem:[%s2 + $0x168] sm:$0xf]
      %v2761 = vld [vmem:[%s2 + $0x16c] sm:$0xf]
      %v2762 = vld [vmem:[%s2 + $0x170] sm:$0xf]
      %v2763 = vld [vmem:[%s2 + $0x174] sm:$0xf]
      %v2764 = vld [vmem:[%s2 + $0x178] sm:$0xf]
      %v2765 = vld [vmem:[%s2 + $0x17c] sm:$0xf]
      %v2766 = vld [vmem:[%s2 + $0x180] sm:$0xf]
      %v2767 = vld [vmem:[%s2 + $0x184] sm:$0xf]
      %v2768 = vld [vmem:[%s2 + $0x188] sm:$0xf]
      %v2769 = vld [vmem:[%s2 + $0x18c] sm:$0xf]
      %v2770 = vld [vmem:[%s2 + $0x190] sm:$0xf]
      %v2771 = vld [vmem:[%s2 + $0x194] sm:$0xf]
      %v2772 = vld [vmem:[%s2 + $0x198] sm:$0xf]
      %v2773 = vld [vmem:[%s2 + $0x19c] sm:$0xf]
      %v2774 = vld [vmem:[%s2 + $0x1a0] sm:$0xf]
      %v2775 = vld [vmem:[%s2 + $0x1a4] sm:$0xf]
      %v2776 = vld [vmem:[%s2 + $0x1a8] sm:$0xf]
      %v2777 = vld [vmem:[%s2 + $0x1ac] sm:$0xf]
      %v2778 = vld [vmem:[%s2 + $0x1b0] sm:$0xf]
      %v2779 = vld [vmem:[%s2 + $0x1b4] sm:$0xf]
      %v2780 = vld [vmem:[%s2 + $0x1b8] sm:$0xf]
      %v2781 = vld [vmem:[%s2 + $0x1bc] sm:$0xf]
      %v2782 = vld [vmem:[%s2 + $0x1c0] sm:$0xf]
      %v2783 = vld [vmem:[%s2 + $0x1c4] sm:$0xf]
      %v2784 = vld [vmem:[%s2 + $0x1c8] sm:$0xf]
      %v2785 = vld [vmem:[%s2 + $0x1cc] sm:$0xf]
      %v2786 = vld [vmem:[%s2 + $0x1d0] sm:$0xf]
      %v2787 = vld [vmem:[%s2 + $0x1d4] sm:$0xf]
      %v2788 = vld [vmem:[%s2 + $0x1d8] sm:$0xf]
      %v2789 = vld [vmem:[%s2 + $0x1dc] sm:$0xf]
      %v2790 = vld [vmem:[%s2 + $0x1e0] sm:$0xf]
      %v2791 = vld [vmem:[%s2 + $0x1e4] sm:$0xf]
      %v2792 = vld [vmem:[%s2 + $0x1e8] sm:$0xf]
      %v2793 = vld [vmem:[%s2 + $0x1ec] sm:$0xf]
      %v2794 = vld [vmem:[%s2 + $0x1f0] sm:$0xf]
      %v2795 = vld [vmem:[%s2 + $0x1f4] sm:$0xf]
      %v2796 = vld [vmem:[%s2 + $0x1f8] sm:$0xf]
      %v2797 = vld [vmem:[%s2 + $0x1fc] sm:$0xf]
      %v2798 = vld [vmem:[%s2 + $0x200] sm:$0xf]
      %v2799 = vld [vmem:[%s2 + $0x204] sm:$0xf]
      %v2800 = vld [vmem:[%s2 + $0x208] sm:$0xf]
      %v2801 = vld [vmem:[%s2 + $0x20c] sm:$0xf]
      %v2802 = vld [vmem:[%s2 + $0x210] sm:$0xf]
      %v2803 = vld [vmem:[%s2 + $0x214] sm:$0xf]
      %v2804 = vld [vmem:[%s2 + $0x218] sm:$0xf]
      %v2805 = vld [vmem:[%s2 + $0x21c] sm:$0xf]
      %v2806 = vld [vmem:[%s2 + $0x220] sm:$0xf]
      %v2807 = vld [vmem:[%s2 + $0x224] sm:$0xf]
      %v2808 = vld [vmem:[%s2 + $0x228] sm:$0xf]
      %v2809 = vld [vmem:[%s2 + $0x22c] sm:$0xf]
      %v2810 = vld [vmem:[%s2 + $0x230] sm:$0xf]
      %v2811 = vld [vmem:[%s2 + $0x234] sm:$0xf]
      %v2812 = vld [vmem:[%s2 + $0x238] sm:$0xf]
      %v2813 = vld [vmem:[%s2 + $0x23c] sm:$0xf]
      %v2958 = vunpack.c.l.b16 %v2670
      %v2959 = vunpack.c.l.b16 %v2671
      %v2960 = vunpack.c.l.b16 %v2672
      %v2961 = vunpack.c.l.b16 %v2673
      %v2962 = vunpack.c.l.b16 %v2674
      %v2963 = vunpack.c.l.b16 %v2675
      %v2964 = vunpack.c.l.b16 %v2676
      %v2965 = vunpack.c.l.b16 %v2677
      %v2966 = vunpack.c.l.b16 %v2678
      %v2967 = vunpack.c.l.b16 %v2679
      %v2968 = vunpack.c.l.b16 %v2680
      %v2969 = vunpack.c.l.b16 %v2681
      %v2970 = vunpack.c.l.b16 %v2682
      %v2971 = vunpack.c.l.b16 %v2683
      %v2972 = vunpack.c.l.b16 %v2684
      %v2973 = vunpack.c.l.b16 %v2685
      %v2974 = vunpack.c.l.b16 %v2686
      %v2975 = vunpack.c.l.b16 %v2687
      %v2976 = vunpack.c.l.b16 %v2688
      %v2977 = vunpack.c.l.b16 %v2689
      %v2978 = vunpack.c.l.b16 %v2690
      %v2979 = vunpack.c.l.b16 %v2691
      %v2980 = vunpack.c.l.b16 %v2692
      %v2981 = vunpack.c.l.b16 %v2693
      %v2982 = vunpack.c.l.b16 %v2694
      %v2983 = vunpack.c.l.b16 %v2695
      %v2984 = vunpack.c.l.b16 %v2696
      %v2985 = vunpack.c.l.b16 %v2697
      %v2986 = vunpack.c.l.b16 %v2698
      %v2987 = vunpack.c.l.b16 %v2699
      %v2988 = vunpack.c.l.b16 %v2700
      %v2989 = vunpack.c.l.b16 %v2701
      %v2990 = vunpack.c.l.b16 %v2702
      %v2991 = vunpack.c.l.b16 %v2703
      %v2992 = vunpack.c.l.b16 %v2704
      %v2993 = vunpack.c.l.b16 %v2705
      %v2994 = vunpack.c.l.b16 %v2706
      %v2995 = vunpack.c.l.b16 %v2707
      %v2996 = vunpack.c.l.b16 %v2708
      %v2997 = vunpack.c.l.b16 %v2709
      %v2998 = vunpack.c.l.b16 %v2710
      %v2999 = vunpack.c.l.b16 %v2711
      %v3000 = vunpack.c.l.b16 %v2712
      %v3001 = vunpack.c.l.b16 %v2713
      %v3002 = vunpack.c.l.b16 %v2714
      %v3003 = vunpack.c.l.b16 %v2715
      %v3004 = vunpack.c.l.b16 %v2716
      %v3005 = vunpack.c.l.b16 %v2717
      %v3006 = vunpack.c.l.b16 %v2718
      %v3007 = vunpack.c.l.b16 %v2719
      %v3008 = vunpack.c.l.b16 %v2720
      %v3009 = vunpack.c.l.b16 %v2721
      %v3010 = vunpack.c.l.b16 %v2722
      %v3011 = vunpack.c.l.b16 %v2723
      %v3012 = vunpack.c.l.b16 %v2724
      %v3013 = vunpack.c.l.b16 %v2725
      %v3014 = vunpack.c.l.b16 %v2726
      %v3015 = vunpack.c.l.b16 %v2727
      %v3016 = vunpack.c.l.b16 %v2728
      %v3017 = vunpack.c.l.b16 %v2729
      %v3018 = vunpack.c.l.b16 %v2730
      %v3019 = vunpack.c.l.b16 %v2731
      %v3020 = vunpack.c.l.b16 %v2732
      %v3021 = vunpack.c.l.b16 %v2733
      %v3022 = vunpack.c.l.b16 %v2734
      %v3023 = vunpack.c.l.b16 %v2735
      %v3024 = vunpack.c.l.b16 %v2736
      %v3025 = vunpack.c.l.b16 %v2737
      %v3026 = vunpack.c.l.b16 %v2738
      %v3027 = vunpack.c.l.b16 %v2739
      %v3028 = vunpack.c.l.b16 %v2740
      %v3029 = vunpack.c.l.b16 %v2741
      %v3030 = vunpack.c.l.b16 %v2742
      %v3031 = vunpack.c.l.b16 %v2743
      %v3032 = vunpack.c.l.b16 %v2744
      %v3033 = vunpack.c.l.b16 %v2745
      %v3034 = vunpack.c.l.b16 %v2746
      %v3035 = vunpack.c.l.b16 %v2747
      %v3036 = vunpack.c.l.b16 %v2748
      %v3037 = vunpack.c.l.b16 %v2749
      %v3038 = vunpack.c.l.b16 %v2750
      %v3039 = vunpack.c.l.b16 %v2751
      %v3040 = vunpack.c.l.b16 %v2752
      %v3041 = vunpack.c.l.b16 %v2753
      %v3042 = vunpack.c.l.b16 %v2754
      %v3043 = vunpack.c.l.b16 %v2755
      %v3044 = vunpack.c.l.b16 %v2756
      %v3045 = vunpack.c.l.b16 %v2757
      %v3046 = vunpack.c.l.b16 %v2758
      %v3047 = vunpack.c.l.b16 %v2759
      %v3048 = vunpack.c.l.b16 %v2760
      %v3049 = vunpack.c.l.b16 %v2761
      %v3050 = vunpack.c.l.b16 %v2762
      %v3051 = vunpack.c.l.b16 %v2763
      %v3052 = vunpack.c.l.b16 %v2764
      %v3053 = vunpack.c.l.b16 %v2765
      %v3054 = vunpack.c.l.b16 %v2766
      %v3055 = vunpack.c.l.b16 %v2767
      %v3056 = vunpack.c.l.b16 %v2768
      %v3057 = vunpack.c.l.b16 %v2769
      %v3058 = vunpack.c.l.b16 %v2770
      %v3059 = vunpack.c.l.b16 %v2771
      %v3060 = vunpack.c.l.b16 %v2772
      %v3061 = vunpack.c.l.b16 %v2773
      %v3062 = vunpack.c.l.b16 %v2774
      %v3063 = vunpack.c.l.b16 %v2775
      %v3064 = vunpack.c.l.b16 %v2776
      %v3065 = vunpack.c.l.b16 %v2777
      %v3066 = vunpack.c.l.b16 %v2778
      %v3067 = vunpack.c.l.b16 %v2779
      %v3068 = vunpack.c.l.b16 %v2780
      %v3069 = vunpack.c.l.b16 %v2781
      %v3070 = vunpack.c.l.b16 %v2782
      %v3071 = vunpack.c.l.b16 %v2783
      %v3072 = vunpack.c.l.b16 %v2784
      %v3073 = vunpack.c.l.b16 %v2785
      %v3074 = vunpack.c.l.b16 %v2786
      %v3075 = vunpack.c.l.b16 %v2787
      %v3076 = vunpack.c.l.b16 %v2788
      %v3077 = vunpack.c.l.b16 %v2789
      %v3078 = vunpack.c.l.b16 %v2790
      %v3079 = vunpack.c.l.b16 %v2791
      %v3080 = vunpack.c.l.b16 %v2792
      %v3081 = vunpack.c.l.b16 %v2793
      %v3082 = vunpack.c.l.b16 %v2794
      %v3083 = vunpack.c.l.b16 %v2795
      %v3084 = vunpack.c.l.b16 %v2796
      %v3085 = vunpack.c.l.b16 %v2797
      %v3086 = vunpack.c.l.b16 %v2798
      %v3087 = vunpack.c.l.b16 %v2799
      %v3088 = vunpack.c.l.b16 %v2800
      %v3089 = vunpack.c.l.b16 %v2801
      %v3090 = vunpack.c.l.b16 %v2802
      %v3091 = vunpack.c.l.b16 %v2803
      %v3092 = vunpack.c.l.b16 %v2804
      %v3093 = vunpack.c.l.b16 %v2805
      %v3094 = vunpack.c.l.b16 %v2806
      %v3095 = vunpack.c.l.b16 %v2807
      %v3096 = vunpack.c.l.b16 %v2808
      %v3097 = vunpack.c.l.b16 %v2809
      %v3098 = vunpack.c.l.b16 %v2810
      %v3099 = vunpack.c.l.b16 %v2811
      %v3100 = vunpack.c.l.b16 %v2812
      %v3101 = vunpack.c.l.b16 %v2813
      %v3102 = vpack.c.b16 %v2959, %v2958
      %v3103 = vpack.c.b16 %v2961, %v2960
      %v3104 = vpack.c.b16 %v2963, %v2962
      %v3105 = vpack.c.b16 %v2965, %v2964
      %v3106 = vpack.c.b16 %v2967, %v2966
      %v3107 = vpack.c.b16 %v2969, %v2968
      %v3108 = vpack.c.b16 %v2971, %v2970
      %v3109 = vpack.c.b16 %v2973, %v2972
      %v3110 = vpack.c.b16 %v2975, %v2974
      %v3111 = vpack.c.b16 %v2977, %v2976
      %v3112 = vpack.c.b16 %v2979, %v2978
      %v3113 = vpack.c.b16 %v2981, %v2980
      %v3114 = vpack.c.b16 %v2983, %v2982
      %v3115 = vpack.c.b16 %v2985, %v2984
      %v3116 = vpack.c.b16 %v2987, %v2986
      %v3117 = vpack.c.b16 %v2989, %v2988
      %v3118 = vpack.c.b16 %v2991, %v2990
      %v3119 = vpack.c.b16 %v2993, %v2992
      %v3120 = vpack.c.b16 %v2995, %v2994
      %v3121 = vpack.c.b16 %v2997, %v2996
      %v3122 = vpack.c.b16 %v2999, %v2998
      %v3123 = vpack.c.b16 %v3001, %v3000
      %v3124 = vpack.c.b16 %v3003, %v3002
      %v3125 = vpack.c.b16 %v3005, %v3004
      %v3126 = vpack.c.b16 %v3007, %v3006
      %v3127 = vpack.c.b16 %v3009, %v3008
      %v3128 = vpack.c.b16 %v3011, %v3010
      %v3129 = vpack.c.b16 %v3013, %v3012
      %v3130 = vpack.c.b16 %v3015, %v3014
      %v3131 = vpack.c.b16 %v3017, %v3016
      %v3132 = vpack.c.b16 %v3019, %v3018
      %v3133 = vpack.c.b16 %v3021, %v3020
      %v3134 = vpack.c.b16 %v3023, %v3022
      %v3135 = vpack.c.b16 %v3025, %v3024
      %v3136 = vpack.c.b16 %v3027, %v3026
      %v3137 = vpack.c.b16 %v3029, %v3028
      %v3138 = vpack.c.b16 %v3031, %v3030
      %v3139 = vpack.c.b16 %v3033, %v3032
      %v3140 = vpack.c.b16 %v3035, %v3034
      %v3141 = vpack.c.b16 %v3037, %v3036
      %v3142 = vpack.c.b16 %v3039, %v3038
      %v3143 = vpack.c.b16 %v3041, %v3040
      %v3144 = vpack.c.b16 %v3043, %v3042
      %v3145 = vpack.c.b16 %v3045, %v3044
      %v3146 = vpack.c.b16 %v3047, %v3046
      %v3147 = vpack.c.b16 %v3049, %v3048
      %v3148 = vpack.c.b16 %v3051, %v3050
      %v3149 = vpack.c.b16 %v3053, %v3052
      %v3150 = vpack.c.b16 %v3055, %v3054
      %v3151 = vpack.c.b16 %v3057, %v3056
      %v3152 = vpack.c.b16 %v3059, %v3058
      %v3153 = vpack.c.b16 %v3061, %v3060
      %v3154 = vpack.c.b16 %v3063, %v3062
      %v3155 = vpack.c.b16 %v3065, %v3064
      %v3156 = vpack.c.b16 %v3067, %v3066
      %v3157 = vpack.c.b16 %v3069, %v3068
      %v3158 = vpack.c.b16 %v3071, %v3070
      %v3159 = vpack.c.b16 %v3073, %v3072
      %v3160 = vpack.c.b16 %v3075, %v3074
      %v3161 = vpack.c.b16 %v3077, %v3076
      %v3162 = vpack.c.b16 %v3079, %v3078
      %v3163 = vpack.c.b16 %v3081, %v3080
      %v3164 = vpack.c.b16 %v3083, %v3082
      %v3165 = vpack.c.b16 %v3085, %v3084
      %v3166 = vpack.c.b16 %v3087, %v3086
      %v3167 = vpack.c.b16 %v3089, %v3088
      %v3168 = vpack.c.b16 %v3091, %v3090
      %v3169 = vpack.c.b16 %v3093, %v3092
      %v3170 = vpack.c.b16 %v3095, %v3094
      %v3171 = vpack.c.b16 %v3097, %v3096
      %v3172 = vpack.c.b16 %v3099, %v3098
      %v3173 = vpack.c.b16 %v3101, %v3100
      %3246 = vmatprep.subr.bf16.mxu0 0
      %3247 = vmatpush1.bf16.msra.mxu0 %v3102
      %3248 = vmatprep.subr.bf16.mxu0 0
      %3249 = vmatpush1.bf16.msra.mxu0 %v3103
      %3250 = vmatprep.subr.bf16.mxu0 0
      %3251 = vmatpush1.bf16.msra.mxu0 %v3104
      %3252 = vmatprep.subr.bf16.mxu0 0
      %3253 = vmatpush1.bf16.msra.mxu0 %v3105
      %3254 = vmatprep.subr.bf16.mxu0 0
      %3255 = vmatpush1.bf16.msra.mxu0 %v3106
      %3256 = vmatprep.subr.bf16.mxu0 0
      %3257 = vmatpush1.bf16.msra.mxu0 %v3107
      %3258 = vmatprep.subr.bf16.mxu0 0
      %3259 = vmatpush1.bf16.msra.mxu0 %v3108
      %3260 = vmatprep.subr.bf16.mxu0 0
      %3261 = vmatpush1.bf16.msra.mxu0 %v3109
      %3262 = vmatprep.subr.bf16.mxu0 0
      %3263 = vmatpush1.bf16.msra.mxu0 %v3110
      %3264 = vmatprep.subr.bf16.mxu0 0
      %3265 = vmatpush1.bf16.msra.mxu0 %v3111
      %3266 = vmatprep.subr.bf16.mxu0 0
      %3267 = vmatpush1.bf16.msra.mxu0 %v3112
      %3268 = vmatprep.subr.bf16.mxu0 0
      %3269 = vmatpush1.bf16.msra.mxu0 %v3113
      %3270 = vmatprep.subr.bf16.mxu0 0
      %3271 = vmatpush1.bf16.msra.mxu0 %v3114
      %3272 = vmatprep.subr.bf16.mxu0 0
      %3273 = vmatpush1.bf16.msra.mxu0 %v3115
      %3274 = vmatprep.subr.bf16.mxu0 0
      %3275 = vmatpush1.bf16.msra.mxu0 %v3116
      %3276 = vmatprep.subr.bf16.mxu0 0
      %3277 = vmatpush1.bf16.msra.mxu0 %v3117
      %3278 = vmatprep.mubr.bf16.mxu0 %v2486
      %3279 = vmatmul.mubr.bf16.gmra.mrb[0].mxu0 %v2310
      %v3280 = vpop.f32.mrb[0].mxu0
      %v3281 = vadd.f32 0.0, %v3280
      %v3282 = vpop.f32.mrb[0].mxu0
      %v3283 = vpop.f32.mrb[0].mxu0
      %v3284 = vadd.f32 0.0, %v3283
      %v3285 = vpop.f32.mrb[0].mxu0
      %3286 = vmatprep.mubr.bf16.mxu0 %v2487
      %3287 = vmatmul.mubr.bf16.gmra.mrb[0].mxu0 %v2311
      %v3288 = vpop.f32.mrb[0].mxu0
      %v3289 = vadd.f32 0.0, %v3288
      %v3290 = vpop.f32.mrb[0].mxu0
      %v3291 = vpop.f32.mrb[0].mxu0
      %v3292 = vadd.f32 0.0, %v3291
      %v3293 = vpop.f32.mrb[0].mxu0
      %3294 = vmatprep.mubr.bf16.mxu0 %v2488
      %3295 = vmatmul.mubr.bf16.gmra.mrb[0].mxu0 %v2312
      %v3296 = vpop.f32.mrb[0].mxu0
      %v3297 = vadd.f32 0.0, %v3296
      %v3298 = vpop.f32.mrb[0].mxu0
      %v3299 = vpop.f32.mrb[0].mxu0
      %v3300 = vadd.f32 0.0, %v3299
      %v3301 = vpop.f32.mrb[0].mxu0
      %3302 = vmatprep.mubr.bf16.mxu0 %v2489
      %3303 = vmatmul.mubr.bf16.gmra.mrb[0].mxu0 %v2313
      %v3304 = vpop.f32.mrb[0].mxu0
      %v3305 = vadd.f32 0.0, %v3304
      %v3306 = vpop.f32.mrb[0].mxu0
      %v3307 = vpop.f32.mrb[0].mxu0
      %v3308 = vadd.f32 0.0, %v3307
      %v3309 = vpop.f32.mrb[0].mxu0
      %3310 = vmatprep.mubr.bf16.mxu0 %v2490
      %3311 = vmatmul.mubr.bf16.gmra.mrb[0].mxu0 %v2314
      %v3312 = vpop.f32.mrb[0].mxu0
      %v3313 = vadd.f32 0.0, %v3312
      %v3314 = vpop.f32.mrb[0].mxu0
      %v3315 = vpop.f32.mrb[0].mxu0
      %v3316 = vadd.f32 0.0, %v3315
      %v3317 = vpop.f32.mrb[0].mxu0
      %3318 = vmatprep.mubr.bf16.mxu0 %v2491
      %3319 = vmatmul.mubr.bf16.gmra.mrb[0].mxu0 %v2315
      %v3320 = vpop.f32.mrb[0].mxu0
      %v3321 = vadd.f32 0.0, %v3320
      %v3322 = vpop.f32.mrb[0].mxu0
      %v3323 = vpop.f32.mrb[0].mxu0
      %v3324 = vadd.f32 0.0, %v3323
      %v3325 = vpop.f32.mrb[0].mxu0
      %3326 = vmatprep.mubr.bf16.mxu0 %v2492
      %3327 = vmatmul.mubr.bf16.gmra.mrb[0].mxu0 %v2316
      %v3328 = vpop.f32.mrb[0].mxu0
      %v3329 = vadd.f32 0.0, %v3328
      %v3330 = vpop.f32.mrb[0].mxu0
      %v3331 = vpop.f32.mrb[0].mxu0
      %v3332 = vadd.f32 0.0, %v3331
      %v3333 = vpop.f32.mrb[0].mxu0
      %3334 = vmatprep.mubr.bf16.mxu0 %v2493
      %3335 = vmatmul.mubr.bf16.gmra.mrb[0].mxu0 %v2317
      %v3336 = vpop.f32.mrb[0].mxu0
      %v3337 = vadd.f32 0.0, %v3336
      %v3338 = vpop.f32.mrb[0].mxu0
      %v3339 = vpop.f32.mrb[0].mxu0
      %v3340 = vadd.f32 0.0, %v3339
      %v3341 = vpop.f32.mrb[0].mxu0
      %3342 = vmatprep.mubr.bf16.mxu0 %v2494
      %3343 = vmatmul.mubr.bf16.gmra.mrb[0].mxu0 %v2318
      %v3344 = vpop.f32.mrb[0].mxu0
      %v3345 = vadd.f32 0.0, %v3344
      %v3346 = vpop.f32.mrb[0].mxu0
      %v3347 = vpop.f32.mrb[0].mxu0
      %v3348 = vadd.f32 0.0, %v3347
      %v3349 = vpop.f32.mrb[0].mxu0
      %3350 = vmatprep.mubr.bf16.mxu0 %v2495
      %3351 = vmatmul.mubr.bf16.gmra.mrb[0].mxu0 %v2319
      %v3352 = vpop.f32.mrb[0].mxu0
      %v3353 = vadd.f32 0.0, %v3352
      %v3354 = vpop.f32.mrb[0].mxu0
      %v3355 = vpop.f32.mrb[0].mxu0
      %v3356 = vadd.f32 0.0, %v3355
      %v3357 = vpop.f32.mrb[0].mxu0
      %3358 = vmatprep.mubr.bf16.mxu0 %v2496
      %3359 = vmatmul.mubr.bf16.gmra.mrb[0].mxu0 %v2320
      %v3360 = vpop.f32.mrb[0].mxu0
      %v3361 = vadd.f32 0.0, %v3360
      %v3362 = vpop.f32.mrb[0].mxu0
      %v3363 = vpop.f32.mrb[0].mxu0
      %v3364 = vadd.f32 0.0, %v3363
      %v3365 = vpop.f32.mrb[0].mxu0
      %3366 = vmatprep.mubr.bf16.mxu0 %v2497
      %3367 = vmatmul.mubr.bf16.gmra.mrb[0].mxu0 %v2321
      %v3368 = vpop.f32.mrb[0].mxu0
      %v3369 = vadd.f32 0.0, %v3368
      %v3370 = vpop.f32.mrb[0].mxu0
      %v3371 = vpop.f32.mrb[0].mxu0
      %v3372 = vadd.f32 0.0, %v3371
      %v3373 = vpop.f32.mrb[0].mxu0
      %3374 = vmatprep.mubr.bf16.mxu0 %v2498
      %3375 = vmatmul.mubr.bf16.gmra.mrb[0].mxu0 %v2322
      %v3376 = vpop.f32.mrb[0].mxu0
      %v3377 = vadd.f32 0.0, %v3376
      %v3378 = vpop.f32.mrb[0].mxu0
      %v3379 = vpop.f32.mrb[0].mxu0
      %v3380 = vadd.f32 0.0, %v3379
      %v3381 = vpop.f32.mrb[0].mxu0
      %3382 = vmatprep.mubr.bf16.mxu0 %v2499
      %3383 = vmatmul.mubr.bf16.gmra.mrb[0].mxu0 %v2323
      %v3384 = vpop.f32.mrb[0].mxu0
      %v3385 = vadd.f32 0.0, %v3384
      %v3386 = vpop.f32.mrb[0].mxu0
      %v3387 = vpop.f32.mrb[0].mxu0
      %v3388 = vadd.f32 0.0, %v3387
      %v3389 = vpop.f32.mrb[0].mxu0
      %3390 = vmatprep.mubr.bf16.mxu0 %v2500
      %3391 = vmatmul.mubr.bf16.gmra.mrb[0].mxu0 %v2324
      %v3392 = vpop.f32.mrb[0].mxu0
      %v3393 = vadd.f32 0.0, %v3392
      %v3394 = vpop.f32.mrb[0].mxu0
      %v3395 = vpop.f32.mrb[0].mxu0
      %v3396 = vadd.f32 0.0, %v3395
      %v3397 = vpop.f32.mrb[0].mxu0
      %3398 = vmatprep.mubr.bf16.mxu0 %v2501
      %3399 = vmatmul.mubr.bf16.gmra.mrb[0].mxu0 %v2325
      %v3400 = vpop.f32.mrb[0].mxu0
      %v3401 = vadd.f32 0.0, %v3400
      %v3402 = vpop.f32.mrb[0].mxu0
      %v3403 = vpop.f32.mrb[0].mxu0
      %v3404 = vadd.f32 0.0, %v3403
      %v3405 = vpop.f32.mrb[0].mxu0
      %3406 = vdwg.mxu0
      %3407 = vmatprep.subr.bf16.mxu0 0
      %3408 = vmatpush1.bf16.msra.mxu0 %v3118
      %3409 = vmatprep.subr.bf16.mxu0 0
      %3410 = vmatpush1.bf16.msra.mxu0 %v3119
      %3411 = vmatprep.subr.bf16.mxu0 0
      %3412 = vmatpush1.bf16.msra.mxu0 %v3120
      %3413 = vmatprep.subr.bf16.mxu0 0
      %3414 = vmatpush1.bf16.msra.mxu0 %v3121
      %3415 = vmatprep.subr.bf16.mxu0 0
      %3416 = vmatpush1.bf16.msra.mxu0 %v3122
      %3417 = vmatprep.subr.bf16.mxu0 0
      %3418 = vmatpush1.bf16.msra.mxu0 %v3123
      %3419 = vmatprep.subr.bf16.mxu0 0
      %3420 = vmatpush1.bf16.msra.mxu0 %v3124
      %3421 = vmatprep.subr.bf16.mxu0 0
      %3422 = vmatpush1.bf16.msra.mxu0 %v3125
      %3423 = vmatprep.subr.bf16.mxu0 0
      %3424 = vmatpush1.bf16.msra.mxu0 %v3126
      %3425 = vmatprep.subr.bf16.mxu0 0
      %3426 = vmatpush1.bf16.msra.mxu0 %v3127
      %3427 = vmatprep.subr.bf16.mxu0 0
      %3428 = vmatpush1.bf16.msra.mxu0 %v3128
      %3429 = vmatprep.subr.bf16.mxu0 0
      %3430 = vmatpush1.bf16.msra.mxu0 %v3129
      %3431 = vmatprep.subr.bf16.mxu0 0
      %3432 = vmatpush1.bf16.msra.mxu0 %v3130
      %3433 = vmatprep.subr.bf16.mxu0 0
      %3434 = vmatpush1.bf16.msra.mxu0 %v3131
      %3435 = vmatprep.subr.bf16.mxu0 0
      %3436 = vmatpush1.bf16.msra.mxu0 %v3132
      %3437 = vmatprep.subr.bf16.mxu0 0
      %3438 = vmatpush1.bf16.msra.mxu0 %v3133
      %3439 = vmatprep.mubr.bf16.mxu0 %v2311
      %3440 = vmatmul.mubr.bf16.gmra.mrb[0].mxu0 %v2614
      %v3441 = vpop.f32.mrb[0].mxu0
      %v3442 = vadd.f32 %v3281, %v3441
      %v3443 = vpop.f32.mrb[0].mxu0
      %v3444 = vpop.f32.mrb[0].mxu0
      %v3445 = vadd.f32 %v3284, %v3444
      %v3446 = vpop.f32.mrb[0].mxu0
      %3447 = vmatprep.mubr.bf16.mxu0 %v2312
      %3448 = vmatmul.mubr.bf16.gmra.mrb[0].mxu0 %v2615
      %v3449 = vpop.f32.mrb[0].mxu0
      %v3450 = vadd.f32 %v3289, %v3449
      %v3451 = vpop.f32.mrb[0].mxu0
      %v3452 = vpop.f32.mrb[0].mxu0
      %v3453 = vadd.f32 %v3292, %v3452
      %v3454 = vpop.f32.mrb[0].mxu0
      %3455 = vmatprep.mubr.bf16.mxu0 %v2313
      %3456 = vmatmul.mubr.bf16.gmra.mrb[0].mxu0 %v2616
      %v3457 = vpop.f32.mrb[0].mxu0
      %v3458 = vadd.f32 %v3297, %v3457
      %v3459 = vpop.f32.mrb[0].mxu0
      %v3460 = vpop.f32.mrb[0].mxu0
      %v3461 = vadd.f32 %v3300, %v3460
      %v3462 = vpop.f32.mrb[0].mxu0
      %3463 = vmatprep.mubr.bf16.mxu0 %v2314
      %3464 = vmatmul.mubr.bf16.gmra.mrb[0].mxu0 %v2617
      %v3465 = vpop.f32.mrb[0].mxu0
      %v3466 = vadd.f32 %v3305, %v3465
      %v3467 = vpop.f32.mrb[0].mxu0
      %v3468 = vpop.f32.mrb[0].mxu0
      %v3469 = vadd.f32 %v3308, %v3468
      %v3470 = vpop.f32.mrb[0].mxu0
      %3471 = vmatprep.mubr.bf16.mxu0 %v2315
      %3472 = vmatmul.mubr.bf16.gmra.mrb[0].mxu0 %v2618
      %v3473 = vpop.f32.mrb[0].mxu0
      %v3474 = vadd.f32 %v3313, %v3473
      %v3475 = vpop.f32.mrb[0].mxu0
      %v3476 = vpop.f32.mrb[0].mxu0
      %v3477 = vadd.f32 %v3316, %v3476
      %v3478 = vpop.f32.mrb[0].mxu0
      %3479 = vmatprep.mubr.bf16.mxu0 %v2316
      %3480 = vmatmul.mubr.bf16.gmra.mrb[0].mxu0 %v2619
      %v3481 = vpop.f32.mrb[0].mxu0
      %v3482 = vadd.f32 %v3321, %v3481
      %v3483 = vpop.f32.mrb[0].mxu0
      %v3484 = vpop.f32.mrb[0].mxu0
      %v3485 = vadd.f32 %v3324, %v3484
      %v3486 = vpop.f32.mrb[0].mxu0
      %3487 = vmatprep.mubr.bf16.mxu0 %v2317
      %3488 = vmatmul.mubr.bf16.gmra.mrb[0].mxu0 %v2620
      %v3489 = vpop.f32.mrb[0].mxu0
      %v3490 = vadd.f32 %v3329, %v3489
      %v3491 = vpop.f32.mrb[0].mxu0
      %v3492 = vpop.f32.mrb[0].mxu0
      %v3493 = vadd.f32 %v3332, %v3492
      %v3494 = vpop.f32.mrb[0].mxu0
      %3495 = vmatprep.mubr.bf16.mxu0 %v2318
      %3496 = vmatmul.mubr.bf16.gmra.mrb[0].mxu0 %v2621
      %v3497 = vpop.f32.mrb[0].mxu0
      %v3498 = vadd.f32 %v3337, %v3497
      %v3499 = vpop.f32.mrb[0].mxu0
      %v3500 = vpop.f32.mrb[0].mxu0
      %v3501 = vadd.f32 %v3340, %v3500
      %v3502 = vpop.f32.mrb[0].mxu0
      %3503 = vmatprep.mubr.bf16.mxu0 %v2319
      %3504 = vmatmul.mubr.bf16.gmra.mrb[0].mxu0 %v2622
      %v3505 = vpop.f32.mrb[0].mxu0
      %v3506 = vadd.f32 %v3345, %v3505
      %v3507 = vpop.f32.mrb[0].mxu0
      %v3508 = vpop.f32.mrb[0].mxu0
      %v3509 = vadd.f32 %v3348, %v3508
      %v3510 = vpop.f32.mrb[0].mxu0
      %3511 = vmatprep.mubr.bf16.mxu0 %v2320
      %3512 = vmatmul.mubr.bf16.gmra.mrb[0].mxu0 %v2623
      %v3513 = vpop.f32.mrb[0].mxu0
      %v3514 = vadd.f32 %v3353, %v3513
      %v3515 = vpop.f32.mrb[0].mxu0
      %v3516 = vpop.f32.mrb[0].mxu0
      %v3517 = vadd.f32 %v3356, %v3516
      %v3518 = vpop.f32.mrb[0].mxu0
      %3519 = vmatprep.mubr.bf16.mxu0 %v2321
      %3520 = vmatmul.mubr.bf16.gmra.mrb[0].mxu0 %v2624
      %v3521 = vpop.f32.mrb[0].mxu0
      %v3522 = vadd.f32 %v3361, %v3521
      %v3523 = vpop.f32.mrb[0].mxu0
      %v3524 = vpop.f32.mrb[0].mxu0
      %v3525 = vadd.f32 %v3364, %v3524
      %v3526 = vpop.f32.mrb[0].mxu0
      %3527 = vmatprep.mubr.bf16.mxu0 %v2322
      %3528 = vmatmul.mubr.bf16.gmra.mrb[0].mxu0 %v2625
      %v3529 = vpop.f32.mrb[0].mxu0
      %v3530 = vadd.f32 %v3369, %v3529
      %v3531 = vpop.f32.mrb[0].mxu0
      %v3532 = vpop.f32.mrb[0].mxu0
      %v3533 = vadd.f32 %v3372, %v3532
      %v3534 = vpop.f32.mrb[0].mxu0
      %3535 = vmatprep.mubr.bf16.mxu0 %v2323
      %3536 = vmatmul.mubr.bf16.gmra.mrb[0].mxu0 %v2626
      %v3537 = vpop.f32.mrb[0].mxu0
      %v3538 = vadd.f32 %v3377, %v3537
      %v3539 = vpop.f32.mrb[0].mxu0
      %v3540 = vpop.f32.mrb[0].mxu0
      %v3541 = vadd.f32 %v3380, %v3540
      %v3542 = vpop.f32.mrb[0].mxu0
      %3543 = vmatprep.mubr.bf16.mxu0 %v2324
      %3544 = vmatmul.mubr.bf16.gmra.mrb[0].mxu0 %v2627
      %v3545 = vpop.f32.mrb[0].mxu0
      %v3546 = vadd.f32 %v3385, %v3545
      %v3547 = vpop.f32.mrb[0].mxu0
      %v3548 = vpop.f32.mrb[0].mxu0
      %v3549 = vadd.f32 %v3388, %v3548
      %v3550 = vpop.f32.mrb[0].mxu0
      %3551 = vmatprep.mubr.bf16.mxu0 %v2325
      %3552 = vmatmul.mubr.bf16.gmra.mrb[0].mxu0 %v2628
      %v3553 = vpop.f32.mrb[0].mxu0
      %v3554 = vadd.f32 %v3393, %v3553
      %v3555 = vpop.f32.mrb[0].mxu0
      %v3556 = vpop.f32.mrb[0].mxu0
      %v3557 = vadd.f32 %v3396, %v3556
      %v3558 = vpop.f32.mrb[0].mxu0
      %3559 = vmatprep.mubr.bf16.mxu0 %v2630
      %3560 = vmatmul.mubr.bf16.gmra.mrb[0].mxu0 %v2629
      %v3561 = vpop.f32.mrb[0].mxu0
      %v3562 = vadd.f32 %v3401, %v3561
      %v3563 = vpop.f32.mrb[0].mxu0
      %v3564 = vpop.f32.mrb[0].mxu0
      %v3565 = vadd.f32 %v3404, %v3564
      %v3566 = vpop.f32.mrb[0].mxu0
      %3567 = vdwg.mxu0
      %3568 = vmatprep.subr.bf16.mxu0 0
      %3569 = vmatpush1.bf16.msra.mxu0 %v3134
      %3570 = vmatprep.subr.bf16.mxu0 0
      %3571 = vmatpush1.bf16.msra.mxu0 %v3135
      %3572 = vmatprep.subr.bf16.mxu0 0
      %3573 = vmatpush1.bf16.msra.mxu0 %v3136
      %3574 = vmatprep.subr.bf16.mxu0 0
      %3575 = vmatpush1.bf16.msra.mxu0 %v3137
      %3576 = vmatprep.subr.bf16.mxu0 0
      %3577 = vmatpush1.bf16.msra.mxu0 %v3138
      %3578 = vmatprep.subr.bf16.mxu0 0
      %3579 = vmatpush1.bf16.msra.mxu0 %v3139
      %3580 = vmatprep.subr.bf16.mxu0 0
      %3581 = vmatpush1.bf16.msra.mxu0 %v3140
      %3582 = vmatprep.subr.bf16.mxu0 0
      %3583 = vmatpush1.bf16.msra.mxu0 %v3141
      %3584 = vmatprep.subr.bf16.mxu0 0
      %3585 = vmatpush1.bf16.msra.mxu0 %v3142
      %3586 = vmatprep.subr.bf16.mxu0 0
      %3587 = vmatpush1.bf16.msra.mxu0 %v3143
      %3588 = vmatprep.subr.bf16.mxu0 0
      %3589 = vmatpush1.bf16.msra.mxu0 %v3144
      %3590 = vmatprep.subr.bf16.mxu0 0
      %3591 = vmatpush1.bf16.msra.mxu0 %v3145
      %3592 = vmatprep.subr.bf16.mxu0 0
      %3593 = vmatpush1.bf16.msra.mxu0 %v3146
      %3594 = vmatprep.subr.bf16.mxu0 0
      %3595 = vmatpush1.bf16.msra.mxu0 %v3147
      %3596 = vmatprep.subr.bf16.mxu0 0
      %3597 = vmatpush1.bf16.msra.mxu0 %v3148
      %3598 = vmatprep.subr.bf16.mxu0 0
      %3599 = vmatpush1.bf16.msra.mxu0 %v3149
      %3600 = vmatprep.mubr.bf16.mxu0 %v2615
      %3601 = vmatmul.mubr.bf16.gmra.mrb[0].mxu0 %v2487
      %v3602 = vpop.f32.mrb[0].mxu0
      %v3603 = vadd.f32 %v3442, %v3602
      %v3604 = vpop.f32.mrb[0].mxu0
      %v3605 = vpop.f32.mrb[0].mxu0
      %v3606 = vadd.f32 %v3445, %v3605
      %v3607 = vpop.f32.mrb[0].mxu0
      %3608 = vmatprep.mubr.bf16.mxu0 %v2616
      %3609 = vmatmul.mubr.bf16.gmra.mrb[0].mxu0 %v2488
      %v3610 = vpop.f32.mrb[0].mxu0
      %v3611 = vadd.f32 %v3450, %v3610
      %v3612 = vpop.f32.mrb[0].mxu0
      %v3613 = vpop.f32.mrb[0].mxu0
      %v3614 = vadd.f32 %v3453, %v3613
      %v3615 = vpop.f32.mrb[0].mxu0
      %3616 = vmatprep.mubr.bf16.mxu0 %v2617
      %3617 = vmatmul.mubr.bf16.gmra.mrb[0].mxu0 %v2489
      %v3618 = vpop.f32.mrb[0].mxu0
      %v3619 = vadd.f32 %v3458, %v3618
      %v3620 = vpop.f32.mrb[0].mxu0
      %v3621 = vpop.f32.mrb[0].mxu0
      %v3622 = vadd.f32 %v3461, %v3621
      %v3623 = vpop.f32.mrb[0].mxu0
      %3624 = vmatprep.mubr.bf16.mxu0 %v2618
      %3625 = vmatmul.mubr.bf16.gmra.mrb[0].mxu0 %v2490
      %v3626 = vpop.f32.mrb[0].mxu0
      %v3627 = vadd.f32 %v3466, %v3626
      %v3628 = vpop.f32.mrb[0].mxu0
      %v3629 = vpop.f32.mrb[0].mxu0
      %v3630 = vadd.f32 %v3469, %v3629
      %v3631 = vpop.f32.mrb[0].mxu0
      %3632 = vmatprep.mubr.bf16.mxu0 %v2619
      %3633 = vmatmul.mubr.bf16.gmra.mrb[0].mxu0 %v2491
      %v3634 = vpop.f32.mrb[0].mxu0
      %v3635 = vadd.f32 %v3474, %v3634
      %v3636 = vpop.f32.mrb[0].mxu0
      %v3637 = vpop.f32.mrb[0].mxu0
      %v3638 = vadd.f32 %v3477, %v3637
      %v3639 = vpop.f32.mrb[0].mxu0
      %3640 = vmatprep.mubr.bf16.mxu0 %v2620
      %3641 = vmatmul.mubr.bf16.gmra.mrb[0].mxu0 %v2492
      %v3642 = vpop.f32.mrb[0].mxu0
      %v3643 = vadd.f32 %v3482, %v3642
      %v3644 = vpop.f32.mrb[0].mxu0
      %v3645 = vpop.f32.mrb[0].mxu0
      %v3646 = vadd.f32 %v3485, %v3645
      %v3647 = vpop.f32.mrb[0].mxu0
      %3648 = vmatprep.mubr.bf16.mxu0 %v2621
      %3649 = vmatmul.mubr.bf16.gmra.mrb[0].mxu0 %v2493
      %v3650 = vpop.f32.mrb[0].mxu0
      %v3651 = vadd.f32 %v3490, %v3650
      %v3652 = vpop.f32.mrb[0].mxu0
      %v3653 = vpop.f32.mrb[0].mxu0
      %v3654 = vadd.f32 %v3493, %v3653
      %v3655 = vpop.f32.mrb[0].mxu0
      %3656 = vmatprep.mubr.bf16.mxu0 %v2622
      %3657 = vmatmul.mubr.bf16.gmra.mrb[0].mxu0 %v2494
      %v3658 = vpop.f32.mrb[0].mxu0
      %v3659 = vadd.f32 %v3498, %v3658
      %v3660 = vpop.f32.mrb[0].mxu0
      %v3661 = vpop.f32.mrb[0].mxu0
      %v3662 = vadd.f32 %v3501, %v3661
      %v3663 = vpop.f32.mrb[0].mxu0
      %3664 = vmatprep.mubr.bf16.mxu0 %v2623
      %3665 = vmatmul.mubr.bf16.gmra.mrb[0].mxu0 %v2495
      %v3666 = vpop.f32.mrb[0].mxu0
      %v3667 = vadd.f32 %v3506, %v3666
      %v3668 = vpop.f32.mrb[0].mxu0
      %v3669 = vpop.f32.mrb[0].mxu0
      %v3670 = vadd.f32 %v3509, %v3669
      %v3671 = vpop.f32.mrb[0].mxu0
      %3672 = vmatprep.mubr.bf16.mxu0 %v2624
      %3673 = vmatmul.mubr.bf16.gmra.mrb[0].mxu0 %v2496
      %v3674 = vpop.f32.mrb[0].mxu0
      %v3675 = vadd.f32 %v3514, %v3674
      %v3676 = vpop.f32.mrb[0].mxu0
      %v3677 = vpop.f32.mrb[0].mxu0
      %v3678 = vadd.f32 %v3517, %v3677
      %v3679 = vpop.f32.mrb[0].mxu0
      %3680 = vmatprep.mubr.bf16.mxu0 %v2625
      %3681 = vmatmul.mubr.bf16.gmra.mrb[0].mxu0 %v2497
      %v3682 = vpop.f32.mrb[0].mxu0
      %v3683 = vadd.f32 %v3522, %v3682
      %v3684 = vpop.f32.mrb[0].mxu0
      %v3685 = vpop.f32.mrb[0].mxu0
      %v3686 = vadd.f32 %v3525, %v3685
      %v3687 = vpop.f32.mrb[0].mxu0
      %3688 = vmatprep.mubr.bf16.mxu0 %v2626
      %3689 = vmatmul.mubr.bf16.gmra.mrb[0].mxu0 %v2498
      %v3690 = vpop.f32.mrb[0].mxu0
      %v3691 = vadd.f32 %v3530, %v3690
      %v3692 = vpop.f32.mrb[0].mxu0
      %v3693 = vpop.f32.mrb[0].mxu0
      %v3694 = vadd.f32 %v3533, %v3693
      %v3695 = vpop.f32.mrb[0].mxu0
      %3696 = vmatprep.mubr.bf16.mxu0 %v2627
      %3697 = vmatmul.mubr.bf16.gmra.mrb[0].mxu0 %v2499
      %v3698 = vpop.f32.mrb[0].mxu0
      %v3699 = vadd.f32 %v3538, %v3698
      %v3700 = vpop.f32.mrb[0].mxu0
      %v3701 = vpop.f32.mrb[0].mxu0
      %v3702 = vadd.f32 %v3541, %v3701
      %v3703 = vpop.f32.mrb[0].mxu0
      %3704 = vmatprep.mubr.bf16.mxu0 %v2628
      %3705 = vmatmul.mubr.bf16.gmra.mrb[0].mxu0 %v2500
      %v3706 = vpop.f32.mrb[0].mxu0
      %v3707 = vadd.f32 %v3546, %v3706
      %v3708 = vpop.f32.mrb[0].mxu0
      %v3709 = vpop.f32.mrb[0].mxu0
      %v3710 = vadd.f32 %v3549, %v3709
      %v3711 = vpop.f32.mrb[0].mxu0
      %3712 = vmatprep.mubr.bf16.mxu0 %v2629
      %3713 = vmatmul.mubr.bf16.gmra.mrb[0].mxu0 %v2501
      %v3714 = vpop.f32.mrb[0].mxu0
      %v3715 = vadd.f32 %v3554, %v3714
      %v3716 = vpop.f32.mrb[0].mxu0
      %v3717 = vpop.f32.mrb[0].mxu0
      %v3718 = vadd.f32 %v3557, %v3717
      %v3719 = vpop.f32.mrb[0].mxu0
      %3720 = vmatprep.mubr.bf16.mxu0 %v2649
      %3721 = vmatmul.mubr.bf16.gmra.mrb[0].mxu0 %v2641
      %v3722 = vpop.f32.mrb[0].mxu0
      %v3723 = vadd.f32 %v3562, %v3722
      %v3724 = vpop.f32.mrb[0].mxu0
      %v3725 = vpop.f32.mrb[0].mxu0
      %v3726 = vadd.f32 %v3565, %v3725
      %v3727 = vpop.f32.mrb[0].mxu0
      %3728 = vdwg.mxu0
      %3729 = vmatprep.subr.bf16.mxu0 0
      %3730 = vmatpush1.bf16.msra.mxu0 %v3150
      %3731 = vmatprep.subr.bf16.mxu0 0
      %3732 = vmatpush1.bf16.msra.mxu0 %v3151
      %3733 = vmatprep.subr.bf16.mxu0 0
      %3734 = vmatpush1.bf16.msra.mxu0 %v3152
      %3735 = vmatprep.subr.bf16.mxu0 0
      %3736 = vmatpush1.bf16.msra.mxu0 %v3153
      %3737 = vmatprep.subr.bf16.mxu0 0
      %3738 = vmatpush1.bf16.msra.mxu0 %v3154
      %3739 = vmatprep.subr.bf16.mxu0 0
      %3740 = vmatpush1.bf16.msra.mxu0 %v3155
      %3741 = vmatprep.subr.bf16.mxu0 0
      %3742 = vmatpush1.bf16.msra.mxu0 %v3156
      %3743 = vmatprep.subr.bf16.mxu0 0
      %3744 = vmatpush1.bf16.msra.mxu0 %v3157
      %3745 = vmatprep.subr.bf16.mxu0 0
      %3746 = vmatpush1.bf16.msra.mxu0 %v3158
      %3747 = vmatprep.subr.bf16.mxu0 0
      %3748 = vmatpush1.bf16.msra.mxu0 %v3159
      %3749 = vmatprep.subr.bf16.mxu0 0
      %3750 = vmatpush1.bf16.msra.mxu0 %v3160
      %3751 = vmatprep.subr.bf16.mxu0 0
      %3752 = vmatpush1.bf16.msra.mxu0 %v3161
      %3753 = vmatprep.subr.bf16.mxu0 0
      %3754 = vmatpush1.bf16.msra.mxu0 %v3162
      %3755 = vmatprep.subr.bf16.mxu0 0
      %3756 = vmatpush1.bf16.msra.mxu0 %v3163
      %3757 = vmatprep.subr.bf16.mxu0 0
      %3758 = vmatpush1.bf16.msra.mxu0 %v3164
      %3759 = vmatprep.subr.bf16.mxu0 0
      %3760 = vmatpush1.bf16.msra.mxu0 %v3165
      %3761 = vmatprep.mubr.bf16.mxu0 %v2488
      %3762 = vmatmul.mubr.bf16.gmra.mrb[0].mxu0 %v2312
      %v3763 = vpop.f32.mrb[0].mxu0
      %v3764 = vadd.f32 %v3603, %v3763
      %v3765 = vpop.f32.mrb[0].mxu0
      %v3766 = vpop.f32.mrb[0].mxu0
      %v3767 = vadd.f32 %v3606, %v3766
      %v3768 = vpop.f32.mrb[0].mxu0
      %3769 = vmatprep.mubr.bf16.mxu0 %v2489
      %3770 = vmatmul.mubr.bf16.gmra.mrb[0].mxu0 %v2313
      %v3771 = vpop.f32.mrb[0].mxu0
      %v3772 = vadd.f32 %v3611, %v3771
      %v3773 = vpop.f32.mrb[0].mxu0
      %v3774 = vpop.f32.mrb[0].mxu0
      %v3775 = vadd.f32 %v3614, %v3774
      %v3776 = vpop.f32.mrb[0].mxu0
      %3777 = vmatprep.mubr.bf16.mxu0 %v2490
      %3778 = vmatmul.mubr.bf16.gmra.mrb[0].mxu0 %v2314
      %v3779 = vpop.f32.mrb[0].mxu0
      %v3780 = vadd.f32 %v3619, %v3779
      %v3781 = vpop.f32.mrb[0].mxu0
      %v3782 = vpop.f32.mrb[0].mxu0
      %v3783 = vadd.f32 %v3622, %v3782
      %v3784 = vpop.f32.mrb[0].mxu0
      %3785 = vmatprep.mubr.bf16.mxu0 %v2491
      %3786 = vmatmul.mubr.bf16.gmra.mrb[0].mxu0 %v2315
      %v3787 = vpop.f32.mrb[0].mxu0
      %v3788 = vadd.f32 %v3627, %v3787
      %v3789 = vpop.f32.mrb[0].mxu0
      %v3790 = vpop.f32.mrb[0].mxu0
      %v3791 = vadd.f32 %v3630, %v3790
      %v3792 = vpop.f32.mrb[0].mxu0
      %3793 = vmatprep.mubr.bf16.mxu0 %v2492
      %3794 = vmatmul.mubr.bf16.gmra.mrb[0].mxu0 %v2316
      %v3795 = vpop.f32.mrb[0].mxu0
      %v3796 = vadd.f32 %v3635, %v3795
      %v3797 = vpop.f32.mrb[0].mxu0
      %v3798 = vpop.f32.mrb[0].mxu0
      %v3799 = vadd.f32 %v3638, %v3798
      %v3800 = vpop.f32.mrb[0].mxu0
      %3801 = vmatprep.mubr.bf16.mxu0 %v2493
      %3802 = vmatmul.mubr.bf16.gmra.mrb[0].mxu0 %v2317
      %v3803 = vpop.f32.mrb[0].mxu0
      %v3804 = vadd.f32 %v3643, %v3803
      %v3805 = vpop.f32.mrb[0].mxu0
      %v3806 = vpop.f32.mrb[0].mxu0
      %v3807 = vadd.f32 %v3646, %v3806
      %v3808 = vpop.f32.mrb[0].mxu0
      %3809 = vmatprep.mubr.bf16.mxu0 %v2494
      %3810 = vmatmul.mubr.bf16.gmra.mrb[0].mxu0 %v2318
      %v3811 = vpop.f32.mrb[0].mxu0
      %v3812 = vadd.f32 %v3651, %v3811
      %v3813 = vpop.f32.mrb[0].mxu0
      %v3814 = vpop.f32.mrb[0].mxu0
      %v3815 = vadd.f32 %v3654, %v3814
      %v3816 = vpop.f32.mrb[0].mxu0
      %3817 = vmatprep.mubr.bf16.mxu0 %v2495
      %3818 = vmatmul.mubr.bf16.gmra.mrb[0].mxu0 %v2319
      %v3819 = vpop.f32.mrb[0].mxu0
      %v3820 = vadd.f32 %v3659, %v3819
      %v3821 = vpop.f32.mrb[0].mxu0
      %v3822 = vpop.f32.mrb[0].mxu0
      %v3823 = vadd.f32 %v3662, %v3822
      %v3824 = vpop.f32.mrb[0].mxu0
      %3825 = vmatprep.mubr.bf16.mxu0 %v2496
      %3826 = vmatmul.mubr.bf16.gmra.mrb[0].mxu0 %v2320
      %v3827 = vpop.f32.mrb[0].mxu0
      %v3828 = vadd.f32 %v3667, %v3827
      %v3829 = vpop.f32.mrb[0].mxu0
      %v3830 = vpop.f32.mrb[0].mxu0
      %v3831 = vadd.f32 %v3670, %v3830
      %v3832 = vpop.f32.mrb[0].mxu0
      %3833 = vmatprep.mubr.bf16.mxu0 %v2497
      %3834 = vmatmul.mubr.bf16.gmra.mrb[0].mxu0 %v2321
      %v3835 = vpop.f32.mrb[0].mxu0
      %v3836 = vadd.f32 %v3675, %v3835
      %v3837 = vpop.f32.mrb[0].mxu0
      %v3838 = vpop.f32.mrb[0].mxu0
      %v3839 = vadd.f32 %v3678, %v3838
      %v3840 = vpop.f32.mrb[0].mxu0
      %3841 = vmatprep.mubr.bf16.mxu0 %v2498
      %3842 = vmatmul.mubr.bf16.gmra.mrb[0].mxu0 %v2322
      %v3843 = vpop.f32.mrb[0].mxu0
      %v3844 = vadd.f32 %v3683, %v3843
      %v3845 = vpop.f32.mrb[0].mxu0
      %v3846 = vpop.f32.mrb[0].mxu0
      %v3847 = vadd.f32 %v3686, %v3846
      %v3848 = vpop.f32.mrb[0].mxu0
      %3849 = vmatprep.mubr.bf16.mxu0 %v2499
      %3850 = vmatmul.mubr.bf16.gmra.mrb[0].mxu0 %v2323
      %v3851 = vpop.f32.mrb[0].mxu0
      %v3852 = vadd.f32 %v3691, %v3851
      %v3853 = vpop.f32.mrb[0].mxu0
      %v3854 = vpop.f32.mrb[0].mxu0
      %v3855 = vadd.f32 %v3694, %v3854
      %v3856 = vpop.f32.mrb[0].mxu0
      %3857 = vmatprep.mubr.bf16.mxu0 %v2500
      %3858 = vmatmul.mubr.bf16.gmra.mrb[0].mxu0 %v2324
      %v3859 = vpop.f32.mrb[0].mxu0
      %v3860 = vadd.f32 %v3699, %v3859
      %v3861 = vpop.f32.mrb[0].mxu0
      %v3862 = vpop.f32.mrb[0].mxu0
      %v3863 = vadd.f32 %v3702, %v3862
      %v3864 = vpop.f32.mrb[0].mxu0
      %3865 = vmatprep.mubr.bf16.mxu0 %v2501
      %3866 = vmatmul.mubr.bf16.gmra.mrb[0].mxu0 %v2325
      %v3867 = vpop.f32.mrb[0].mxu0
      %v3868 = vadd.f32 %v3707, %v3867
      %v3869 = vpop.f32.mrb[0].mxu0
      %v3870 = vpop.f32.mrb[0].mxu0
      %v3871 = vadd.f32 %v3710, %v3870
      %v3872 = vpop.f32.mrb[0].mxu0
      %3873 = vmatprep.mubr.bf16.mxu0 %v2641
      %3874 = vmatmul.mubr.bf16.gmra.mrb[0].mxu0 %v2630
      %v3875 = vpop.f32.mrb[0].mxu0
      %v3876 = vadd.f32 %v3715, %v3875
      %v3877 = vpop.f32.mrb[0].mxu0
      %v3878 = vpop.f32.mrb[0].mxu0
      %v3879 = vadd.f32 %v3718, %v3878
      %v3880 = vpop.f32.mrb[0].mxu0
      %3881 = vmatprep.mubr.bf16.mxu0 %v2661
      %3882 = vmatmul.mubr.bf16.gmra.mrb[0].mxu0 %v2650
      %v3883 = vpop.f32.mrb[0].mxu0
      %v3884 = vadd.f32 %v3723, %v3883
      %v3885 = vpop.f32.mrb[0].mxu0
      %v3886 = vpop.f32.mrb[0].mxu0
      %v3887 = vadd.f32 %v3726, %v3886
      %v3888 = vpop.f32.mrb[0].mxu0
      %3889 = vdwg.mxu0
      %3890 = vmatprep.subr.bf16.mxu0 0
      %3891 = vmatpush1.bf16.msra.mxu0 %v3166
      %3892 = vmatprep.subr.bf16.mxu0 0
      %3893 = vmatpush1.bf16.msra.mxu0 %v3167
      %3894 = vmatprep.subr.bf16.mxu0 0
      %3895 = vmatpush1.bf16.msra.mxu0 %v3168
      %3896 = vmatprep.subr.bf16.mxu0 0
      %3897 = vmatpush1.bf16.msra.mxu0 %v3169
      %3898 = vmatprep.subr.bf16.mxu0 0
      %3899 = vmatpush1.bf16.msra.mxu0 %v3170
      %3900 = vmatprep.subr.bf16.mxu0 0
      %3901 = vmatpush1.bf16.msra.mxu0 %v3171
      %3902 = vmatprep.subr.bf16.mxu0 0
      %3903 = vmatpush1.bf16.msra.mxu0 %v3172
      %3904 = vmatprep.subr.bf16.mxu0 0
      %3905 = vmatpush1.bf16.msra.mxu0 %v3173
      %3906 = vmatprep.subr.bf16.mxu0 0
      %3907 = vmatpush1.bf16.msra.mxu0 0
      %3908 = vmatprep.subr.bf16.mxu0 0
      %3909 = vmatpush1.bf16.msra.mxu0 0
      %3910 = vmatprep.subr.bf16.mxu0 0
      %3911 = vmatpush1.bf16.msra.mxu0 0
      %3912 = vmatprep.subr.bf16.mxu0 0
      %3913 = vmatpush1.bf16.msra.mxu0 0
      %3914 = vmatprep.subr.bf16.mxu0 0
      %3915 = vmatpush1.bf16.msra.mxu0 0
      %3916 = vmatprep.subr.bf16.mxu0 0
      %3917 = vmatpush1.bf16.msra.mxu0 0
      %3918 = vmatprep.subr.bf16.mxu0 0
      %3919 = vmatpush1.bf16.msra.mxu0 0
      %3920 = vmatprep.subr.bf16.mxu0 0
      %3921 = vmatpush1.bf16.msra.mxu0 0
      %3922 = vmatprep.mubr.bf16.mxu0 0
      %3923 = vmatmul.mubr.bf16.gmra.mrb[0].mxu0 %v2616
      %v3924 = vpop.f32.mrb[0].mxu0
      %v3925 = vadd.f32 %v3764, %v3924
      %v3926 = vpop.f32.mrb[0].mxu0
      %v3927 = vpop.f32.mrb[0].mxu0
      %v3928 = vadd.f32 %v3767, %v3927
      %v3929 = vpop.f32.mrb[0].mxu0
      %3930 = vmatprep.mubr.bf16.mxu0 0
      %3931 = vmatmul.mubr.bf16.gmra.mrb[0].mxu0 %v2617
      %v3932 = vpop.f32.mrb[0].mxu0
      %v3933 = vadd.f32 %v3772, %v3932
      %v3934 = vpop.f32.mrb[0].mxu0
      %v3935 = vpop.f32.mrb[0].mxu0
      %v3936 = vadd.f32 %v3775, %v3935
      %v3937 = vpop.f32.mrb[0].mxu0
      %3938 = vmatprep.mubr.bf16.mxu0 0
      %3939 = vmatmul.mubr.bf16.gmra.mrb[0].mxu0 %v2618
      %v3940 = vpop.f32.mrb[0].mxu0
      %v3941 = vadd.f32 %v3780, %v3940
      %v3942 = vpop.f32.mrb[0].mxu0
      %v3943 = vpop.f32.mrb[0].mxu0
      %v3944 = vadd.f32 %v3783, %v3943
      %v3945 = vpop.f32.mrb[0].mxu0
      %3946 = vmatprep.mubr.bf16.mxu0 0
      %3947 = vmatmul.mubr.bf16.gmra.mrb[0].mxu0 %v2619
      %v3948 = vpop.f32.mrb[0].mxu0
      %v3949 = vadd.f32 %v3788, %v3948
      %v3950 = vpop.f32.mrb[0].mxu0
      %v3951 = vpop.f32.mrb[0].mxu0
      %v3952 = vadd.f32 %v3791, %v3951
      %v3953 = vpop.f32.mrb[0].mxu0
      %3954 = vmatprep.mubr.bf16.mxu0 0
      %3955 = vmatmul.mubr.bf16.gmra.mrb[0].mxu0 %v2620
      %v3956 = vpop.f32.mrb[0].mxu0
      %v3957 = vadd.f32 %v3796, %v3956
      %v3958 = vpop.f32.mrb[0].mxu0
      %v3959 = vpop.f32.mrb[0].mxu0
      %v3960 = vadd.f32 %v3799, %v3959
      %v3961 = vpop.f32.mrb[0].mxu0
      %3962 = vmatprep.mubr.bf16.mxu0 0
      %3963 = vmatmul.mubr.bf16.gmra.mrb[0].mxu0 %v2621
      %v3964 = vpop.f32.mrb[0].mxu0
      %v3965 = vadd.f32 %v3804, %v3964
      %v3966 = vpop.f32.mrb[0].mxu0
      %v3967 = vpop.f32.mrb[0].mxu0
      %v3968 = vadd.f32 %v3807, %v3967
      %v3969 = vpop.f32.mrb[0].mxu0
      %3970 = vmatprep.mubr.bf16.mxu0 0
      %3971 = vmatmul.mubr.bf16.gmra.mrb[0].mxu0 %v2622
      %v3972 = vpop.f32.mrb[0].mxu0
      %v3973 = vadd.f32 %v3812, %v3972
      %v3974 = vpop.f32.mrb[0].mxu0
      %v3975 = vpop.f32.mrb[0].mxu0
      %v3976 = vadd.f32 %v3815, %v3975
      %v3977 = vpop.f32.mrb[0].mxu0
      %3978 = vmatprep.mubr.bf16.mxu0 0
      %3979 = vmatmul.mubr.bf16.gmra.mrb[0].mxu0 %v2623
      %v3980 = vpop.f32.mrb[0].mxu0
      %v3981 = vadd.f32 %v3820, %v3980
      %v3982 = vpop.f32.mrb[0].mxu0
      %v3983 = vpop.f32.mrb[0].mxu0
      %v3984 = vadd.f32 %v3823, %v3983
      %v3985 = vpop.f32.mrb[0].mxu0
      %3986 = vmatprep.mubr.bf16.mxu0 0
      %3987 = vmatmul.mubr.bf16.gmra.mrb[0].mxu0 %v2624
      %v3988 = vpop.f32.mrb[0].mxu0
      %v3989 = vadd.f32 %v3828, %v3988
      %v3990 = vpop.f32.mrb[0].mxu0
      %v3991 = vpop.f32.mrb[0].mxu0
      %v3992 = vadd.f32 %v3831, %v3991
      %v3993 = vpop.f32.mrb[0].mxu0
      %3994 = vmatprep.mubr.bf16.mxu0 0
      %3995 = vmatmul.mubr.bf16.gmra.mrb[0].mxu0 %v2625
      %v3996 = vpop.f32.mrb[0].mxu0
      %v3997 = vadd.f32 %v3836, %v3996
      %v3998 = vpop.f32.mrb[0].mxu0
      %v3999 = vpop.f32.mrb[0].mxu0
      %v4000 = vadd.f32 %v3839, %v3999
      %v4001 = vpop.f32.mrb[0].mxu0
      %4002 = vmatprep.mubr.bf16.mxu0 0
      %4003 = vmatmul.mubr.bf16.gmra.mrb[0].mxu0 %v2626
      %v4004 = vpop.f32.mrb[0].mxu0
      %v4005 = vadd.f32 %v3844, %v4004
      %v4006 = vpop.f32.mrb[0].mxu0
      %v4007 = vpop.f32.mrb[0].mxu0
      %v4008 = vadd.f32 %v3847, %v4007
      %v4009 = vpop.f32.mrb[0].mxu0
      %4010 = vmatprep.mubr.bf16.mxu0 0
      %4011 = vmatmul.mubr.bf16.gmra.mrb[0].mxu0 %v2627
      %v4012 = vpop.f32.mrb[0].mxu0
      %v4013 = vadd.f32 %v3852, %v4012
      %v4014 = vpop.f32.mrb[0].mxu0
      %v4015 = vpop.f32.mrb[0].mxu0
      %v4016 = vadd.f32 %v3855, %v4015
      %v4017 = vpop.f32.mrb[0].mxu0
      %4018 = vmatprep.mubr.bf16.mxu0 0
      %4019 = vmatmul.mubr.bf16.gmra.mrb[0].mxu0 %v2628
      %v4020 = vpop.f32.mrb[0].mxu0
      %v4021 = vadd.f32 %v3860, %v4020
      %v4022 = vpop.f32.mrb[0].mxu0
      %v4023 = vpop.f32.mrb[0].mxu0
      %v4024 = vadd.f32 %v3863, %v4023
      %v4025 = vpop.f32.mrb[0].mxu0
      %4026 = vmatprep.mubr.bf16.mxu0 0
      %4027 = vmatmul.mubr.bf16.gmra.mrb[0].mxu0 %v2629
      %v4028 = vpop.f32.mrb[0].mxu0
      %v4029 = vadd.f32 %v3868, %v4028
      %v4030 = vpop.f32.mrb[0].mxu0
      %v4031 = vpop.f32.mrb[0].mxu0
      %v4032 = vadd.f32 %v3871, %v4031
      %v4033 = vpop.f32.mrb[0].mxu0
      %4034 = vmatprep.mubr.bf16.mxu0 0
      %4035 = vmatmul.mubr.bf16.gmra.mrb[0].mxu0 %v2649
      %v4036 = vpop.f32.mrb[0].mxu0
      %v4037 = vadd.f32 %v3876, %v4036
      %v4038 = vpop.f32.mrb[0].mxu0
      %v4039 = vpop.f32.mrb[0].mxu0
      %v4040 = vadd.f32 %v3879, %v4039
      %v4041 = vpop.f32.mrb[0].mxu0
      %4042 = vmatprep.mubr.bf16.mxu0 0
      %4043 = vmatmul.mubr.bf16.gmra.mrb[0].mxu0 %v2669
      %v4044 = vpop.f32.mrb[0].mxu0
      %v4045 = vadd.f32 %v3884, %v4044
      %v4046 = vpop.f32.mrb[0].mxu0
      %v4047 = vpop.f32.mrb[0].mxu0
      %v4048 = vadd.f32 %v3887, %v4047
      %v4049 = vpop.f32.mrb[0].mxu0
      %4050 = vdwg.mxu0
      %v4051 = vadd.f32 %v3925, %v3928
      %v4052 = vadd.f32 %v4051, %v3933
      %v4053 = vadd.f32 %v4052, %v3936
      %v4054 = vadd.f32 %v4053, %v3941
      %v4055 = vadd.f32 %v4054, %v3944
      %v4056 = vadd.f32 %v4055, %v3949
      %v4057 = vadd.f32 %v4056, %v3952
      %v4058 = vadd.f32 %v4057, %v3957
      %v4059 = vadd.f32 %v4058, %v3960
      %v4060 = vadd.f32 %v4059, %v3965
      %v4061 = vadd.f32 %v4060, %v3968
      %v4062 = vadd.f32 %v4061, %v3973
      %v4063 = vadd.f32 %v4062, %v3976
      %v4064 = vadd.f32 %v4063, %v3981
      %v4065 = vadd.f32 %v4064, %v3984
      %v4066 = vadd.f32 %v4065, %v3989
      %v4067 = vadd.f32 %v4066, %v3992
      %v4068 = vadd.f32 %v4067, %v3997
      %v4069 = vadd.f32 %v4068, %v4000
      %v4070 = vadd.f32 %v4069, %v4005
      %v4071 = vadd.f32 %v4070, %v4008
      %v4072 = vadd.f32 %v4071, %v4013
      %v4073 = vadd.f32 %v4072, %v4016
      %v4074 = vadd.f32 %v4073, %v4021
      %v4075 = vadd.f32 %v4074, %v4024
      %v4076 = vadd.f32 %v4075, %v4029
      %v4077 = vadd.f32 %v4076, %v4032
      %v4078 = vadd.f32 %v4077, %v4037
      %v4079 = vadd.f32 %v4078, %v4040
      %v4080 = vadd.f32 %v4079, %v4045
      %v4081 = vadd.f32 %v4080, %v4048
      %v4082 = vrot.slane %v4081, 4
      %v4083 = vadd.f32 %v4081, %v4082
      %v4084 = vrot.slane %v4083, 2
      %v4085 = vadd.f32 %v4083, %v4084
      %v4086 = vrot.slane %v4085, 1
      %v4087 = vadd.f32 %v4085, %v4086
      %v4088 = vmul.f32 %v4087, %v2006
      %v4089 = vsub.f32 %v3925, %v4088
      %v4090 = vsub.f32 %v3928, %v4088
      %v4091 = vsub.f32 %v3933, %v4088
      %v4092 = vsub.f32 %v3936, %v4088
      %v4093 = vsub.f32 %v3941, %v4088
      %v4094 = vsub.f32 %v3944, %v4088
      %v4095 = vsub.f32 %v3949, %v4088
      %v4096 = vsub.f32 %v3952, %v4088
      %v4097 = vsub.f32 %v3957, %v4088
      %v4098 = vsub.f32 %v3960, %v4088
      %v4099 = vsub.f32 %v3965, %v4088
      %v4100 = vsub.f32 %v3968, %v4088
      %v4101 = vsub.f32 %v3973, %v4088
      %v4102 = vsub.f32 %v3976, %v4088
      %v4103 = vsub.f32 %v3981, %v4088
      %v4104 = vsub.f32 %v3984, %v4088
      %v4105 = vsub.f32 %v3989, %v4088
      %v4106 = vsub.f32 %v3992, %v4088
      %v4107 = vsub.f32 %v3997, %v4088
      %v4108 = vsub.f32 %v4000, %v4088
      %v4109 = vsub.f32 %v4005, %v4088
      %v4110 = vsub.f32 %v4008, %v4088
      %v4111 = vsub.f32 %v4013, %v4088
      %v4112 = vsub.f32 %v4016, %v4088
      %v4113 = vsub.f32 %v4021, %v4088
      %v4114 = vsub.f32 %v4024, %v4088
      %v4115 = vsub.f32 %v4029, %v4088
      %v4116 = vsub.f32 %v4032, %v4088
      %v4117 = vsub.f32 %v4037, %v4088
      %v4118 = vsub.f32 %v4040, %v4088
      %v4119 = vsub.f32 %v4045, %v4088
      %v4120 = vsub.f32 %v4048, %v4088
      %v4121 = vmul.f32 %v4089, %v4089
      %v4122 = vmul.f32 %v4090, %v4090
      %v4123 = vmul.f32 %v4091, %v4091
      %v4124 = vmul.f32 %v4092, %v4092
      %v4125 = vmul.f32 %v4093, %v4093
      %v4126 = vmul.f32 %v4094, %v4094
      %v4127 = vmul.f32 %v4095, %v4095
      %v4128 = vmul.f32 %v4096, %v4096
      %v4129 = vmul.f32 %v4097, %v4097
      %v4130 = vmul.f32 %v4098, %v4098
      %v4131 = vmul.f32 %v4099, %v4099
      %v4132 = vmul.f32 %v4100, %v4100
      %v4133 = vmul.f32 %v4101, %v4101
      %v4134 = vmul.f32 %v4102, %v4102
      %v4135 = vmul.f32 %v4103, %v4103
      %v4136 = vmul.f32 %v4104, %v4104
      %v4137 = vmul.f32 %v4105, %v4105
      %v4138 = vmul.f32 %v4106, %v4106
      %v4139 = vmul.f32 %v4107, %v4107
      %v4140 = vmul.f32 %v4108, %v4108
      %v4141 = vmul.f32 %v4109, %v4109
      %v4142 = vmul.f32 %v4110, %v4110
      %v4143 = vmul.f32 %v4111, %v4111
      %v4144 = vmul.f32 %v4112, %v4112
      %v4145 = vmul.f32 %v4113, %v4113
      %v4146 = vmul.f32 %v4114, %v4114
      %v4147 = vmul.f32 %v4115, %v4115
      %v4148 = vmul.f32 %v4116, %v4116
      %v4149 = vmul.f32 %v4117, %v4117
      %v4150 = vmul.f32 %v4118, %v4118
      %v4151 = vmul.f32 %v4119, %v4119
      %v4152 = vmul.f32 %v4120, %v4120
      %v4153 = vadd.f32 %v4121, %v4122
      %v4154 = vadd.f32 %v4153, %v4123
      %v4155 = vadd.f32 %v4154, %v4124
      %v4156 = vadd.f32 %v4155, %v4125
      %v4157 = vadd.f32 %v4156, %v4126
      %v4158 = vadd.f32 %v4157, %v4127
      %v4159 = vadd.f32 %v4158, %v4128
      %v4160 = vadd.f32 %v4159, %v4129
      %v4161 = vadd.f32 %v4160, %v4130
      %v4162 = vadd.f32 %v4161, %v4131
      %v4163 = vadd.f32 %v4162, %v4132
      %v4164 = vadd.f32 %v4163, %v4133
      %v4165 = vadd.f32 %v4164, %v4134
      %v4166 = vadd.f32 %v4165, %v4135
      %v4167 = vadd.f32 %v4166, %v4136
      %v4168 = vadd.f32 %v4167, %v4137
      %v4169 = vadd.f32 %v4168, %v4138
      %v4170 = vadd.f32 %v4169, %v4139
      %v4171 = vadd.f32 %v4170, %v4140
      %v4172 = vadd.f32 %v4171, %v4141
      %v4173 = vadd.f32 %v4172, %v4142
      %v4174 = vadd.f32 %v4173, %v4143
      %v4175 = vadd.f32 %v4174, %v4144
      %v4176 = vadd.f32 %v4175, %v4145
      %v4177 = vadd.f32 %v4176, %v4146
      %v4178 = vadd.f32 %v4177, %v4147
      %v4179 = vadd.f32 %v4178, %v4148
      %v4180 = vadd.f32 %v4179, %v4149
      %v4181 = vadd.f32 %v4180, %v4150
      %v4182 = vadd.f32 %v4181, %v4151
      %v4183 = vadd.f32 %v4182, %v4152
      %v4184 = vrot.slane %v4183, 4
      %v4185 = vadd.f32 %v4183, %v4184
      %v4186 = vrot.slane %v4185, 2
      %v4187 = vadd.f32 %v4185, %v4186
      %v4188 = vrot.slane %v4187, 1
      %v4189 = vadd.f32 %v4187, %v4188
      %v4190 = vmul.f32 %v4189, %v2006
      %v4191 = vadd.f32 %v4190, 1e-05
      %v4192 = vrsqrt.pop %v4191
      %v4193 = vmul.f32 %v4089, %v4192
      %v4194 = vmul.f32 %v4090, %v4192
      %v4195 = vmul.f32 %v4091, %v4192
      %v4196 = vmul.f32 %v4092, %v4192
      %v4197 = vmul.f32 %v4093, %v4192
      %v4198 = vmul.f32 %v4094, %v4192
      %v4199 = vmul.f32 %v4095, %v4192
      %v4200 = vmul.f32 %v4096, %v4192
      %v4201 = vmul.f32 %v4097, %v4192
      %v4202 = vmul.f32 %v4098, %v4192
      %v4203 = vmul.f32 %v4099, %v4192
      %v4204 = vmul.f32 %v4100, %v4192
      %v4205 = vmul.f32 %v4101, %v4192
      %v4206 = vmul.f32 %v4102, %v4192
      %v4207 = vmul.f32 %v4103, %v4192
      %v4208 = vmul.f32 %v4104, %v4192
      %v4209 = vmul.f32 %v4105, %v4192
      %v4210 = vmul.f32 %v4106, %v4192
      %v4211 = vmul.f32 %v4107, %v4192
      %v4212 = vmul.f32 %v4108, %v4192
      %v4213 = vmul.f32 %v4109, %v4192
      %v4214 = vmul.f32 %v4110, %v4192
      %v4215 = vmul.f32 %v4111, %v4192
      %v4216 = vmul.f32 %v4112, %v4192
      %v4217 = vmul.f32 %v4113, %v4192
      %v4218 = vmul.f32 %v4114, %v4192
      %v4219 = vmul.f32 %v4115, %v4192
      %v4220 = vmul.f32 %v4116, %v4192
      %v4221 = vmul.f32 %v4117, %v4192
      %v4222 = vmul.f32 %v4118, %v4192
      %v4223 = vmul.f32 %v4119, %v4192
      %v4224 = vmul.f32 %v4120, %v4192
      %v4225 = vadd.f32 %v298, %v4193
      %v4226 = vadd.f32 %v300, %v4194
      %v4227 = vadd.f32 %v303, %v4195
      %v4228 = vadd.f32 %v305, %v4196
      %v4229 = vadd.f32 %v308, %v4197
      %v4230 = vadd.f32 %v310, %v4198
      %v4231 = vadd.f32 %v313, %v4199
      %v4232 = vadd.f32 %v315, %v4200
      %v4233 = vadd.f32 %v318, %v4201
      %v4234 = vadd.f32 %v320, %v4202
      %v4235 = vadd.f32 %v323, %v4203
      %v4236 = vadd.f32 %v325, %v4204
      %v4237 = vadd.f32 %v328, %v4205
      %v4238 = vadd.f32 %v330, %v4206
      %v4239 = vadd.f32 %v333, %v4207
      %v4240 = vadd.f32 %v335, %v4208
      %v4241 = vadd.f32 %v338, %v4209
      %v4242 = vadd.f32 %v340, %v4210
      %v4243 = vadd.f32 %v343, %v4211
      %v4244 = vadd.f32 %v345, %v4212
      %v4245 = vadd.f32 %v348, %v4213
      %v4246 = vadd.f32 %v350, %v4214
      %v4247 = vadd.f32 %v353, %v4215
      %v4248 = vadd.f32 %v355, %v4216
      %v4249 = vadd.f32 %v358, %v4217
      %v4250 = vadd.f32 %v360, %v4218
      %v4251 = vadd.f32 %v363, %v4219
      %v4252 = vadd.f32 %v365, %v4220
      %v4253 = vadd.f32 %v368, %v4221
      %v4254 = vadd.f32 %v370, %v4222
      %v4255 = vadd.f32 %v554, %v4223
      %v4256 = vadd.f32 %v556, %v4224
      %4257 = vst [vmem:[%s170] sm:$0xff] %v4225
      %4258 = vst [vmem:[%s170 + $0x8] sm:$0xff] %v4226
      %4259 = vst [vmem:[%s170 + $0x10] sm:$0xff] %v4227
      %4260 = vst [vmem:[%s170 + $0x18] sm:$0xff] %v4228
      %4261 = vst [vmem:[%s170 + $0x20] sm:$0xff] %v4229
      %4262 = vst [vmem:[%s170 + $0x28] sm:$0xff] %v4230
      %4263 = vst [vmem:[%s170 + $0x30] sm:$0xff] %v4231
      %4264 = vst [vmem:[%s170 + $0x38] sm:$0xff] %v4232
      %4265 = vst [vmem:[%s170 + $0x40] sm:$0xff] %v4233
      %4266 = vst [vmem:[%s170 + $0x48] sm:$0xff] %v4234
      %4267 = vst [vmem:[%s170 + $0x50] sm:$0xff] %v4235
      %4268 = vst [vmem:[%s170 + $0x58] sm:$0xff] %v4236
      %4269 = vst [vmem:[%s170 + $0x60] sm:$0xff] %v4237
      %4270 = vst [vmem:[%s170 + $0x68] sm:$0xff] %v4238
      %4271 = vst [vmem:[%s170 + $0x70] sm:$0xff] %v4239
      %4272 = vst [vmem:[%s170 + $0x78] sm:$0xff] %v4240
      %4273 = vst [vmem:[%s170 + $0x80] sm:$0xff] %v4241
      %4274 = vst [vmem:[%s170 + $0x88] sm:$0xff] %v4242
      %4275 = vst [vmem:[%s170 + $0x90] sm:$0xff] %v4243
      %4276 = vst [vmem:[%s170 + $0x98] sm:$0xff] %v4244
      %4277 = vst [vmem:[%s170 + $0xa0] sm:$0xff] %v4245
      %4278 = vst [vmem:[%s170 + $0xa8] sm:$0xff] %v4246
      %4279 = vst [vmem:[%s170 + $0xb0] sm:$0xff] %v4247
      %4280 = vst [vmem:[%s170 + $0xb8] sm:$0xff] %v4248
      %4281 = vst [vmem:[%s170 + $0xc0] sm:$0xff] %v4249
      %4282 = vst [vmem:[%s170 + $0xc8] sm:$0xff] %v4250
      %4283 = vst [vmem:[%s170 + $0xd0] sm:$0xff] %v4251
      %4284 = vst [vmem:[%s170 + $0xd8] sm:$0xff] %v4252
      %4285 = vst [vmem:[%s170 + $0xe0] sm:$0xff] %v4253
      %4286 = vst [vmem:[%s170 + $0xe8] sm:$0xff] %v4254
      %4287 = vst [vmem:[%s170 + $0xf0] sm:$0xff] %v4255
      %4288 = vst [vmem:[%s170 + $0xf8] sm:$0xff] %v4256
      %p4289 = scmp.lt.s32.totalorder %s14, 1
      %s4290 = scalar_select %p4289, %s14, 1
      %s4291 = smul.addr %s4290, 32
      %s4292 = smul.addr %s4291, 8
      %s4293 = scalar_lea.vmem %s3, %s4292
      // Predicated region
      $region33: #{resnet_block_forward.1} parent=31 // pred_check
        %p4294 = pneg %p100
      $region34: #{resnet_block_forward.1} parent=31 // pred_check_branch
        %4296 = sbr.rel (%p4294) target = $region36
      $region35: #{resnet_block_forward.1} parent=31 // pred_region
        _
      $region36: #{resnet_block_forward.1} parent=31 // pred_fallthru
        _
    $region32: #{resnet_block_forward.1} parent=5 // pred_fallthru
      _
    %p4297 = scmp.le.s32.totalorder 2, %s9
    // Predicated region
    $region37: #{resnet_block_forward.1} parent=5 // pred_check
      %p4298 = pneg %p4297
    $region38: #{resnet_block_forward.1} parent=5 // pred_check_branch
      %4300 = sbr.rel (%p4298) target = $region40
    $region39: #{resnet_block_forward.1} parent=5 // pred_region
      %s4301 = ssub.s32 %s9, 2
      // Predicated region
      $region41: #{resnet_block_forward.1} parent=39 // pred_check
        %p4302 = pneg %p106
      $region42: #{resnet_block_forward.1} parent=39 // pred_check_branch
        %4304 = sbr.rel (%p4302) target = $region44
      $region43: #{resnet_block_forward.1} parent=39 // pred_region
        %p4305 = scmp.lt.s32.totalorder %s15, 1
        %s4306 = scalar_select %p4305, %s15, 1
        %s4307 = smul.addr %s4306, 32
        %s4308 = smul.addr %s4307, 8
        %s4309 = scalar_lea.vmem %s3, %s4308
      $region44: #{resnet_block_forward.1} parent=39 // pred_fallthru
        _
    $region40: #{resnet_block_forward.1} parent=5 // pred_fallthru
      _
  $region6: #{resnet_block_forward.1} parent=0 // loop_footer
    %s13 = sadd.s32 1, %s9
  $region7: #{resnet_block_forward.1} parent=0 // loop_footer_branch
    %8 = sbr.rel target = $region3
  $region8: #{resnet_block_forward.1} parent=0 // loop_exit
    _

</llo_original>
